<compile_context>
chip_gen: v7x
topology: tpu7x:2x2x1
jax: 0.10.0
libtpu: 0.0.40
codegen_flags: <defaults>
</compile_context>

<pallas_src>
import functools

import jax
import jax.numpy as jnp
from jax.experimental import pallas as pl
from jax.experimental.pallas import tpu as pltpu

K = 3          # conv kernel size
EPS = 1e-5     # BatchNorm eps


# --------------------------------------------------------------------------
# Geometry helpers
# --------------------------------------------------------------------------
def _geom(D, H, W):
    Dp, Hp, Wp = D + 2, H + 2, W + 2
    P = Dp * Hp * Wp                      # flattened padded volume (lane axis)
    M = Hp * Wp + Wp + 1                  # max |tap shift| in the flat index
    ML = ((M + 127) // 128) * 128         # lane-aligned zero margin
    return Dp, Hp, Wp, P, M, ML


def _tap_deltas(Hp, Wp):
    """Flat-index shift of each of the 27 taps, ordered (kd, kh, kw)."""
    return tuple((kd - 1) * Hp * Wp + (kh - 1) * Wp + (kw - 1)
                 for kd in range(K) for kh in range(K) for kw in range(K))


def _interior_mask(D, H, W):
    """(1, P) f32 mask: 1 at interior (valid output) flat positions, 0 on the halo."""
    Dp, Hp, Wp = D + 2, H + 2, W + 2
    md = (jnp.arange(Dp) >= 1) & (jnp.arange(Dp) <= D)
    mh = (jnp.arange(Hp) >= 1) & (jnp.arange(Hp) <= H)
    mw = (jnp.arange(Wp) >= 1) & (jnp.arange(Wp) <= W)
    m = md[:, None, None] & mh[None, :, None] & mw[None, None, :]
    return m.astype(jnp.float32).reshape(1, Dp * Hp * Wp)


# --------------------------------------------------------------------------
# Pallas kernels
# --------------------------------------------------------------------------
def conv1_kernel(xe_ref, m_ref, w_ref, y_ref, st_ref, p_ref, *, deltas, margin):
    """3x3x3 'same' conv for one sample, evaluated over the padded grid, + BN stats.

    xe_ref : (1, Cin, P + 2*margin)  channels-first, flat padded volume with zero margin
    m_ref  : (1, P)                  interior mask (1 on valid outputs, 0 on halo)
    w_ref  : (Cout, 27*Cin)          pre-transposed weights, cols ordered (kd, kh, kw, ci)
    y_ref  : (1, Cout, P)            raw conv output (halo columns are garbage)
    st_ref : (1, 2, Cout)            [interior sum; interior sum of squares]
    p_ref  : (27*Cin, P)             VMEM scratch: im2col patch matrix (lane = spatial)
    """
    _, cin, _ = xe_ref.shape
    _, cout, P = y_ref.shape

    # Every tap is a contiguous lane-dense slice of the flat padded axis.
    for t, dlt in enumerate(deltas):
        start = margin + dlt
        p_ref[t * cin:(t + 1) * cin, :] = xe_ref[0, :, start:start + P]

    # Single MXU matmul, already in store orientation (Cout rows x P lanes).
    y = jnp.dot(w_ref[...], p_ref[...], preferred_element_type=jnp.float32)
    y_ref[0, :, :] = y.astype(y_ref.dtype)

    mask = m_ref[0, :]
    ym = y * mask
    st_ref[0, 0, :] = jnp.sum(ym, axis=1)
    st_ref[0, 1, :] = jnp.sum(ym * y, axis=1)


def conv2_fused_kernel(y1_ref, s_ref, b_ref, m_ref, w_ref, y2_ref, st_ref,
                       xa_ref, p_ref, *, deltas, margin):
    """Fused BN1-apply + ReLU + halo zeroing + 3x3x3 conv2 + BN2 stats (one sample).

    y1_ref : (1, C, P)   raw conv1 output over the padded grid
    s_ref  : (C, 1)      BN1 scale = gamma / sqrt(var + eps)
    b_ref  : (C, 1)      BN1 shift = beta - mean * scale
    m_ref  : (1, P)      interior mask
    w_ref  : (C, 27*C)   pre-transposed conv2 weights
    y2_ref : (1, C, P)   raw conv2 output (halo columns garbage)
    st_ref : (1, 2, C)   conv2 interior sum / sum of squares
    xa_ref : (C, P + 2*margin)  VMEM scratch: BN+ReLU activation with zero halo/margin
    p_ref  : (27*C, P)          VMEM scratch: im2col patch matrix
    """
    _, C, P = y1_ref.shape
    mask = m_ref[0, :]

    # BN1 + ReLU; the mask multiply zeroes the halo columns (replaces jnp.pad / a
    # separate zero-fill pass), so xa is exactly the zero-padded conv2 input.
    a = jnp.maximum(y1_ref[0, :, :] * s_ref[...] + b_ref[...], 0.0) * mask   # (C, P)
    xa_ref[:, :margin] = jnp.zeros((C, margin), xa_ref.dtype)
    xa_ref[:, margin + P:] = jnp.zeros((C, xa_ref.shape[1] - margin - P), xa_ref.dtype)
    xa_ref[:, margin:margin + P] = a

    for t, dlt in enumerate(deltas):
        start = margin + dlt
        p_ref[t * C:(t + 1) * C, :] = xa_ref[:, start:start + P]

    y2 = jnp.dot(w_ref[...], p_ref[...], preferred_element_type=jnp.float32)  # (C, P)
    y2_ref[0, :, :] = y2.astype(y2_ref.dtype)

    ym = y2 * mask
    st_ref[0, 0, :] = jnp.sum(ym, axis=1)
    st_ref[0, 1, :] = jnp.sum(ym * y2, axis=1)


def bn_relu_kernel(y_ref, s_ref, b_ref, o_ref):
    """Final BN-apply + ReLU, channels-first / lane-dense.

    y_ref / o_ref: (1, C, P);  s_ref / b_ref: (C, 1).
    Halo columns stay garbage; they are sliced away in the wrapper.
    """
    o_ref[0, :, :] = jnp.maximum(
        y_ref[0, :, :] * s_ref[...] + b_ref[...], 0.0).astype(o_ref.dtype)


# --------------------------------------------------------------------------
# Wrappers
# --------------------------------------------------------------------------
def _compiler_params():
    # Generation-aware scoped-VMEM limit: ~3/4 of physical, capped at 100 MiB
    # (v5e/v6e: 128 MiB physical -> 96 MiB; v7x: 64 MiB -> 48 MiB).
    try:
        phys = pltpu.get_tpu_info().vmem_capacity_bytes
        limit = int(min(100 * (1 << 20), (phys * 3) // 4))
    except Exception:
        limit = 64 * (1 << 20)
    return pltpu.CompilerParams(
        dimension_semantics=("parallel",),   # shard the batch axis on v7x (2 TCs)
        vmem_limit_bytes=limit)


def conv1(xe, mask, w_t, spatial):
    """xe: (N, Cin, P + 2*ML) extended flat padded input; w_t: (Cout, 27*Cin)."""
    N, cin, L = xe.shape
    cout = w_t.shape[0]
    D, H, W = spatial
    _, Hp, Wp, P, _, ML = _geom(D, H, W)
    kernel = functools.partial(conv1_kernel, deltas=_tap_deltas(Hp, Wp), margin=ML)
    return pl.pallas_call(
        kernel,
        out_shape=(jax.ShapeDtypeStruct((N, cout, P), jnp.float32),
                   jax.ShapeDtypeStruct((N, 2, cout), jnp.float32)),
        grid_spec=pltpu.PrefetchScalarGridSpec(
            num_scalar_prefetch=0,
            grid=(N,),
            in_specs=[
                pl.BlockSpec((1, cin, L), lambda n: (n, 0, 0)),
                pl.BlockSpec((1, P), lambda n: (0, 0)),
                pl.BlockSpec((cout, K * K * K * cin), lambda n: (0, 0)),
            ],
            out_specs=[
                pl.BlockSpec((1, cout, P), lambda n: (n, 0, 0)),
                pl.BlockSpec((1, 2, cout), lambda n: (n, 0, 0)),
            ],
            scratch_shapes=[pltpu.VMEM((K * K * K * cin, P), jnp.float32)],
        ),
        compiler_params=_compiler_params(),
    )(xe, mask, w_t)


def conv2_fused(y1, scale, shift, mask, w_t, spatial):
    """y1: (N, C, P) raw conv1 output; scale/shift: (C, 1); w_t: (C, 27*C)."""
    N, C, P = y1.shape
    D, H, W = spatial
    _, Hp, Wp, P2, _, ML = _geom(D, H, W)
    assert P == P2
    kernel = functools.partial(conv2_fused_kernel, deltas=_tap_deltas(Hp, Wp), margin=ML)
    return pl.pallas_call(
        kernel,
        out_shape=(jax.ShapeDtypeStruct((N, C, P), jnp.float32),
                   jax.ShapeDtypeStruct((N, 2, C), jnp.float32)),
        grid_spec=pltpu.PrefetchScalarGridSpec(
            num_scalar_prefetch=0,
            grid=(N,),
            in_specs=[
                pl.BlockSpec((1, C, P), lambda n: (n, 0, 0)),
                pl.BlockSpec((C, 1), lambda n: (0, 0)),
                pl.BlockSpec((C, 1), lambda n: (0, 0)),
                pl.BlockSpec((1, P), lambda n: (0, 0)),
                pl.BlockSpec((C, K * K * K * C), lambda n: (0, 0)),
            ],
            out_specs=[
                pl.BlockSpec((1, C, P), lambda n: (n, 0, 0)),
                pl.BlockSpec((1, 2, C), lambda n: (n, 0, 0)),
            ],
            scratch_shapes=[
                pltpu.VMEM((C, P + 2 * ML), jnp.float32),
                pltpu.VMEM((K * K * K * C, P), jnp.float32),
            ],
        ),
        compiler_params=_compiler_params(),
    )(y1, scale, shift, mask, w_t)


def bn_relu(y, scale, shift):
    """(N, C, P) -> (N, C, P), fused BN-apply + ReLU (lane-dense, channels-first)."""
    N, C, P = y.shape
    return pl.pallas_call(
        bn_relu_kernel,
        out_shape=jax.ShapeDtypeStruct(y.shape, y.dtype),
        grid_spec=pltpu.PrefetchScalarGridSpec(
            num_scalar_prefetch=0,
            grid=(N,),
            in_specs=[
                pl.BlockSpec((1, C, P), lambda n: (n, 0, 0)),
                pl.BlockSpec((C, 1), lambda n: (0, 0)),
                pl.BlockSpec((C, 1), lambda n: (0, 0)),
            ],
            out_specs=pl.BlockSpec((1, C, P), lambda n: (n, 0, 0)),
        ),
        compiler_params=_compiler_params(),
    )(y, scale, shift)


def bn_scale_shift(stats, gamma, beta, count):
    """Fold training-mode BatchNorm batch statistics into per-channel scale/shift.

    stats: (N, 2, C) with row 0 = interior sum, row 1 = interior sum of squares.
    """
    s = jnp.sum(stats[:, 0, :], axis=0)
    q = jnp.sum(stats[:, 1, :], axis=0)
    mean = s / count
    var = jnp.maximum(q / count - mean * mean, 0.0)   # biased var (PyTorch training BN)
    scale = gamma * jax.lax.rsqrt(var + EPS)
    shift = beta - mean * scale
    return scale.reshape(-1, 1), shift.reshape(-1, 1)


@jax.jit
def double_conv(x_ncdhw, params):
    """Pallas DoubleConv.  Input/output in PyTorch NCDHW layout."""
    w1, b1, g1, be1, w2, b2, g2, be2 = params
    del b1, b2   # conv biases are exactly cancelled by training-mode BN mean subtraction
    N, Cin, D, H, W = x_ncdhw.shape
    Cout = w1.shape[-1]
    Dp, Hp, Wp, P, _, ML = _geom(D, H, W)
    count = N * D * H * W

    mask = _interior_mask(D, H, W)                       # (1, P), constant-folded

    # Conv1 input: already channels-first; zero-pad the spatial dims by 1, flatten the
    # padded volume onto the lane axis, and add a lane-aligned zero margin so every
    # 3x3x3 tap is a contiguous slice of the flat axis.
    xp = jnp.pad(x_ncdhw, ((0, 0), (0, 0), (1, 1), (1, 1), (1, 1)))
    xe = jnp.pad(xp.reshape(N, Cin, P), ((0, 0), (0, 0), (ML, ML)))

    # Pre-transpose weights to (Cout, 27*Cin) so the conv result is produced directly in
    # channels-first / lane-dense orientation (no in-kernel transpose).
    w1t = w1.reshape(K * K * K * Cin, Cout).T
    w2t = w2.reshape(K * K * K * Cout, Cout).T

    # conv1 (+ BN1 stats) -> fused BN1/ReLU/conv2 (+ BN2 stats) -> final BN2/ReLU.
    y1, st1 = conv1(xe, mask, w1t, (D, H, W))
    sc1, sh1 = bn_scale_shift(st1, g1, be1, count)
    y2, st2 = conv2_fused(y1, sc1, sh1, mask, w2t, (D, H, W))
    sc2, sh2 = bn_scale_shift(st2, g2, be2, count)
    out_p = bn_relu(y2, sc2, sh2)                        # (N, Cout, P), halo garbage

    # Interior extraction (drops the halo columns).  One cheap XLA slice; could be fused
    # into bn_relu_kernel with strided stores if this pass ever shows up in profiles.
    out = out_p.reshape(N, Cout, Dp, Hp, Wp)[:, :, 1:1 + D, 1:1 + H, 1:1 + W]
    return out


# --------------------------------------------------------------------------
# Pure-JAX reference (for correctness check; keeps the conv bias)
# --------------------------------------------------------------------------
def reference_double_conv(x_ncdhw, params):
    w1, b1, g1, be1, w2, b2, g2, be2 = params
    x = jnp.transpose(x_ncdhw, (0, 2, 3, 4, 1))

    def conv(x, w, b):
        y = jax.lax.conv_general_dilated(
            x, w, window_strides=(1, 1, 1),
            padding=((1, 1), (1, 1), (1, 1)),
            dimension_numbers=("NDHWC", "DHWIO", "NDHWC"))
        return y + b

    def bnrelu(y, g, be):
        m = y.mean(axis=(0, 1, 2, 3))
        v = ((y - m) ** 2).mean(axis=(0, 1, 2, 3))   # biased var (PyTorch training BN)
        return jnp.maximum((y - m) / jnp.sqrt(v + EPS) * g + be, 0.0)

    y = bnrelu(conv(x, w1, b1), g1, be1)
    y = bnrelu(conv(y, w2, b2), g2, be2)
    return jnp.transpose(y, (0, 4, 1, 2, 3))


# --------------------------------------------------------------------------
# Main
# --------------------------------------------------------------------------
if __name__ == "__main__":
    in_channels, out_channels = 4, 8
    N, D, H, W = 2, 8, 8, 8

    key = jax.random.PRNGKey(0)
    ks = jax.random.split(key, 9)

    # Deterministic synthetic parameters (shapes follow the PyTorch module; DHWIO).
    w1 = 0.1 * jax.random.normal(ks[0], (K, K, K, in_channels, out_channels), jnp.float32)
    b1 = 0.1 * jax.random.normal(ks[1], (out_channels,), jnp.float32)
    g1 = 1.0 + 0.1 * jax.random.normal(ks[2], (out_channels,), jnp.float32)
    be1 = 0.1 * jax.random.normal(ks[3], (out_channels,), jnp.float32)
    w2 = 0.1 * jax.random.normal(ks[4], (K, K, K, out_channels, out_channels), jnp.float32)
    b2 = 0.1 * jax.random.normal(ks[5], (out_channels,), jnp.float32)
    g2 = 1.0 + 0.1 * jax.random.normal(ks[6], (out_channels,), jnp.float32)
    be2 = 0.1 * jax.random.normal(ks[7], (out_channels,), jnp.float32)
    params = (w1, b1, g1, be1, w2, b2, g2, be2)

    # Input in PyTorch NCDHW layout.
    x = jax.random.normal(ks[8], (N, in_channels, D, H, W), jnp.float32)

    out = double_conv(x, params)
    out = jax.block_until_ready(out)

    ref = reference_double_conv(x, params)
    assert out.shape == (N, out_channels, D, H, W), out.shape
    assert jnp.allclose(out, ref, atol=3e-3, rtol=3e-3), (
        float(jnp.max(jnp.abs(out - ref))))

    print("KERNEL_OK")
</pallas_src>

<mosaic_0001>
module attributes {stable_mosaic.version = 11 : i64} {
  func.func @conv1_kernel(%arg0: i32, %arg1: memref<1x4x1256xf32, #tpu.memory_space<vmem>>, %arg2: memref<1x1000xf32, #tpu.memory_space<vmem>>, %arg3: memref<8x108xf32, #tpu.memory_space<vmem>>, %arg4: memref<1x8x1000xf32, #tpu.memory_space<vmem>>, %arg5: memref<1x2x8xf32, #tpu.memory_space<vmem>>, %arg6: memref<108x1000xf32, #tpu.memory_space<vmem>>) attributes {dimension_semantics = [#tpu.dimension_semantics<parallel>], iteration_bounds = array<i64: 2>, scalar_prefetch = 0 : i64, scratch_operands = 1 : i64, tpu.core_type = #tpu.core_type<tc>, window_params = [{transform_indices = @transform_0, window_bounds = array<i64: 1, 4, 1256>}, {pipeline_mode = #tpu.pipeline_mode<synchronous>, transform_indices = @transform_1, window_bounds = array<i64: 1, 1000>}, {pipeline_mode = #tpu.pipeline_mode<synchronous>, transform_indices = @transform_2, window_bounds = array<i64: 8, 108>}, {transform_indices = @transform_3, window_bounds = array<i64: 1, 8, 1000>}, {transform_indices = @transform_4, window_bounds = array<i64: 1, 2, 8>}]} {
    %c0 = arith.constant 0 : index
    %c0_0 = arith.constant 0 : index
    %c17 = arith.constant 17 : index
    %0 = vector.load %arg1[%c0, %c0_0, %c17] : memref<1x4x1256xf32, #tpu.memory_space<vmem>>, vector<1x4x1000xf32>
    %1 = vector.shape_cast %0 : vector<1x4x1000xf32> to vector<4x1000xf32>
    %c0_1 = arith.constant 0 : index
    %c0_2 = arith.constant 0 : index
    %2 = vector.load %arg6[%c0_1, %c0_2] : memref<108x1000xf32, #tpu.memory_space<vmem>>, vector<4x1000xf32>
    tpu.vector_store %arg6[%c0_1, %c0_2], %1 {strides = array<i32>} : memref<108x1000xf32, #tpu.memory_space<vmem>>, vector<4x1000xf32>,
    %c0_3 = arith.constant 0 : index
    %c0_4 = arith.constant 0 : index
    %c18 = arith.constant 18 : index
    %3 = vector.load %arg1[%c0_3, %c0_4, %c18] : memref<1x4x1256xf32, #tpu.memory_space<vmem>>, vector<1x4x1000xf32>
    %4 = vector.shape_cast %3 : vector<1x4x1000xf32> to vector<4x1000xf32>
    %c4 = arith.constant 4 : index
    %c0_5 = arith.constant 0 : index
    %5 = vector.load %arg6[%c4, %c0_5] : memref<108x1000xf32, #tpu.memory_space<vmem>>, vector<4x1000xf32>
    tpu.vector_store %arg6[%c4, %c0_5], %4 {strides = array<i32>} : memref<108x1000xf32, #tpu.memory_space<vmem>>, vector<4x1000xf32>,
    %c0_6 = arith.constant 0 : index
    %c0_7 = arith.constant 0 : index
    %c19 = arith.constant 19 : index
    %6 = vector.load %arg1[%c0_6, %c0_7, %c19] : memref<1x4x1256xf32, #tpu.memory_space<vmem>>, vector<1x4x1000xf32>
    %7 = vector.shape_cast %6 : vector<1x4x1000xf32> to vector<4x1000xf32>
    %c8 = arith.constant 8 : index
    %c0_8 = arith.constant 0 : index
    %8 = vector.load %arg6[%c8, %c0_8] : memref<108x1000xf32, #tpu.memory_space<vmem>>, vector<4x1000xf32>
    tpu.vector_store %arg6[%c8, %c0_8], %7 {strides = array<i32>} : memref<108x1000xf32, #tpu.memory_space<vmem>>, vector<4x1000xf32>,
    %c0_9 = arith.constant 0 : index
    %c0_10 = arith.constant 0 : index
    %c27 = arith.constant 27 : index
    %9 = vector.load %arg1[%c0_9, %c0_10, %c27] : memref<1x4x1256xf32, #tpu.memory_space<vmem>>, vector<1x4x1000xf32>
    %10 = vector.shape_cast %9 : vector<1x4x1000xf32> to vector<4x1000xf32>
    %c12 = arith.constant 12 : index
    %c0_11 = arith.constant 0 : index
    %11 = vector.load %arg6[%c12, %c0_11] : memref<108x1000xf32, #tpu.memory_space<vmem>>, vector<4x1000xf32>
    tpu.vector_store %arg6[%c12, %c0_11], %10 {strides = array<i32>} : memref<108x1000xf32, #tpu.memory_space<vmem>>, vector<4x1000xf32>,
    %c0_12 = arith.constant 0 : index
    %c0_13 = arith.constant 0 : index
    %c28 = arith.constant 28 : index
    %12 = vector.load %arg1[%c0_12, %c0_13, %c28] : memref<1x4x1256xf32, #tpu.memory_space<vmem>>, vector<1x4x1000xf32>
    %13 = vector.shape_cast %12 : vector<1x4x1000xf32> to vector<4x1000xf32>
    %c16 = arith.constant 16 : index
    %c0_14 = arith.constant 0 : index
    %14 = vector.load %arg6[%c16, %c0_14] : memref<108x1000xf32, #tpu.memory_space<vmem>>, vector<4x1000xf32>
    tpu.vector_store %arg6[%c16, %c0_14], %13 {strides = array<i32>} : memref<108x1000xf32, #tpu.memory_space<vmem>>, vector<4x1000xf32>,
    %c0_15 = arith.constant 0 : index
    %c0_16 = arith.constant 0 : index
    %c29 = arith.constant 29 : index
    %15 = vector.load %arg1[%c0_15, %c0_16, %c29] : memref<1x4x1256xf32, #tpu.memory_space<vmem>>, vector<1x4x1000xf32>
    %16 = vector.shape_cast %15 : vector<1x4x1000xf32> to vector<4x1000xf32>
    %c20 = arith.constant 20 : index
    %c0_17 = arith.constant 0 : index
    %17 = vector.load %arg6[%c20, %c0_17] : memref<108x1000xf32, #tpu.memory_space<vmem>>, vector<4x1000xf32>
    tpu.vector_store %arg6[%c20, %c0_17], %16 {strides = array<i32>} : memref<108x1000xf32, #tpu.memory_space<vmem>>, vector<4x1000xf32>,
    %c0_18 = arith.constant 0 : index
    %c0_19 = arith.constant 0 : index
    %c37 = arith.constant 37 : index
    %18 = vector.load %arg1[%c0_18, %c0_19, %c37] : memref<1x4x1256xf32, #tpu.memory_space<vmem>>, vector<1x4x1000xf32>
    %19 = vector.shape_cast %18 : vector<1x4x1000xf32> to vector<4x1000xf32>
    %c24 = arith.constant 24 : index
    %c0_20 = arith.constant 0 : index
    %20 = vector.load %arg6[%c24, %c0_20] : memref<108x1000xf32, #tpu.memory_space<vmem>>, vector<4x1000xf32>
    tpu.vector_store %arg6[%c24, %c0_20], %19 {strides = array<i32>} : memref<108x1000xf32, #tpu.memory_space<vmem>>, vector<4x1000xf32>,
    %c0_21 = arith.constant 0 : index
    %c0_22 = arith.constant 0 : index
    %c38 = arith.constant 38 : index
    %21 = vector.load %arg1[%c0_21, %c0_22, %c38] : memref<1x4x1256xf32, #tpu.memory_space<vmem>>, vector<1x4x1000xf32>
    %22 = vector.shape_cast %21 : vector<1x4x1000xf32> to vector<4x1000xf32>
    %c28_23 = arith.constant 28 : index
    %c0_24 = arith.constant 0 : index
    %23 = vector.load %arg6[%c28_23, %c0_24] : memref<108x1000xf32, #tpu.memory_space<vmem>>, vector<4x1000xf32>
    tpu.vector_store %arg6[%c28_23, %c0_24], %22 {strides = array<i32>} : memref<108x1000xf32, #tpu.memory_space<vmem>>, vector<4x1000xf32>,
    %c0_25 = arith.constant 0 : index
    %c0_26 = arith.constant 0 : index
    %c39 = arith.constant 39 : index
    %24 = vector.load %arg1[%c0_25, %c0_26, %c39] : memref<1x4x1256xf32, #tpu.memory_space<vmem>>, vector<1x4x1000xf32>
    %25 = vector.shape_cast %24 : vector<1x4x1000xf32> to vector<4x1000xf32>
    %c32 = arith.constant 32 : index
    %c0_27 = arith.constant 0 : index
    %26 = vector.load %arg6[%c32, %c0_27] : memref<108x1000xf32, #tpu.memory_space<vmem>>, vector<4x1000xf32>
    tpu.vector_store %arg6[%c32, %c0_27], %25 {strides = array<i32>} : memref<108x1000xf32, #tpu.memory_space<vmem>>, vector<4x1000xf32>,
    %c0_28 = arith.constant 0 : index
    %c0_29 = arith.constant 0 : index
    %c117 = arith.constant 117 : index
    %27 = vector.load %arg1[%c0_28, %c0_29, %c117] : memref<1x4x1256xf32, #tpu.memory_space<vmem>>, vector<1x4x1000xf32>
    %28 = vector.shape_cast %27 : vector<1x4x1000xf32> to vector<4x1000xf32>
    %c36 = arith.constant 36 : index
    %c0_30 = arith.constant 0 : index
    %29 = vector.load %arg6[%c36, %c0_30] : memref<108x1000xf32, #tpu.memory_space<vmem>>, vector<4x1000xf32>
    tpu.vector_store %arg6[%c36, %c0_30], %28 {strides = array<i32>} : memref<108x1000xf32, #tpu.memory_space<vmem>>, vector<4x1000xf32>,
    %c0_31 = arith.constant 0 : index
    %c0_32 = arith.constant 0 : index
    %c118 = arith.constant 118 : index
    %30 = vector.load %arg1[%c0_31, %c0_32, %c118] : memref<1x4x1256xf32, #tpu.memory_space<vmem>>, vector<1x4x1000xf32>
    %31 = vector.shape_cast %30 : vector<1x4x1000xf32> to vector<4x1000xf32>
    %c40 = arith.constant 40 : index
    %c0_33 = arith.constant 0 : index
    %32 = vector.load %arg6[%c40, %c0_33] : memref<108x1000xf32, #tpu.memory_space<vmem>>, vector<4x1000xf32>
    tpu.vector_store %arg6[%c40, %c0_33], %31 {strides = array<i32>} : memref<108x1000xf32, #tpu.memory_space<vmem>>, vector<4x1000xf32>,
    %c0_34 = arith.constant 0 : index
    %c0_35 = arith.constant 0 : index
    %c119 = arith.constant 119 : index
    %33 = vector.load %arg1[%c0_34, %c0_35, %c119] : memref<1x4x1256xf32, #tpu.memory_space<vmem>>, vector<1x4x1000xf32>
    %34 = vector.shape_cast %33 : vector<1x4x1000xf32> to vector<4x1000xf32>
    %c44 = arith.constant 44 : index
    %c0_36 = arith.constant 0 : index
    %35 = vector.load %arg6[%c44, %c0_36] : memref<108x1000xf32, #tpu.memory_space<vmem>>, vector<4x1000xf32>
    tpu.vector_store %arg6[%c44, %c0_36], %34 {strides = array<i32>} : memref<108x1000xf32, #tpu.memory_space<vmem>>, vector<4x1000xf32>,
    %c0_37 = arith.constant 0 : index
    %c0_38 = arith.constant 0 : index
    %c127 = arith.constant 127 : index
    %36 = vector.load %arg1[%c0_37, %c0_38, %c127] : memref<1x4x1256xf32, #tpu.memory_space<vmem>>, vector<1x4x1000xf32>
    %37 = vector.shape_cast %36 : vector<1x4x1000xf32> to vector<4x1000xf32>
    %c48 = arith.constant 48 : index
    %c0_39 = arith.constant 0 : index
    %38 = vector.load %arg6[%c48, %c0_39] : memref<108x1000xf32, #tpu.memory_space<vmem>>, vector<4x1000xf32>
    tpu.vector_store %arg6[%c48, %c0_39], %37 {strides = array<i32>} : memref<108x1000xf32, #tpu.memory_space<vmem>>, vector<4x1000xf32>,
    %c0_40 = arith.constant 0 : index
    %c0_41 = arith.constant 0 : index
    %c128 = arith.constant 128 : index
    %39 = vector.load %arg1[%c0_40, %c0_41, %c128] : memref<1x4x1256xf32, #tpu.memory_space<vmem>>, vector<1x4x1000xf32>
    %40 = vector.shape_cast %39 : vector<1x4x1000xf32> to vector<4x1000xf32>
    %c52 = arith.constant 52 : index
    %c0_42 = arith.constant 0 : index
    %41 = vector.load %arg6[%c52, %c0_42] : memref<108x1000xf32, #tpu.memory_space<vmem>>, vector<4x1000xf32>
    tpu.vector_store %arg6[%c52, %c0_42], %40 {strides = array<i32>} : memref<108x1000xf32, #tpu.memory_space<vmem>>, vector<4x1000xf32>,
    %c0_43 = arith.constant 0 : index
    %c0_44 = arith.constant 0 : index
    %c129 = arith.constant 129 : index
    %42 = vector.load %arg1[%c0_43, %c0_44, %c129] : memref<1x4x1256xf32, #tpu.memory_space<vmem>>, vector<1x4x1000xf32>
    %43 = vector.shape_cast %42 : vector<1x4x1000xf32> to vector<4x1000xf32>
    %c56 = arith.constant 56 : index
    %c0_45 = arith.constant 0 : index
    %44 = vector.load %arg6[%c56, %c0_45] : memref<108x1000xf32, #tpu.memory_space<vmem>>, vector<4x1000xf32>
    tpu.vector_store %arg6[%c56, %c0_45], %43 {strides = array<i32>} : memref<108x1000xf32, #tpu.memory_space<vmem>>, vector<4x1000xf32>,
    %c0_46 = arith.constant 0 : index
    %c0_47 = arith.constant 0 : index
    %c137 = arith.constant 137 : index
    %45 = vector.load %arg1[%c0_46, %c0_47, %c137] : memref<1x4x1256xf32, #tpu.memory_space<vmem>>, vector<1x4x1000xf32>
    %46 = vector.shape_cast %45 : vector<1x4x1000xf32> to vector<4x1000xf32>
    %c60 = arith.constant 60 : index
    %c0_48 = arith.constant 0 : index
    %47 = vector.load %arg6[%c60, %c0_48] : memref<108x1000xf32, #tpu.memory_space<vmem>>, vector<4x1000xf32>
    tpu.vector_store %arg6[%c60, %c0_48], %46 {strides = array<i32>} : memref<108x1000xf32, #tpu.memory_space<vmem>>, vector<4x1000xf32>,
    %c0_49 = arith.constant 0 : index
    %c0_50 = arith.constant 0 : index
    %c138 = arith.constant 138 : index
    %48 = vector.load %arg1[%c0_49, %c0_50, %c138] : memref<1x4x1256xf32, #tpu.memory_space<vmem>>, vector<1x4x1000xf32>
    %49 = vector.shape_cast %48 : vector<1x4x1000xf32> to vector<4x1000xf32>
    %c64 = arith.constant 64 : index
    %c0_51 = arith.constant 0 : index
    %50 = vector.load %arg6[%c64, %c0_51] : memref<108x1000xf32, #tpu.memory_space<vmem>>, vector<4x1000xf32>
    tpu.vector_store %arg6[%c64, %c0_51], %49 {strides = array<i32>} : memref<108x1000xf32, #tpu.memory_space<vmem>>, vector<4x1000xf32>,
    %c0_52 = arith.constant 0 : index
    %c0_53 = arith.constant 0 : index
    %c139 = arith.constant 139 : index
    %51 = vector.load %arg1[%c0_52, %c0_53, %c139] : memref<1x4x1256xf32, #tpu.memory_space<vmem>>, vector<1x4x1000xf32>
    %52 = vector.shape_cast %51 : vector<1x4x1000xf32> to vector<4x1000xf32>
    %c68 = arith.constant 68 : index
    %c0_54 = arith.constant 0 : index
    %53 = vector.load %arg6[%c68, %c0_54] : memref<108x1000xf32, #tpu.memory_space<vmem>>, vector<4x1000xf32>
    tpu.vector_store %arg6[%c68, %c0_54], %52 {strides = array<i32>} : memref<108x1000xf32, #tpu.memory_space<vmem>>, vector<4x1000xf32>,
    %c0_55 = arith.constant 0 : index
    %c0_56 = arith.constant 0 : index
    %c217 = arith.constant 217 : index
    %54 = vector.load %arg1[%c0_55, %c0_56, %c217] : memref<1x4x1256xf32, #tpu.memory_space<vmem>>, vector<1x4x1000xf32>
    %55 = vector.shape_cast %54 : vector<1x4x1000xf32> to vector<4x1000xf32>
    %c72 = arith.constant 72 : index
    %c0_57 = arith.constant 0 : index
    %56 = vector.load %arg6[%c72, %c0_57] : memref<108x1000xf32, #tpu.memory_space<vmem>>, vector<4x1000xf32>
    tpu.vector_store %arg6[%c72, %c0_57], %55 {strides = array<i32>} : memref<108x1000xf32, #tpu.memory_space<vmem>>, vector<4x1000xf32>,
    %c0_58 = arith.constant 0 : index
    %c0_59 = arith.constant 0 : index
    %c218 = arith.constant 218 : index
    %57 = vector.load %arg1[%c0_58, %c0_59, %c218] : memref<1x4x1256xf32, #tpu.memory_space<vmem>>, vector<1x4x1000xf32>
    %58 = vector.shape_cast %57 : vector<1x4x1000xf32> to vector<4x1000xf32>
    %c76 = arith.constant 76 : index
    %c0_60 = arith.constant 0 : index
    %59 = vector.load %arg6[%c76, %c0_60] : memref<108x1000xf32, #tpu.memory_space<vmem>>, vector<4x1000xf32>
    tpu.vector_store %arg6[%c76, %c0_60], %58 {strides = array<i32>} : memref<108x1000xf32, #tpu.memory_space<vmem>>, vector<4x1000xf32>,
    %c0_61 = arith.constant 0 : index
    %c0_62 = arith.constant 0 : index
    %c219 = arith.constant 219 : index
    %60 = vector.load %arg1[%c0_61, %c0_62, %c219] : memref<1x4x1256xf32, #tpu.memory_space<vmem>>, vector<1x4x1000xf32>
    %61 = vector.shape_cast %60 : vector<1x4x1000xf32> to vector<4x1000xf32>
    %c80 = arith.constant 80 : index
    %c0_63 = arith.constant 0 : index
    %62 = vector.load %arg6[%c80, %c0_63] : memref<108x1000xf32, #tpu.memory_space<vmem>>, vector<4x1000xf32>
    tpu.vector_store %arg6[%c80, %c0_63], %61 {strides = array<i32>} : memref<108x1000xf32, #tpu.memory_space<vmem>>, vector<4x1000xf32>,
    %c0_64 = arith.constant 0 : index
    %c0_65 = arith.constant 0 : index
    %c227 = arith.constant 227 : index
    %63 = vector.load %arg1[%c0_64, %c0_65, %c227] : memref<1x4x1256xf32, #tpu.memory_space<vmem>>, vector<1x4x1000xf32>
    %64 = vector.shape_cast %63 : vector<1x4x1000xf32> to vector<4x1000xf32>
    %c84 = arith.constant 84 : index
    %c0_66 = arith.constant 0 : index
    %65 = vector.load %arg6[%c84, %c0_66] : memref<108x1000xf32, #tpu.memory_space<vmem>>, vector<4x1000xf32>
    tpu.vector_store %arg6[%c84, %c0_66], %64 {strides = array<i32>} : memref<108x1000xf32, #tpu.memory_space<vmem>>, vector<4x1000xf32>,
    %c0_67 = arith.constant 0 : index
    %c0_68 = arith.constant 0 : index
    %c228 = arith.constant 228 : index
    %66 = vector.load %arg1[%c0_67, %c0_68, %c228] : memref<1x4x1256xf32, #tpu.memory_space<vmem>>, vector<1x4x1000xf32>
    %67 = vector.shape_cast %66 : vector<1x4x1000xf32> to vector<4x1000xf32>
    %c88 = arith.constant 88 : index
    %c0_69 = arith.constant 0 : index
    %68 = vector.load %arg6[%c88, %c0_69] : memref<108x1000xf32, #tpu.memory_space<vmem>>, vector<4x1000xf32>
    tpu.vector_store %arg6[%c88, %c0_69], %67 {strides = array<i32>} : memref<108x1000xf32, #tpu.memory_space<vmem>>, vector<4x1000xf32>,
    %c0_70 = arith.constant 0 : index
    %c0_71 = arith.constant 0 : index
    %c229 = arith.constant 229 : index
    %69 = vector.load %arg1[%c0_70, %c0_71, %c229] : memref<1x4x1256xf32, #tpu.memory_space<vmem>>, vector<1x4x1000xf32>
    %70 = vector.shape_cast %69 : vector<1x4x1000xf32> to vector<4x1000xf32>
    %c92 = arith.constant 92 : index
    %c0_72 = arith.constant 0 : index
    %71 = vector.load %arg6[%c92, %c0_72] : memref<108x1000xf32, #tpu.memory_space<vmem>>, vector<4x1000xf32>
    tpu.vector_store %arg6[%c92, %c0_72], %70 {strides = array<i32>} : memref<108x1000xf32, #tpu.memory_space<vmem>>, vector<4x1000xf32>,
    %c0_73 = arith.constant 0 : index
    %c0_74 = arith.constant 0 : index
    %c237 = arith.constant 237 : index
    %72 = vector.load %arg1[%c0_73, %c0_74, %c237] : memref<1x4x1256xf32, #tpu.memory_space<vmem>>, vector<1x4x1000xf32>
    %73 = vector.shape_cast %72 : vector<1x4x1000xf32> to vector<4x1000xf32>
    %c96 = arith.constant 96 : index
    %c0_75 = arith.constant 0 : index
    %74 = vector.load %arg6[%c96, %c0_75] : memref<108x1000xf32, #tpu.memory_space<vmem>>, vector<4x1000xf32>
    tpu.vector_store %arg6[%c96, %c0_75], %73 {strides = array<i32>} : memref<108x1000xf32, #tpu.memory_space<vmem>>, vector<4x1000xf32>,
    %c0_76 = arith.constant 0 : index
    %c0_77 = arith.constant 0 : index
    %c238 = arith.constant 238 : index
    %75 = vector.load %arg1[%c0_76, %c0_77, %c238] : memref<1x4x1256xf32, #tpu.memory_space<vmem>>, vector<1x4x1000xf32>
    %76 = vector.shape_cast %75 : vector<1x4x1000xf32> to vector<4x1000xf32>
    %c100 = arith.constant 100 : index
    %c0_78 = arith.constant 0 : index
    %77 = vector.load %arg6[%c100, %c0_78] : memref<108x1000xf32, #tpu.memory_space<vmem>>, vector<4x1000xf32>
    tpu.vector_store %arg6[%c100, %c0_78], %76 {strides = array<i32>} : memref<108x1000xf32, #tpu.memory_space<vmem>>, vector<4x1000xf32>,
    %c0_79 = arith.constant 0 : index
    %c0_80 = arith.constant 0 : index
    %c239 = arith.constant 239 : index
    %78 = vector.load %arg1[%c0_79, %c0_80, %c239] : memref<1x4x1256xf32, #tpu.memory_space<vmem>>, vector<1x4x1000xf32>
    %79 = vector.shape_cast %78 : vector<1x4x1000xf32> to vector<4x1000xf32>
    %c104 = arith.constant 104 : index
    %c0_81 = arith.constant 0 : index
    %80 = vector.load %arg6[%c104, %c0_81] : memref<108x1000xf32, #tpu.memory_space<vmem>>, vector<4x1000xf32>
    tpu.vector_store %arg6[%c104, %c0_81], %79 {strides = array<i32>} : memref<108x1000xf32, #tpu.memory_space<vmem>>, vector<4x1000xf32>,
    %c0_82 = arith.constant 0 : index
    %c0_83 = arith.constant 0 : index
    %81 = vector.load %arg3[%c0_82, %c0_83] : memref<8x108xf32, #tpu.memory_space<vmem>>, vector<8x108xf32>
    %c0_84 = arith.constant 0 : index
    %c0_85 = arith.constant 0 : index
    %82 = vector.load %arg6[%c0_84, %c0_85] : memref<108x1000xf32, #tpu.memory_space<vmem>>, vector<108x1000xf32>
    %cst = arith.constant dense<0.000000e+00> : vector<8x1000xf32>
    %83 = tpu.matmul %81, %82, %cst {dimension_numbers = #tpu.dot_dimension_numbers<[1], [0], [0], [1], [0, 0, 1, 1], [], []>} : vector<8x108xf32>, vector<108x1000xf32>, vector<8x1000xf32> -> vector<8x1000xf32>
    %c0_86 = arith.constant 0 : index
    %c0_87 = arith.constant 0 : index
    %c0_88 = arith.constant 0 : index
    %84 = vector.load %arg4[%c0_86, %c0_87, %c0_88] : memref<1x8x1000xf32, #tpu.memory_space<vmem>>, vector<1x8x1000xf32>
    %85 = vector.shape_cast %84 : vector<1x8x1000xf32> to vector<8x1000xf32>
    %86 = vector.shape_cast %83 : vector<8x1000xf32> to vector<1x8x1000xf32>
    tpu.vector_store %arg4[%c0_86, %c0_87, %c0_88], %86 {strides = array<i32>} : memref<1x8x1000xf32, #tpu.memory_space<vmem>>, vector<1x8x1000xf32>,
    %c0_89 = arith.constant 0 : index
    %c0_90 = arith.constant 0 : index
    %87 = vector.load %arg2[%c0_89, %c0_90] : memref<1x1000xf32, #tpu.memory_space<vmem>>, vector<1x1000xf32>
    %88 = vector.shape_cast %87 : vector<1x1000xf32> to vector<1000xf32>
    %89 = vector.shape_cast %88 : vector<1000xf32> to vector<1x1000xf32>
    %90 = vector.broadcast %89 : vector<1x1000xf32> to vector<8x1000xf32>
    %91 = arith.mulf %83, %90 : vector<8x1000xf32>
    %cst_91 = arith.constant dense<0.000000e+00> : vector<8xf32>
    %92 = vector.multi_reduction <add>, %91, %cst_91 [1] : vector<8x1000xf32> to vector<8xf32>
    %c0_92 = arith.constant 0 : index
    %c0_93 = arith.constant 0 : index
    %c0_94 = arith.constant 0 : index
    %93 = vector.load %arg5[%c0_92, %c0_93, %c0_94] : memref<1x2x8xf32, #tpu.memory_space<vmem>>, vector<1x1x8xf32>
    %94 = vector.shape_cast %93 : vector<1x1x8xf32> to vector<8xf32>
    %95 = vector.shape_cast %92 : vector<8xf32> to vector<1x1x8xf32>
    tpu.vector_store %arg5[%c0_92, %c0_93, %c0_94], %95 {strides = array<i32>} : memref<1x2x8xf32, #tpu.memory_space<vmem>>, vector<1x1x8xf32>,
    %96 = arith.mulf %91, %83 : vector<8x1000xf32>
    %cst_95 = arith.constant dense<0.000000e+00> : vector<8xf32>
    %97 = vector.multi_reduction <add>, %96, %cst_95 [1] : vector<8x1000xf32> to vector<8xf32>
    %c0_96 = arith.constant 0 : index
    %c1 = arith.constant 1 : index
    %c0_97 = arith.constant 0 : index
    %98 = vector.load %arg5[%c0_96, %c1, %c0_97] : memref<1x2x8xf32, #tpu.memory_space<vmem>>, vector<1x1x8xf32>
    %99 = vector.shape_cast %98 : vector<1x1x8xf32> to vector<8xf32>
    %100 = vector.shape_cast %97 : vector<8xf32> to vector<1x1x8xf32>
    tpu.vector_store %arg5[%c0_96, %c1, %c0_97], %100 {strides = array<i32>} : memref<1x2x8xf32, #tpu.memory_space<vmem>>, vector<1x1x8xf32>,
    return
  }
  func.func @transform_0(%arg0: i32) -> (i32, i32, i32) {
    %c0_i32 = arith.constant 0 : i32
    %c0_i32_0 = arith.constant 0 : i32
    %c0_i32_1 = arith.constant 0 : i32
    return %arg0, %c0_i32, %c0_i32_0 : i32, i32, i32
  }
  func.func @transform_1(%arg0: i32) -> (i32, i32) {
    %c0_i32 = arith.constant 0 : i32
    %c0_i32_0 = arith.constant 0 : i32
    %c0_i32_1 = arith.constant 0 : i32
    return %c0_i32, %c0_i32_0 : i32, i32
  }
  func.func @transform_2(%arg0: i32) -> (i32, i32) {
    %c0_i32 = arith.constant 0 : i32
    %c0_i32_0 = arith.constant 0 : i32
    %c0_i32_1 = arith.constant 0 : i32
    return %c0_i32, %c0_i32_0 : i32, i32
  }
  func.func @transform_3(%arg0: i32) -> (i32, i32, i32) {
    %c0_i32 = arith.constant 0 : i32
    %c0_i32_0 = arith.constant 0 : i32
    %c0_i32_1 = arith.constant 0 : i32
    return %arg0, %c0_i32, %c0_i32_0 : i32, i32, i32
  }
  func.func @transform_4(%arg0: i32) -> (i32, i32, i32) {
    %c0_i32 = arith.constant 0 : i32
    %c0_i32_0 = arith.constant 0 : i32
    %c0_i32_1 = arith.constant 0 : i32
    return %arg0, %c0_i32, %c0_i32_0 : i32, i32, i32
  }
}

module attributes {stable_mosaic.version = 11 : i64} {
  func.func @bn_relu_kernel(%arg0: i32, %arg1: memref<1x8x1000xf32, #tpu.memory_space<vmem>>, %arg2: memref<8x1xf32, #tpu.memory_space<vmem>>, %arg3: memref<8x1xf32, #tpu.memory_space<vmem>>, %arg4: memref<1x8x1000xf32, #tpu.memory_space<vmem>>) attributes {dimension_semantics = [#tpu.dimension_semantics<parallel>], iteration_bounds = array<i64: 2>, scalar_prefetch = 0 : i64, scratch_operands = 0 : i64, tpu.core_type = #tpu.core_type<tc>, window_params = [{transform_indices = @transform_0, window_bounds = array<i64: 1, 8, 1000>}, {pipeline_mode = #tpu.pipeline_mode<synchronous>, transform_indices = @transform_1, window_bounds = array<i64: 8, 1>}, {pipeline_mode = #tpu.pipeline_mode<synchronous>, transform_indices = @transform_2, window_bounds = array<i64: 8, 1>}, {transform_indices = @transform_3, window_bounds = array<i64: 1, 8, 1000>}]} {
    %c0 = arith.constant 0 : index
    %c0_0 = arith.constant 0 : index
    %c0_1 = arith.constant 0 : index
    %0 = vector.load %arg1[%c0, %c0_0, %c0_1] : memref<1x8x1000xf32, #tpu.memory_space<vmem>>, vector<1x8x1000xf32>
    %1 = vector.shape_cast %0 : vector<1x8x1000xf32> to vector<8x1000xf32>
    %c0_2 = arith.constant 0 : index
    %c0_3 = arith.constant 0 : index
    %2 = vector.load %arg2[%c0_2, %c0_3] : memref<8x1xf32, #tpu.memory_space<vmem>>, vector<8x1xf32>
    %3 = vector.broadcast %2 : vector<8x1xf32> to vector<8x1000xf32>
    %4 = arith.mulf %1, %3 : vector<8x1000xf32>
    %c0_4 = arith.constant 0 : index
    %c0_5 = arith.constant 0 : index
    %5 = vector.load %arg3[%c0_4, %c0_5] : memref<8x1xf32, #tpu.memory_space<vmem>>, vector<8x1xf32>
    %6 = vector.broadcast %5 : vector<8x1xf32> to vector<8x1000xf32>
    %7 = arith.addf %4, %6 : vector<8x1000xf32>
    %cst = arith.constant 0.000000e+00 : f32
    %8 = vector.broadcast %cst : f32 to vector<8x1000xf32>
    %9 = arith.maximumf %7, %8 : vector<8x1000xf32>
    %c0_6 = arith.constant 0 : index
    %c0_7 = arith.constant 0 : index
    %c0_8 = arith.constant 0 : index
    %10 = vector.load %arg4[%c0_6, %c0_7, %c0_8] : memref<1x8x1000xf32, #tpu.memory_space<vmem>>, vector<1x8x1000xf32>
    %11 = vector.shape_cast %10 : vector<1x8x1000xf32> to vector<8x1000xf32>
    %12 = vector.shape_cast %9 : vector<8x1000xf32> to vector<1x8x1000xf32>
    tpu.vector_store %arg4[%c0_6, %c0_7, %c0_8], %12 {strides = array<i32>} : memref<1x8x1000xf32, #tpu.memory_space<vmem>>, vector<1x8x1000xf32>,
    return
  }
  func.func @transform_0(%arg0: i32) -> (i32, i32, i32) {
    %c0_i32 = arith.constant 0 : i32
    %c0_i32_0 = arith.constant 0 : i32
    %c0_i32_1 = arith.constant 0 : i32
    return %arg0, %c0_i32, %c0_i32_0 : i32, i32, i32
  }
  func.func @transform_1(%arg0: i32) -> (i32, i32) {
    %c0_i32 = arith.constant 0 : i32
    %c0_i32_0 = arith.constant 0 : i32
    %c0_i32_1 = arith.constant 0 : i32
    return %c0_i32, %c0_i32_0 : i32, i32
  }
  func.func @transform_2(%arg0: i32) -> (i32, i32) {
    %c0_i32 = arith.constant 0 : i32
    %c0_i32_0 = arith.constant 0 : i32
    %c0_i32_1 = arith.constant 0 : i32
    return %c0_i32, %c0_i32_0 : i32, i32
  }
  func.func @transform_3(%arg0: i32) -> (i32, i32, i32) {
    %c0_i32 = arith.constant 0 : i32
    %c0_i32_0 = arith.constant 0 : i32
    %c0_i32_1 = arith.constant 0 : i32
    return %arg0, %c0_i32, %c0_i32_0 : i32, i32, i32
  }
}

module attributes {stable_mosaic.version = 11 : i64} {
  func.func @conv2_fused_kernel(%arg0: i32, %arg1: memref<1x8x1000xf32, #tpu.memory_space<vmem>>, %arg2: memref<8x1xf32, #tpu.memory_space<vmem>>, %arg3: memref<8x1xf32, #tpu.memory_space<vmem>>, %arg4: memref<1x1000xf32, #tpu.memory_space<vmem>>, %arg5: memref<8x216xf32, #tpu.memory_space<vmem>>, %arg6: memref<1x8x1000xf32, #tpu.memory_space<vmem>>, %arg7: memref<1x2x8xf32, #tpu.memory_space<vmem>>, %arg8: memref<8x1256xf32, #tpu.memory_space<vmem>>, %arg9: memref<216x1000xf32, #tpu.memory_space<vmem>>) attributes {dimension_semantics = [#tpu.dimension_semantics<parallel>], iteration_bounds = array<i64: 2>, scalar_prefetch = 0 : i64, scratch_operands = 2 : i64, tpu.core_type = #tpu.core_type<tc>, window_params = [{transform_indices = @transform_0, window_bounds = array<i64: 1, 8, 1000>}, {pipeline_mode = #tpu.pipeline_mode<synchronous>, transform_indices = @transform_1, window_bounds = array<i64: 8, 1>}, {pipeline_mode = #tpu.pipeline_mode<synchronous>, transform_indices = @transform_2, window_bounds = array<i64: 8, 1>}, {pipeline_mode = #tpu.pipeline_mode<synchronous>, transform_indices = @transform_3, window_bounds = array<i64: 1, 1000>}, {pipeline_mode = #tpu.pipeline_mode<synchronous>, transform_indices = @transform_4, window_bounds = array<i64: 8, 216>}, {transform_indices = @transform_5, window_bounds = array<i64: 1, 8, 1000>}, {transform_indices = @transform_6, window_bounds = array<i64: 1, 2, 8>}]} {
    %c0 = arith.constant 0 : index
    %c0_0 = arith.constant 0 : index
    %0 = vector.load %arg4[%c0, %c0_0] : memref<1x1000xf32, #tpu.memory_space<vmem>>, vector<1x1000xf32>
    %1 = vector.shape_cast %0 : vector<1x1000xf32> to vector<1000xf32>
    %c0_1 = arith.constant 0 : index
    %c0_2 = arith.constant 0 : index
    %c0_3 = arith.constant 0 : index
    %2 = vector.load %arg1[%c0_1, %c0_2, %c0_3] : memref<1x8x1000xf32, #tpu.memory_space<vmem>>, vector<1x8x1000xf32>
    %3 = vector.shape_cast %2 : vector<1x8x1000xf32> to vector<8x1000xf32>
    %c0_4 = arith.constant 0 : index
    %c0_5 = arith.constant 0 : index
    %4 = vector.load %arg2[%c0_4, %c0_5] : memref<8x1xf32, #tpu.memory_space<vmem>>, vector<8x1xf32>
    %5 = vector.broadcast %4 : vector<8x1xf32> to vector<8x1000xf32>
    %6 = arith.mulf %3, %5 : vector<8x1000xf32>
    %c0_6 = arith.constant 0 : index
    %c0_7 = arith.constant 0 : index
    %7 = vector.load %arg3[%c0_6, %c0_7] : memref<8x1xf32, #tpu.memory_space<vmem>>, vector<8x1xf32>
    %8 = vector.broadcast %7 : vector<8x1xf32> to vector<8x1000xf32>
    %9 = arith.addf %6, %8 : vector<8x1000xf32>
    %cst = arith.constant 0.000000e+00 : f32
    %10 = vector.broadcast %cst : f32 to vector<8x1000xf32>
    %11 = arith.maximumf %9, %10 : vector<8x1000xf32>
    %12 = vector.shape_cast %1 : vector<1000xf32> to vector<1x1000xf32>
    %13 = vector.broadcast %12 : vector<1x1000xf32> to vector<8x1000xf32>
    %14 = arith.mulf %11, %13 : vector<8x1000xf32>
    %cst_8 = arith.constant 0.000000e+00 : f32
    %15 = vector.broadcast %cst_8 : f32 to vector<8x128xf32>
    %c0_9 = arith.constant 0 : index
    %c0_10 = arith.constant 0 : index
    %16 = vector.load %arg8[%c0_9, %c0_10] : memref<8x1256xf32, #tpu.memory_space<vmem>>, vector<8x128xf32>
    tpu.vector_store %arg8[%c0_9, %c0_10], %15 {strides = array<i32>} : memref<8x1256xf32, #tpu.memory_space<vmem>>, vector<8x128xf32>,
    %cst_11 = arith.constant 0.000000e+00 : f32
    %17 = vector.broadcast %cst_11 : f32 to vector<8x128xf32>
    %c0_12 = arith.constant 0 : index
    %c1128 = arith.constant 1128 : index
    %18 = vector.load %arg8[%c0_12, %c1128] : memref<8x1256xf32, #tpu.memory_space<vmem>>, vector<8x128xf32>
    tpu.vector_store %arg8[%c0_12, %c1128], %17 {strides = array<i32>} : memref<8x1256xf32, #tpu.memory_space<vmem>>, vector<8x128xf32>,
    %c0_13 = arith.constant 0 : index
    %c128 = arith.constant 128 : index
    %19 = vector.load %arg8[%c0_13, %c128] : memref<8x1256xf32, #tpu.memory_space<vmem>>, vector<8x1000xf32>
    tpu.vector_store %arg8[%c0_13, %c128], %14 {strides = array<i32>} : memref<8x1256xf32, #tpu.memory_space<vmem>>, vector<8x1000xf32>,
    %c0_14 = arith.constant 0 : index
    %c17 = arith.constant 17 : index
    %20 = vector.load %arg8[%c0_14, %c17] : memref<8x1256xf32, #tpu.memory_space<vmem>>, vector<8x1000xf32>
    %c0_15 = arith.constant 0 : index
    %c0_16 = arith.constant 0 : index
    %21 = vector.load %arg9[%c0_15, %c0_16] : memref<216x1000xf32, #tpu.memory_space<vmem>>, vector<8x1000xf32>
    tpu.vector_store %arg9[%c0_15, %c0_16], %20 {strides = array<i32>} : memref<216x1000xf32, #tpu.memory_space<vmem>>, vector<8x1000xf32>,
    %c0_17 = arith.constant 0 : index
    %c18 = arith.constant 18 : index
    %22 = vector.load %arg8[%c0_17, %c18] : memref<8x1256xf32, #tpu.memory_space<vmem>>, vector<8x1000xf32>
    %c8 = arith.constant 8 : index
    %c0_18 = arith.constant 0 : index
    %23 = vector.load %arg9[%c8, %c0_18] : memref<216x1000xf32, #tpu.memory_space<vmem>>, vector<8x1000xf32>
    tpu.vector_store %arg9[%c8, %c0_18], %22 {strides = array<i32>} : memref<216x1000xf32, #tpu.memory_space<vmem>>, vector<8x1000xf32>,
    %c0_19 = arith.constant 0 : index
    %c19 = arith.constant 19 : index
    %24 = vector.load %arg8[%c0_19, %c19] : memref<8x1256xf32, #tpu.memory_space<vmem>>, vector<8x1000xf32>
    %c16 = arith.constant 16 : index
    %c0_20 = arith.constant 0 : index
    %25 = vector.load %arg9[%c16, %c0_20] : memref<216x1000xf32, #tpu.memory_space<vmem>>, vector<8x1000xf32>
    tpu.vector_store %arg9[%c16, %c0_20], %24 {strides = array<i32>} : memref<216x1000xf32, #tpu.memory_space<vmem>>, vector<8x1000xf32>,
    %c0_21 = arith.constant 0 : index
    %c27 = arith.constant 27 : index
    %26 = vector.load %arg8[%c0_21, %c27] : memref<8x1256xf32, #tpu.memory_space<vmem>>, vector<8x1000xf32>
    %c24 = arith.constant 24 : index
    %c0_22 = arith.constant 0 : index
    %27 = vector.load %arg9[%c24, %c0_22] : memref<216x1000xf32, #tpu.memory_space<vmem>>, vector<8x1000xf32>
    tpu.vector_store %arg9[%c24, %c0_22], %26 {strides = array<i32>} : memref<216x1000xf32, #tpu.memory_space<vmem>>, vector<8x1000xf32>,
    %c0_23 = arith.constant 0 : index
    %c28 = arith.constant 28 : index
    %28 = vector.load %arg8[%c0_23, %c28] : memref<8x1256xf32, #tpu.memory_space<vmem>>, vector<8x1000xf32>
    %c32 = arith.constant 32 : index
    %c0_24 = arith.constant 0 : index
    %29 = vector.load %arg9[%c32, %c0_24] : memref<216x1000xf32, #tpu.memory_space<vmem>>, vector<8x1000xf32>
    tpu.vector_store %arg9[%c32, %c0_24], %28 {strides = array<i32>} : memref<216x1000xf32, #tpu.memory_space<vmem>>, vector<8x1000xf32>,
    %c0_25 = arith.constant 0 : index
    %c29 = arith.constant 29 : index
    %30 = vector.load %arg8[%c0_25, %c29] : memref<8x1256xf32, #tpu.memory_space<vmem>>, vector<8x1000xf32>
    %c40 = arith.constant 40 : index
    %c0_26 = arith.constant 0 : index
    %31 = vector.load %arg9[%c40, %c0_26] : memref<216x1000xf32, #tpu.memory_space<vmem>>, vector<8x1000xf32>
    tpu.vector_store %arg9[%c40, %c0_26], %30 {strides = array<i32>} : memref<216x1000xf32, #tpu.memory_space<vmem>>, vector<8x1000xf32>,
    %c0_27 = arith.constant 0 : index
    %c37 = arith.constant 37 : index
    %32 = vector.load %arg8[%c0_27, %c37] : memref<8x1256xf32, #tpu.memory_space<vmem>>, vector<8x1000xf32>
    %c48 = arith.constant 48 : index
    %c0_28 = arith.constant 0 : index
    %33 = vector.load %arg9[%c48, %c0_28] : memref<216x1000xf32, #tpu.memory_space<vmem>>, vector<8x1000xf32>
    tpu.vector_store %arg9[%c48, %c0_28], %32 {strides = array<i32>} : memref<216x1000xf32, #tpu.memory_space<vmem>>, vector<8x1000xf32>,
    %c0_29 = arith.constant 0 : index
    %c38 = arith.constant 38 : index
    %34 = vector.load %arg8[%c0_29, %c38] : memref<8x1256xf32, #tpu.memory_space<vmem>>, vector<8x1000xf32>
    %c56 = arith.constant 56 : index
    %c0_30 = arith.constant 0 : index
    %35 = vector.load %arg9[%c56, %c0_30] : memref<216x1000xf32, #tpu.memory_space<vmem>>, vector<8x1000xf32>
    tpu.vector_store %arg9[%c56, %c0_30], %34 {strides = array<i32>} : memref<216x1000xf32, #tpu.memory_space<vmem>>, vector<8x1000xf32>,
    %c0_31 = arith.constant 0 : index
    %c39 = arith.constant 39 : index
    %36 = vector.load %arg8[%c0_31, %c39] : memref<8x1256xf32, #tpu.memory_space<vmem>>, vector<8x1000xf32>
    %c64 = arith.constant 64 : index
    %c0_32 = arith.constant 0 : index
    %37 = vector.load %arg9[%c64, %c0_32] : memref<216x1000xf32, #tpu.memory_space<vmem>>, vector<8x1000xf32>
    tpu.vector_store %arg9[%c64, %c0_32], %36 {strides = array<i32>} : memref<216x1000xf32, #tpu.memory_space<vmem>>, vector<8x1000xf32>,
    %c0_33 = arith.constant 0 : index
    %c117 = arith.constant 117 : index
    %38 = vector.load %arg8[%c0_33, %c117] : memref<8x1256xf32, #tpu.memory_space<vmem>>, vector<8x1000xf32>
    %c72 = arith.constant 72 : index
    %c0_34 = arith.constant 0 : index
    %39 = vector.load %arg9[%c72, %c0_34] : memref<216x1000xf32, #tpu.memory_space<vmem>>, vector<8x1000xf32>
    tpu.vector_store %arg9[%c72, %c0_34], %38 {strides = array<i32>} : memref<216x1000xf32, #tpu.memory_space<vmem>>, vector<8x1000xf32>,
    %c0_35 = arith.constant 0 : index
    %c118 = arith.constant 118 : index
    %40 = vector.load %arg8[%c0_35, %c118] : memref<8x1256xf32, #tpu.memory_space<vmem>>, vector<8x1000xf32>
    %c80 = arith.constant 80 : index
    %c0_36 = arith.constant 0 : index
    %41 = vector.load %arg9[%c80, %c0_36] : memref<216x1000xf32, #tpu.memory_space<vmem>>, vector<8x1000xf32>
    tpu.vector_store %arg9[%c80, %c0_36], %40 {strides = array<i32>} : memref<216x1000xf32, #tpu.memory_space<vmem>>, vector<8x1000xf32>,
    %c0_37 = arith.constant 0 : index
    %c119 = arith.constant 119 : index
    %42 = vector.load %arg8[%c0_37, %c119] : memref<8x1256xf32, #tpu.memory_space<vmem>>, vector<8x1000xf32>
    %c88 = arith.constant 88 : index
    %c0_38 = arith.constant 0 : index
    %43 = vector.load %arg9[%c88, %c0_38] : memref<216x1000xf32, #tpu.memory_space<vmem>>, vector<8x1000xf32>
    tpu.vector_store %arg9[%c88, %c0_38], %42 {strides = array<i32>} : memref<216x1000xf32, #tpu.memory_space<vmem>>, vector<8x1000xf32>,
    %c0_39 = arith.constant 0 : index
    %c127 = arith.constant 127 : index
    %44 = vector.load %arg8[%c0_39, %c127] : memref<8x1256xf32, #tpu.memory_space<vmem>>, vector<8x1000xf32>
    %c96 = arith.constant 96 : index
    %c0_40 = arith.constant 0 : index
    %45 = vector.load %arg9[%c96, %c0_40] : memref<216x1000xf32, #tpu.memory_space<vmem>>, vector<8x1000xf32>
    tpu.vector_store %arg9[%c96, %c0_40], %44 {strides = array<i32>} : memref<216x1000xf32, #tpu.memory_space<vmem>>, vector<8x1000xf32>,
    %c0_41 = arith.constant 0 : index
    %c128_42 = arith.constant 128 : index
    %46 = vector.load %arg8[%c0_41, %c128_42] : memref<8x1256xf32, #tpu.memory_space<vmem>>, vector<8x1000xf32>
    %c104 = arith.constant 104 : index
    %c0_43 = arith.constant 0 : index
    %47 = vector.load %arg9[%c104, %c0_43] : memref<216x1000xf32, #tpu.memory_space<vmem>>, vector<8x1000xf32>
    tpu.vector_store %arg9[%c104, %c0_43], %46 {strides = array<i32>} : memref<216x1000xf32, #tpu.memory_space<vmem>>, vector<8x1000xf32>,
    %c0_44 = arith.constant 0 : index
    %c129 = arith.constant 129 : index
    %48 = vector.load %arg8[%c0_44, %c129] : memref<8x1256xf32, #tpu.memory_space<vmem>>, vector<8x1000xf32>
    %c112 = arith.constant 112 : index
    %c0_45 = arith.constant 0 : index
    %49 = vector.load %arg9[%c112, %c0_45] : memref<216x1000xf32, #tpu.memory_space<vmem>>, vector<8x1000xf32>
    tpu.vector_store %arg9[%c112, %c0_45], %48 {strides = array<i32>} : memref<216x1000xf32, #tpu.memory_space<vmem>>, vector<8x1000xf32>,
    %c0_46 = arith.constant 0 : index
    %c137 = arith.constant 137 : index
    %50 = vector.load %arg8[%c0_46, %c137] : memref<8x1256xf32, #tpu.memory_space<vmem>>, vector<8x1000xf32>
    %c120 = arith.constant 120 : index
    %c0_47 = arith.constant 0 : index
    %51 = vector.load %arg9[%c120, %c0_47] : memref<216x1000xf32, #tpu.memory_space<vmem>>, vector<8x1000xf32>
    tpu.vector_store %arg9[%c120, %c0_47], %50 {strides = array<i32>} : memref<216x1000xf32, #tpu.memory_space<vmem>>, vector<8x1000xf32>,
    %c0_48 = arith.constant 0 : index
    %c138 = arith.constant 138 : index
    %52 = vector.load %arg8[%c0_48, %c138] : memref<8x1256xf32, #tpu.memory_space<vmem>>, vector<8x1000xf32>
    %c128_49 = arith.constant 128 : index
    %c0_50 = arith.constant 0 : index
    %53 = vector.load %arg9[%c128_49, %c0_50] : memref<216x1000xf32, #tpu.memory_space<vmem>>, vector<8x1000xf32>
    tpu.vector_store %arg9[%c128_49, %c0_50], %52 {strides = array<i32>} : memref<216x1000xf32, #tpu.memory_space<vmem>>, vector<8x1000xf32>,
    %c0_51 = arith.constant 0 : index
    %c139 = arith.constant 139 : index
    %54 = vector.load %arg8[%c0_51, %c139] : memref<8x1256xf32, #tpu.memory_space<vmem>>, vector<8x1000xf32>
    %c136 = arith.constant 136 : index
    %c0_52 = arith.constant 0 : index
    %55 = vector.load %arg9[%c136, %c0_52] : memref<216x1000xf32, #tpu.memory_space<vmem>>, vector<8x1000xf32>
    tpu.vector_store %arg9[%c136, %c0_52], %54 {strides = array<i32>} : memref<216x1000xf32, #tpu.memory_space<vmem>>, vector<8x1000xf32>,
    %c0_53 = arith.constant 0 : index
    %c217 = arith.constant 217 : index
    %56 = vector.load %arg8[%c0_53, %c217] : memref<8x1256xf32, #tpu.memory_space<vmem>>, vector<8x1000xf32>
    %c144 = arith.constant 144 : index
    %c0_54 = arith.constant 0 : index
    %57 = vector.load %arg9[%c144, %c0_54] : memref<216x1000xf32, #tpu.memory_space<vmem>>, vector<8x1000xf32>
    tpu.vector_store %arg9[%c144, %c0_54], %56 {strides = array<i32>} : memref<216x1000xf32, #tpu.memory_space<vmem>>, vector<8x1000xf32>,
    %c0_55 = arith.constant 0 : index
    %c218 = arith.constant 218 : index
    %58 = vector.load %arg8[%c0_55, %c218] : memref<8x1256xf32, #tpu.memory_space<vmem>>, vector<8x1000xf32>
    %c152 = arith.constant 152 : index
    %c0_56 = arith.constant 0 : index
    %59 = vector.load %arg9[%c152, %c0_56] : memref<216x1000xf32, #tpu.memory_space<vmem>>, vector<8x1000xf32>
    tpu.vector_store %arg9[%c152, %c0_56], %58 {strides = array<i32>} : memref<216x1000xf32, #tpu.memory_space<vmem>>, vector<8x1000xf32>,
    %c0_57 = arith.constant 0 : index
    %c219 = arith.constant 219 : index
    %60 = vector.load %arg8[%c0_57, %c219] : memref<8x1256xf32, #tpu.memory_space<vmem>>, vector<8x1000xf32>
    %c160 = arith.constant 160 : index
    %c0_58 = arith.constant 0 : index
    %61 = vector.load %arg9[%c160, %c0_58] : memref<216x1000xf32, #tpu.memory_space<vmem>>, vector<8x1000xf32>
    tpu.vector_store %arg9[%c160, %c0_58], %60 {strides = array<i32>} : memref<216x1000xf32, #tpu.memory_space<vmem>>, vector<8x1000xf32>,
    %c0_59 = arith.constant 0 : index
    %c227 = arith.constant 227 : index
    %62 = vector.load %arg8[%c0_59, %c227] : memref<8x1256xf32, #tpu.memory_space<vmem>>, vector<8x1000xf32>
    %c168 = arith.constant 168 : index
    %c0_60 = arith.constant 0 : index
    %63 = vector.load %arg9[%c168, %c0_60] : memref<216x1000xf32, #tpu.memory_space<vmem>>, vector<8x1000xf32>
    tpu.vector_store %arg9[%c168, %c0_60], %62 {strides = array<i32>} : memref<216x1000xf32, #tpu.memory_space<vmem>>, vector<8x1000xf32>,
    %c0_61 = arith.constant 0 : index
    %c228 = arith.constant 228 : index
    %64 = vector.load %arg8[%c0_61, %c228] : memref<8x1256xf32, #tpu.memory_space<vmem>>, vector<8x1000xf32>
    %c176 = arith.constant 176 : index
    %c0_62 = arith.constant 0 : index
    %65 = vector.load %arg9[%c176, %c0_62] : memref<216x1000xf32, #tpu.memory_space<vmem>>, vector<8x1000xf32>
    tpu.vector_store %arg9[%c176, %c0_62], %64 {strides = array<i32>} : memref<216x1000xf32, #tpu.memory_space<vmem>>, vector<8x1000xf32>,
    %c0_63 = arith.constant 0 : index
    %c229 = arith.constant 229 : index
    %66 = vector.load %arg8[%c0_63, %c229] : memref<8x1256xf32, #tpu.memory_space<vmem>>, vector<8x1000xf32>
    %c184 = arith.constant 184 : index
    %c0_64 = arith.constant 0 : index
    %67 = vector.load %arg9[%c184, %c0_64] : memref<216x1000xf32, #tpu.memory_space<vmem>>, vector<8x1000xf32>
    tpu.vector_store %arg9[%c184, %c0_64], %66 {strides = array<i32>} : memref<216x1000xf32, #tpu.memory_space<vmem>>, vector<8x1000xf32>,
    %c0_65 = arith.constant 0 : index
    %c237 = arith.constant 237 : index
    %68 = vector.load %arg8[%c0_65, %c237] : memref<8x1256xf32, #tpu.memory_space<vmem>>, vector<8x1000xf32>
    %c192 = arith.constant 192 : index
    %c0_66 = arith.constant 0 : index
    %69 = vector.load %arg9[%c192, %c0_66] : memref<216x1000xf32, #tpu.memory_space<vmem>>, vector<8x1000xf32>
    tpu.vector_store %arg9[%c192, %c0_66], %68 {strides = array<i32>} : memref<216x1000xf32, #tpu.memory_space<vmem>>, vector<8x1000xf32>,
    %c0_67 = arith.constant 0 : index
    %c238 = arith.constant 238 : index
    %70 = vector.load %arg8[%c0_67, %c238] : memref<8x1256xf32, #tpu.memory_space<vmem>>, vector<8x1000xf32>
    %c200 = arith.constant 200 : index
    %c0_68 = arith.constant 0 : index
    %71 = vector.load %arg9[%c200, %c0_68] : memref<216x1000xf32, #tpu.memory_space<vmem>>, vector<8x1000xf32>
    tpu.vector_store %arg9[%c200, %c0_68], %70 {strides = array<i32>} : memref<216x1000xf32, #tpu.memory_space<vmem>>, vector<8x1000xf32>,
    %c0_69 = arith.constant 0 : index
    %c239 = arith.constant 239 : index
    %72 = vector.load %arg8[%c0_69, %c239] : memref<8x1256xf32, #tpu.memory_space<vmem>>, vector<8x1000xf32>
    %c208 = arith.constant 208 : index
    %c0_70 = arith.constant 0 : index
    %73 = vector.load %arg9[%c208, %c0_70] : memref<216x1000xf32, #tpu.memory_space<vmem>>, vector<8x1000xf32>
    tpu.vector_store %arg9[%c208, %c0_70], %72 {strides = array<i32>} : memref<216x1000xf32, #tpu.memory_space<vmem>>, vector<8x1000xf32>,
    %c0_71 = arith.constant 0 : index
    %c0_72 = arith.constant 0 : index
    %74 = vector.load %arg5[%c0_71, %c0_72] : memref<8x216xf32, #tpu.memory_space<vmem>>, vector<8x216xf32>
    %c0_73 = arith.constant 0 : index
    %c0_74 = arith.constant 0 : index
    %75 = vector.load %arg9[%c0_73, %c0_74] : memref<216x1000xf32, #tpu.memory_space<vmem>>, vector<216x1000xf32>
    %cst_75 = arith.constant dense<0.000000e+00> : vector<8x1000xf32>
    %76 = tpu.matmul %74, %75, %cst_75 {dimension_numbers = #tpu.dot_dimension_numbers<[1], [0], [0], [1], [0, 0, 1, 1], [], []>} : vector<8x216xf32>, vector<216x1000xf32>, vector<8x1000xf32> -> vector<8x1000xf32>
    %c0_76 = arith.constant 0 : index
    %c0_77 = arith.constant 0 : index
    %c0_78 = arith.constant 0 : index
    %77 = vector.load %arg6[%c0_76, %c0_77, %c0_78] : memref<1x8x1000xf32, #tpu.memory_space<vmem>>, vector<1x8x1000xf32>
    %78 = vector.shape_cast %77 : vector<1x8x1000xf32> to vector<8x1000xf32>
    %79 = vector.shape_cast %76 : vector<8x1000xf32> to vector<1x8x1000xf32>
    tpu.vector_store %arg6[%c0_76, %c0_77, %c0_78], %79 {strides = array<i32>} : memref<1x8x1000xf32, #tpu.memory_space<vmem>>, vector<1x8x1000xf32>,
    %80 = vector.shape_cast %1 : vector<1000xf32> to vector<1x1000xf32>
    %81 = vector.broadcast %80 : vector<1x1000xf32> to vector<8x1000xf32>
    %82 = arith.mulf %76, %81 : vector<8x1000xf32>
    %cst_79 = arith.constant dense<0.000000e+00> : vector<8xf32>
    %83 = vector.multi_reduction <add>, %82, %cst_79 [1] : vector<8x1000xf32> to vector<8xf32>
    %c0_80 = arith.constant 0 : index
    %c0_81 = arith.constant 0 : index
    %c0_82 = arith.constant 0 : index
    %84 = vector.load %arg7[%c0_80, %c0_81, %c0_82] : memref<1x2x8xf32, #tpu.memory_space<vmem>>, vector<1x1x8xf32>
    %85 = vector.shape_cast %84 : vector<1x1x8xf32> to vector<8xf32>
    %86 = vector.shape_cast %83 : vector<8xf32> to vector<1x1x8xf32>
    tpu.vector_store %arg7[%c0_80, %c0_81, %c0_82], %86 {strides = array<i32>} : memref<1x2x8xf32, #tpu.memory_space<vmem>>, vector<1x1x8xf32>,
    %87 = arith.mulf %82, %76 : vector<8x1000xf32>
    %cst_83 = arith.constant dense<0.000000e+00> : vector<8xf32>
    %88 = vector.multi_reduction <add>, %87, %cst_83 [1] : vector<8x1000xf32> to vector<8xf32>
    %c0_84 = arith.constant 0 : index
    %c1 = arith.constant 1 : index
    %c0_85 = arith.constant 0 : index
    %89 = vector.load %arg7[%c0_84, %c1, %c0_85] : memref<1x2x8xf32, #tpu.memory_space<vmem>>, vector<1x1x8xf32>
    %90 = vector.shape_cast %89 : vector<1x1x8xf32> to vector<8xf32>
    %91 = vector.shape_cast %88 : vector<8xf32> to vector<1x1x8xf32>
    tpu.vector_store %arg7[%c0_84, %c1, %c0_85], %91 {strides = array<i32>} : memref<1x2x8xf32, #tpu.memory_space<vmem>>, vector<1x1x8xf32>,
    return
  }
  func.func @transform_0(%arg0: i32) -> (i32, i32, i32) {
    %c0_i32 = arith.constant 0 : i32
    %c0_i32_0 = arith.constant 0 : i32
    %c0_i32_1 = arith.constant 0 : i32
    return %arg0, %c0_i32, %c0_i32_0 : i32, i32, i32
  }
  func.func @transform_1(%arg0: i32) -> (i32, i32) {
    %c0_i32 = arith.constant 0 : i32
    %c0_i32_0 = arith.constant 0 : i32
    %c0_i32_1 = arith.constant 0 : i32
    return %c0_i32, %c0_i32_0 : i32, i32
  }
  func.func @transform_2(%arg0: i32) -> (i32, i32) {
    %c0_i32 = arith.constant 0 : i32
    %c0_i32_0 = arith.constant 0 : i32
    %c0_i32_1 = arith.constant 0 : i32
    return %c0_i32, %c0_i32_0 : i32, i32
  }
  func.func @transform_3(%arg0: i32) -> (i32, i32) {
    %c0_i32 = arith.constant 0 : i32
    %c0_i32_0 = arith.constant 0 : i32
    %c0_i32_1 = arith.constant 0 : i32
    return %c0_i32, %c0_i32_0 : i32, i32
  }
  func.func @transform_4(%arg0: i32) -> (i32, i32) {
    %c0_i32 = arith.constant 0 : i32
    %c0_i32_0 = arith.constant 0 : i32
    %c0_i32_1 = arith.constant 0 : i32
    return %c0_i32, %c0_i32_0 : i32, i32
  }
  func.func @transform_5(%arg0: i32) -> (i32, i32, i32) {
    %c0_i32 = arith.constant 0 : i32
    %c0_i32_0 = arith.constant 0 : i32
    %c0_i32_1 = arith.constant 0 : i32
    return %arg0, %c0_i32, %c0_i32_0 : i32, i32, i32
  }
  func.func @transform_6(%arg0: i32) -> (i32, i32, i32) {
    %c0_i32 = arith.constant 0 : i32
    %c0_i32_0 = arith.constant 0 : i32
    %c0_i32_1 = arith.constant 0 : i32
    return %arg0, %c0_i32, %c0_i32_0 : i32, i32, i32
  }
}

</mosaic_0001>

<llo_original>
// kernel: double_conv.5
$region0: #{double_conv.5}
  #allocation0 [shape = 'u32[]', space=smem, size = 0x4, offset = 0x4, fixed_abs, tag = 'smem constant byte address 0x4 - core index']
  #allocation1 [shape = 'u32[144,128]{1,0:T(1,128)}', space=vmem, size = 0x12000, scoped, tag = 'internal scratch']
  %s0 = inlined_call_operand.hbm [shape: f32[2,8,1000], index: 0, kind: input, shape index: {}]
  %s1 = inlined_call_operand.hbm [shape: f32[8,1], index: 1, kind: input, shape index: {}]
  %s2 = inlined_call_operand.hbm [shape: f32[8,1], index: 2, kind: input, shape index: {}]
  %s3 = inlined_call_operand.hbm [shape: f32[2,8,1000], index: 3, kind: output, shape index: {}]
  %s4 = sld [smem:[#allocation0]]
  $region57: #{double_conv.5} parent=0
    _
  %s6 = ssub.s32 1, %s4
  %s7 = scalar_select 0, %s6, %s4
  $region1: #{double_conv.5} parent=0
    #allocation2 [shape = 'u8[65536]{0}', space=vmem, size = 0x10000, scoped, tag = 'input window, operand 0']
    #allocation3 [shape = 's32[2]{0}', space=sflag, size = 0x8, scoped, tag = 'scoped memory for double_conv.5']
    #allocation4 [shape = 's32[2]{0}', space=sflag, size = 0x8, scoped, tag = 'scoped memory for double_conv.5']
    #allocation5 [shape = 'u8[4096]{0}', space=vmem, size = 0x1000, scoped, tag = 'input window, operand 1, single buffered']
    #allocation6 [shape = 's32[1]{0}', space=sflag, size = 0x4, scoped, tag = 'scoped memory for double_conv.5']
    #allocation7 [shape = 'u8[4096]{0}', space=vmem, size = 0x1000, scoped, tag = 'input window, operand 2, single buffered']
    #allocation8 [shape = 'u8[65536]{0}', space=vmem, size = 0x10000, scoped, tag = 'output window, operand 0']
    %8 = vsyncpa [#allocation3], 0
    %s9 = scalar_lea.sflag [#allocation3], 1
    %10 = vsyncpa %s9, 0
    %11 = vsyncpa [#allocation6], 0
    %12 = vsyncpa [#allocation4], 0
    %s13 = scalar_lea.sflag [#allocation4], 1
    %14 = vsyncpa %s13, 0
    loop: start=0, step=1, limit=4
    $region2: #{double_conv.5} parent=1 // loop_pre_header
      _
    $region3: #{double_conv.5} parent=1 // loop_header
      %s16 = sphi 0, %s20
      %p17 = scmp.ge.s32.totalorder %s16, 4
      %s26 = sphi 0, %s28
      %s29 = sphi 0, %s26
      %s30 = sphi 0, %s29
      %s46 = sphi 0, %s30
      %s50 = sphi 0, %s50
      %s52 = sphi 0, %s50
      %s53 = sphi 0, %s52
      %s67 = sphi 0, %s53
      %s71 = sphi 0, %s71
      %s73 = sphi 0, %s71
      %s74 = sphi 0, %s73
      %s88 = sphi 0, %s74
      %s94 = sphi 0, %s96
      %s97 = sphi 0, %s94
      %s98 = sphi 0, %s97
      %s114 = sphi 0, %s98
    $region4: #{double_conv.5} parent=1 // loop_header_branch
      %19 = sbr.rel (%p17) target = $region8
    $region5: #{double_conv.5} parent=1 // loop_body
      %s21 = ssub.s32 %s16, 1
      %s22 = ssub.s32 %s16, 2
      %s23 = sadd.s32 %s16, 1
      %s24 = ssub.s32 %s16, %s23
      %p25 = scmp.eq.s32.totalorder %s24, 0
      %s27 = sadd.s32 %s26, 1
      %s28 = scalar_select %p25, %s26, %s27
      %p31 = pneg %p25
      %p32 = scmp.eq.s32.totalorder %s16, 1
      %p33 = por %p31, %p32
      %p34 = scmp.ne.s32.totalorder %s26, %s29
      %p35 = scmp.eq.s32.totalorder %s16, 0
      %p36 = por %p34, %p35
      %p37 = scmp.ne.s32.totalorder %s26, %s29
      %p38 = scmp.eq.s32.totalorder %s21, 1
      %p39 = por %p37, %p38
      %p40 = scmp.ne.s32.totalorder %s29, %s30
      %p41 = scmp.eq.s32.totalorder %s21, 0
      %p42 = por %p40, %p41
      %p43 = scmp.ne.s32.totalorder %s29, %s30
      %p44 = scmp.eq.s32.totalorder %s22, 1
      %p45 = por %p43, %p44
      %p47 = scmp.ne.s32.totalorder %s30, %s46
      %p48 = scmp.eq.s32.totalorder %s22, 0
      %p49 = por %p47, %p48
      %s51 = sadd.s32 %s50, 1
      %p54 = scmp.eq.s32.totalorder %s16, 1
      %p55 = scmp.ne.s32.totalorder %s50, %s52
      %p56 = scmp.eq.s32.totalorder %s16, 0
      %p57 = por %p55, %p56
      %p58 = scmp.ne.s32.totalorder %s50, %s52
      %p59 = scmp.eq.s32.totalorder %s21, 1
      %p60 = por %p58, %p59
      %p61 = scmp.ne.s32.totalorder %s52, %s53
      %p62 = scmp.eq.s32.totalorder %s21, 0
      %p63 = por %p61, %p62
      %p64 = scmp.ne.s32.totalorder %s52, %s53
      %p65 = scmp.eq.s32.totalorder %s22, 1
      %p66 = por %p64, %p65
      %p68 = scmp.ne.s32.totalorder %s53, %s67
      %p69 = scmp.eq.s32.totalorder %s22, 0
      %p70 = por %p68, %p69
      %s72 = sadd.s32 %s71, 1
      %p75 = scmp.eq.s32.totalorder %s16, 1
      %p76 = scmp.ne.s32.totalorder %s71, %s73
      %p77 = scmp.eq.s32.totalorder %s16, 0
      %p78 = por %p76, %p77
      %p79 = scmp.ne.s32.totalorder %s71, %s73
      %p80 = scmp.eq.s32.totalorder %s21, 1
      %p81 = por %p79, %p80
      %p82 = scmp.ne.s32.totalorder %s73, %s74
      %p83 = scmp.eq.s32.totalorder %s21, 0
      %p84 = por %p82, %p83
      %p85 = scmp.ne.s32.totalorder %s73, %s74
      %p86 = scmp.eq.s32.totalorder %s22, 1
      %p87 = por %p85, %p86
      %p89 = scmp.ne.s32.totalorder %s74, %s88
      %p90 = scmp.eq.s32.totalorder %s22, 0
      %p91 = por %p89, %p90
      %s92 = ssub.s32 %s16, %s23
      %p93 = scmp.eq.s32.totalorder %s92, 0
      %s95 = sadd.s32 %s94, 1
      %s96 = scalar_select %p93, %s94, %s95
      %p99 = pneg %p93
      %p100 = scmp.eq.s32.totalorder %s16, 1
      %p101 = por %p99, %p100
      %p102 = scmp.ne.s32.totalorder %s94, %s97
      %p103 = scmp.eq.s32.totalorder %s16, 0
      %p104 = por %p102, %p103
      %p105 = scmp.ne.s32.totalorder %s94, %s97
      %p106 = scmp.eq.s32.totalorder %s21, 1
      %p107 = por %p105, %p106
      %p108 = scmp.ne.s32.totalorder %s97, %s98
      %p109 = scmp.eq.s32.totalorder %s21, 0
      %p110 = por %p108, %p109
      %p111 = scmp.ne.s32.totalorder %s97, %s98
      %p112 = scmp.eq.s32.totalorder %s22, 1
      %p113 = por %p111, %p112
      %p115 = scmp.ne.s32.totalorder %s98, %s114
      %p116 = scmp.eq.s32.totalorder %s22, 0
      %p117 = por %p115, %p116
      %p118 = scmp.le.s32.totalorder 1, %s16
      %p119 = scmp.lt.s32.totalorder %s16, 3
      %p120 = pnand %p118, %p119
      %p121 = pneg %p120
      // Predicated region
      $region9: #{double_conv.5} parent=5 // pred_check
        _
      $region10: #{double_conv.5} parent=5 // pred_check_branch
        %123 = sbr.rel (%p120) target = $region12
      $region11: #{double_conv.5} parent=5 // pred_region
        %s124 = ssub.s32 %s16, 1
        // Predicated region
        $region13: #{double_conv.5} parent=11 // pred_check
          %p125 = pneg %p63
        $region14: #{double_conv.5} parent=11 // pred_check_branch
          %127 = sbr.rel (%p125) target = $region16
        $region15: #{double_conv.5} parent=11 // pred_region
          %s129 = ssub.s32 128, 128
          %130 = vsyncadd [#allocation6], %s129
          %s132 = sshll.u32 [#allocation5], 4
          %s133 = int_to_ptr.vmem [resolvable:$true] %s132
          %135 = dma.hbm_to_vmem [thread:$0]  %s1, 128, %s133, [#allocation6]
        $region16: #{double_conv.5} parent=11 // pred_fallthru
          _
        // Predicated region
        $region17: #{double_conv.5} parent=11 // pred_check
          %p136 = pneg %p84
        $region18: #{double_conv.5} parent=11 // pred_check_branch
          %138 = sbr.rel (%p136) target = $region20
        $region19: #{double_conv.5} parent=11 // pred_region
          %s140 = ssub.s32 128, 128
          %141 = vsyncadd [#allocation6], %s140
          %s143 = sshll.u32 [#allocation7], 4
          %s144 = int_to_ptr.vmem [resolvable:$true] %s143
          %146 = dma.hbm_to_vmem [thread:$0]  %s2, 128, %s144, [#allocation6]
        $region20: #{double_conv.5} parent=11 // pred_fallthru
          _
      $region12: #{double_conv.5} parent=5 // pred_fallthru
        _
      %p147 = scmp.lt.s32.totalorder %s16, 2
      // Predicated region
      $region21: #{double_conv.5} parent=5 // pred_check
        %p148 = pneg %p147
      $region22: #{double_conv.5} parent=5 // pred_check_branch
        %150 = sbr.rel (%p148) target = $region24
      $region23: #{double_conv.5} parent=5 // pred_region
        // Predicated region
        $region25: #{double_conv.5} parent=23 // pred_check
          %p151 = pneg %p36
        $region26: #{double_conv.5} parent=23 // pred_check_branch
          %153 = sbr.rel (%p151) target = $region28
        $region27: #{double_conv.5} parent=23 // pred_region
          %s154 = sand.u32 %s26, 1
          %s155 = scalar_lea.sflag [#allocation3], %s154
          %s156 = sand.u32 %s26, 1
          %s157 = smul.addr %s156, 64
          %s158 = scalar_lea.vmem [#allocation2], %s157
          %s160 = ssub.s32 1024, 1024
          %161 = vsyncadd %s155, %s160
          %s162 = smul.addr %s16, 8
          %s163 = smul.addr %s162, 128
          %s164 = scalar_lea.hbm %s0, %s163
          %s166 = sshll.u32 %s158, 4
          %s167 = int_to_ptr.vmem [resolvable:$true] %s166
          %169 = dma.hbm_to_vmem [thread:$0]  %s164, 1024, %s167, %s155
        $region28: #{double_conv.5} parent=23 // pred_fallthru
          _
      $region24: #{double_conv.5} parent=5 // pred_fallthru
        _
      %p170 = scmp.le.s32.totalorder 1, %s16
      %p171 = scmp.lt.s32.totalorder %s16, 3
      %p172 = pnand %p170, %p171
      %p173 = pneg %p172
      // Predicated region
      $region29: #{double_conv.5} parent=5 // pred_check
        _
      $region30: #{double_conv.5} parent=5 // pred_check_branch
        %175 = sbr.rel (%p172) target = $region32
      $region31: #{double_conv.5} parent=5 // pred_region
        %s176 = ssub.s32 %s16, 1
        %s177 = sand.u32 %s29, 1
        %s178 = scalar_lea.sflag [#allocation3], %s177
        %s179 = sand.u32 %s29, 1
        %s180 = smul.addr %s179, 64
        %s181 = scalar_lea.vmem [#allocation2], %s180
        // Predicated region
        $region33: #{double_conv.5} parent=31 // pred_check
          %p182 = pneg %p42
        $region34: #{double_conv.5} parent=31 // pred_check_branch
          %184 = sbr.rel (%p182) target = $region36
        $region35: #{double_conv.5} parent=31 // pred_region
          %185 = dma.done %s178, 1024
        $region36: #{double_conv.5} parent=31 // pred_fallthru
          _
        // Predicated region
        $region37: #{double_conv.5} parent=31 // pred_check
          %p186 = pneg %p63
        $region38: #{double_conv.5} parent=31 // pred_check_branch
          %188 = sbr.rel (%p186) target = $region40
        $region39: #{double_conv.5} parent=31 // pred_region
          %189 = dma.done [#allocation6], 128
        $region40: #{double_conv.5} parent=31 // pred_fallthru
          _
        // Predicated region
        $region41: #{double_conv.5} parent=31 // pred_check
          %p190 = pneg %p84
        $region42: #{double_conv.5} parent=31 // pred_check_branch
          %192 = sbr.rel (%p190) target = $region44
        $region43: #{double_conv.5} parent=31 // pred_region
          %193 = dma.done [#allocation6], 128
        $region44: #{double_conv.5} parent=31 // pred_fallthru
          _
        %s194 = sand.u32 %s29, 1
        %s195 = scalar_lea.sflag [#allocation3], %s194
        %s196 = sand.u32 %s29, 1
        %s197 = smul.addr %s196, 64
        %s198 = scalar_lea.vmem [#allocation2], %s197
        %p199 = pneg %p42
        %p200 = pneg %p39
        %p201 = pneg %p63
        %p202 = pneg %p60
        %p203 = pneg %p84
        %p204 = pneg %p81
        %p205 = pneg %p110
        %p206 = pneg %p107
        %s207 = sand.u32 %s97, 1
        %s208 = scalar_lea.sflag [#allocation4], %s207
        %s209 = sand.u32 %s97, 1
        %s210 = smul.addr %s209, 64
        %s211 = scalar_lea.vmem [#allocation8], %s210
        %v212 = vld [vmem:[%s181] sm:$0xff]
        %v213 = vld [vmem:[%s181 + $0x8] sm:$0xff]
        %v214 = vld [vmem:[%s181 + $0x10] sm:$0xff]
        %v215 = vld [vmem:[%s181 + $0x18] sm:$0xff]
        %v216 = vld [vmem:[%s181 + $0x20] sm:$0xff]
        %v217 = vld [vmem:[%s181 + $0x28] sm:$0xff]
        %v218 = vld [vmem:[%s181 + $0x30] sm:$0xff]
        %v219 = vld [vmem:[%s181 + $0x38] sm:$0xff]
        %v220 = vld [vmem:[#allocation5] sm:$0xff]
        %222 = vset.pattern.permute.xlu0 0
        %223 = vperm.xlu0 %222, %v220
        %v224 = vpop.permute.xlu0 %223
        %v226 = vmul.f32 %v212, %v224
        %v227 = vmul.f32 %v213, %v224
        %v228 = vmul.f32 %v214, %v224
        %v229 = vmul.f32 %v215, %v224
        %v230 = vmul.f32 %v216, %v224
        %v231 = vmul.f32 %v217, %v224
        %v232 = vmul.f32 %v218, %v224
        %v233 = vmul.f32 %v219, %v224
        %v234 = vld [vmem:[#allocation7] sm:$0xff]
        %236 = vset.pattern.permute.xlu0 0
        %237 = vperm.xlu0 %236, %v234
        %v238 = vpop.permute.xlu0 %237
        %v240 = vadd.f32 %v226, %v238
        %v241 = vadd.f32 %v227, %v238
        %v242 = vadd.f32 %v228, %v238
        %v243 = vadd.f32 %v229, %v238
        %v244 = vadd.f32 %v230, %v238
        %v245 = vadd.f32 %v231, %v238
        %v246 = vadd.f32 %v232, %v238
        %v247 = vadd.f32 %v233, %v238
        %v248 = vmax.f32 %v240, 0.0
        %v249 = vmax.f32 %v241, 0.0
        %v250 = vmax.f32 %v242, 0.0
        %v251 = vmax.f32 %v243, 0.0
        %v252 = vmax.f32 %v244, 0.0
        %v253 = vmax.f32 %v245, 0.0
        %v254 = vmax.f32 %v246, 0.0
        %v255 = vmax.f32 %v247, 0.0
        %256 = vst [vmem:[%s211] sm:$0xff] %v248
        %257 = vst [vmem:[%s211 + $0x8] sm:$0xff] %v249
        %258 = vst [vmem:[%s211 + $0x10] sm:$0xff] %v250
        %259 = vst [vmem:[%s211 + $0x18] sm:$0xff] %v251
        %260 = vst [vmem:[%s211 + $0x20] sm:$0xff] %v252
        %261 = vst [vmem:[%s211 + $0x28] sm:$0xff] %v253
        %262 = vst [vmem:[%s211 + $0x30] sm:$0xff] %v254
        %vm263 = vcmask 850944
        %264 = vst.msk [vmem:[%s211 + $0x38] sm:$0xff] %vm263, %v255
        %s265 = sand.u32 %s97, 1
        %s266 = scalar_lea.sflag [#allocation4], %s265
        %s267 = sand.u32 %s97, 1
        %s268 = smul.addr %s267, 64
        %s269 = scalar_lea.vmem [#allocation8], %s268
        // Predicated region
        $region45: #{double_conv.5} parent=31 // pred_check
          %p270 = pneg %p107
        $region46: #{double_conv.5} parent=31 // pred_check_branch
          %272 = sbr.rel (%p270) target = $region48
        $region47: #{double_conv.5} parent=31 // pred_region
          %s274 = ssub.s32 1024, 1024
          %275 = vsyncadd %s266, %s274
          %s276 = smul.addr %s21, 8
          %s277 = smul.addr %s276, 128
          %s278 = scalar_lea.hbm %s3, %s277
          %s280 = sshll.u32 %s269, 4
          %s281 = int_to_ptr.vmem [resolvable:$true] %s280
          %283 = dma.vmem_to_hbm [thread:$0]  %s281, 1024, %s278, %s266
        $region48: #{double_conv.5} parent=31 // pred_fallthru
          _
      $region32: #{double_conv.5} parent=5 // pred_fallthru
        _
      %p284 = scmp.le.s32.totalorder 2, %s16
      // Predicated region
      $region49: #{double_conv.5} parent=5 // pred_check
        %p285 = pneg %p284
      $region50: #{double_conv.5} parent=5 // pred_check_branch
        %287 = sbr.rel (%p285) target = $region52
      $region51: #{double_conv.5} parent=5 // pred_region
        %s288 = ssub.s32 %s16, 2
        // Predicated region
        $region53: #{double_conv.5} parent=51 // pred_check
          %p289 = pneg %p113
        $region54: #{double_conv.5} parent=51 // pred_check_branch
          %291 = sbr.rel (%p289) target = $region56
        $region55: #{double_conv.5} parent=51 // pred_region
          %s292 = sand.u32 %s98, 1
          %s293 = scalar_lea.sflag [#allocation4], %s292
          %s294 = sand.u32 %s98, 1
          %s295 = smul.addr %s294, 64
          %s296 = scalar_lea.vmem [#allocation8], %s295
          %297 = dma.done %s293, 1024
        $region56: #{double_conv.5} parent=51 // pred_fallthru
          _
      $region52: #{double_conv.5} parent=5 // pred_fallthru
        _
    $region6: #{double_conv.5} parent=1 // loop_footer
      %s20 = sadd.s32 1, %s16
    $region7: #{double_conv.5} parent=1 // loop_footer_branch
      %15 = sbr.rel target = $region3
    $region8: #{double_conv.5} parent=1 // loop_exit
      _
    %298 = vsyncpa [#allocation3], 1
    %s299 = scalar_lea.sflag [#allocation3], 1
    %300 = vsyncpa %s299, 1
    %301 = vsyncpa [#allocation6], 1
    %302 = vsyncpa [#allocation4], 1
    %s303 = scalar_lea.sflag [#allocation4], 1
    %304 = vsyncpa %s303, 1

// kernel: double_conv.3
$region0: #{double_conv.3}
  #allocation0 [shape = 'u32[]', space=smem, size = 0x4, offset = 0x4, fixed_abs, tag = 'smem constant byte address 0x4 - core index']
  #allocation1 [shape = 'u32[144,128]{1,0:T(1,128)}', space=vmem, size = 0x12000, scoped, tag = 'internal scratch']
  #allocation2 [shape = 'f32[108,1000]{1,0:T(8,128)}', space=vmem, size = 0x70000, scoped, tag = 'scratch operand']
  %s0 = inlined_call_operand.hbm [shape: f32[2,4,1256], index: 0, kind: input, shape index: {}]
  %s1 = inlined_call_operand.hbm [shape: f32[1,1000], index: 1, kind: input, shape index: {}]
  %s2 = inlined_call_operand.hbm [shape: f32[8,108], index: 2, kind: input, shape index: {}]
  %s3 = inlined_call_operand.hbm [shape: f32[2,8,1000], index: 3, kind: output, shape index: {0}]
  %s4 = inlined_call_operand.hbm [shape: f32[2,2,8], index: 4, kind: output, shape index: {1}]
  %5 = xla_tuple %s3, %s4
  %s6 = sld [smem:[#allocation0]]
  $region65: #{double_conv.3} parent=0
    _
  %s8 = ssub.s32 1, %s6
  %s9 = scalar_select 0, %s8, %s6
  $region1: #{double_conv.3} parent=0
    #allocation3 [shape = 'u8[40960]{0}', space=vmem, size = 0xa000, scoped, tag = 'input window, operand 0']
    #allocation4 [shape = 's32[2]{0}', space=sflag, size = 0x8, scoped, tag = 'scoped memory for double_conv.3']
    #allocation5 [shape = 's32[2]{0}', space=sflag, size = 0x8, scoped, tag = 'scoped memory for double_conv.3']
    #allocation6 [shape = 'u8[4096]{0}', space=vmem, size = 0x1000, scoped, tag = 'input window, operand 1, single buffered']
    #allocation7 [shape = 's32[1]{0}', space=sflag, size = 0x4, scoped, tag = 'scoped memory for double_conv.3']
    #allocation8 [shape = 'u8[4096]{0}', space=vmem, size = 0x1000, scoped, tag = 'input window, operand 2, single buffered']
    #allocation9 [shape = 'u8[65536]{0}', space=vmem, size = 0x10000, scoped, tag = 'output window, operand 0']
    #allocation10 [shape = 'u8[2048]{0}', space=vmem, size = 0x800, scoped, tag = 'output window, operand 1']
    #allocation11 [shape = 's32[2]{0}', space=sflag, size = 0x8, scoped, tag = 'scoped memory for double_conv.3']
    %10 = vsyncpa [#allocation4], 0
    %s11 = scalar_lea.sflag [#allocation4], 1
    %12 = vsyncpa %s11, 0
    %13 = vsyncpa [#allocation7], 0
    %14 = vsyncpa [#allocation5], 0
    %s15 = scalar_lea.sflag [#allocation5], 1
    %16 = vsyncpa %s15, 0
    %17 = vsyncpa [#allocation11], 0
    %s18 = scalar_lea.sflag [#allocation11], 1
    %19 = vsyncpa %s18, 0
    loop: start=0, step=1, limit=4
    $region2: #{double_conv.3} parent=1 // loop_pre_header
      _
    $region3: #{double_conv.3} parent=1 // loop_header
      %s21 = sphi 0, %s25
      %p22 = scmp.ge.s32.totalorder %s21, 4
      %s31 = sphi 0, %s33
      %s34 = sphi 0, %s31
      %s35 = sphi 0, %s34
      %s51 = sphi 0, %s35
      %s55 = sphi 0, %s55
      %s57 = sphi 0, %s55
      %s58 = sphi 0, %s57
      %s72 = sphi 0, %s58
      %s76 = sphi 0, %s76
      %s78 = sphi 0, %s76
      %s79 = sphi 0, %s78
      %s93 = sphi 0, %s79
      %s99 = sphi 0, %s101
      %s102 = sphi 0, %s99
      %s103 = sphi 0, %s102
      %s119 = sphi 0, %s103
      %s125 = sphi 0, %s127
      %s128 = sphi 0, %s125
      %s129 = sphi 0, %s128
      %s145 = sphi 0, %s129
    $region4: #{double_conv.3} parent=1 // loop_header_branch
      %24 = sbr.rel (%p22) target = $region8
    $region5: #{double_conv.3} parent=1 // loop_body
      %s26 = ssub.s32 %s21, 1
      %s27 = ssub.s32 %s21, 2
      %s28 = sadd.s32 %s21, 1
      %s29 = ssub.s32 %s21, %s28
      %p30 = scmp.eq.s32.totalorder %s29, 0
      %s32 = sadd.s32 %s31, 1
      %s33 = scalar_select %p30, %s31, %s32
      %p36 = pneg %p30
      %p37 = scmp.eq.s32.totalorder %s21, 1
      %p38 = por %p36, %p37
      %p39 = scmp.ne.s32.totalorder %s31, %s34
      %p40 = scmp.eq.s32.totalorder %s21, 0
      %p41 = por %p39, %p40
      %p42 = scmp.ne.s32.totalorder %s31, %s34
      %p43 = scmp.eq.s32.totalorder %s26, 1
      %p44 = por %p42, %p43
      %p45 = scmp.ne.s32.totalorder %s34, %s35
      %p46 = scmp.eq.s32.totalorder %s26, 0
      %p47 = por %p45, %p46
      %p48 = scmp.ne.s32.totalorder %s34, %s35
      %p49 = scmp.eq.s32.totalorder %s27, 1
      %p50 = por %p48, %p49
      %p52 = scmp.ne.s32.totalorder %s35, %s51
      %p53 = scmp.eq.s32.totalorder %s27, 0
      %p54 = por %p52, %p53
      %s56 = sadd.s32 %s55, 1
      %p59 = scmp.eq.s32.totalorder %s21, 1
      %p60 = scmp.ne.s32.totalorder %s55, %s57
      %p61 = scmp.eq.s32.totalorder %s21, 0
      %p62 = por %p60, %p61
      %p63 = scmp.ne.s32.totalorder %s55, %s57
      %p64 = scmp.eq.s32.totalorder %s26, 1
      %p65 = por %p63, %p64
      %p66 = scmp.ne.s32.totalorder %s57, %s58
      %p67 = scmp.eq.s32.totalorder %s26, 0
      %p68 = por %p66, %p67
      %p69 = scmp.ne.s32.totalorder %s57, %s58
      %p70 = scmp.eq.s32.totalorder %s27, 1
      %p71 = por %p69, %p70
      %p73 = scmp.ne.s32.totalorder %s58, %s72
      %p74 = scmp.eq.s32.totalorder %s27, 0
      %p75 = por %p73, %p74
      %s77 = sadd.s32 %s76, 1
      %p80 = scmp.eq.s32.totalorder %s21, 1
      %p81 = scmp.ne.s32.totalorder %s76, %s78
      %p82 = scmp.eq.s32.totalorder %s21, 0
      %p83 = por %p81, %p82
      %p84 = scmp.ne.s32.totalorder %s76, %s78
      %p85 = scmp.eq.s32.totalorder %s26, 1
      %p86 = por %p84, %p85
      %p87 = scmp.ne.s32.totalorder %s78, %s79
      %p88 = scmp.eq.s32.totalorder %s26, 0
      %p89 = por %p87, %p88
      %p90 = scmp.ne.s32.totalorder %s78, %s79
      %p91 = scmp.eq.s32.totalorder %s27, 1
      %p92 = por %p90, %p91
      %p94 = scmp.ne.s32.totalorder %s79, %s93
      %p95 = scmp.eq.s32.totalorder %s27, 0
      %p96 = por %p94, %p95
      %s97 = ssub.s32 %s21, %s28
      %p98 = scmp.eq.s32.totalorder %s97, 0
      %s100 = sadd.s32 %s99, 1
      %s101 = scalar_select %p98, %s99, %s100
      %p104 = pneg %p98
      %p105 = scmp.eq.s32.totalorder %s21, 1
      %p106 = por %p104, %p105
      %p107 = scmp.ne.s32.totalorder %s99, %s102
      %p108 = scmp.eq.s32.totalorder %s21, 0
      %p109 = por %p107, %p108
      %p110 = scmp.ne.s32.totalorder %s99, %s102
      %p111 = scmp.eq.s32.totalorder %s26, 1
      %p112 = por %p110, %p111
      %p113 = scmp.ne.s32.totalorder %s102, %s103
      %p114 = scmp.eq.s32.totalorder %s26, 0
      %p115 = por %p113, %p114
      %p116 = scmp.ne.s32.totalorder %s102, %s103
      %p117 = scmp.eq.s32.totalorder %s27, 1
      %p118 = por %p116, %p117
      %p120 = scmp.ne.s32.totalorder %s103, %s119
      %p121 = scmp.eq.s32.totalorder %s27, 0
      %p122 = por %p120, %p121
      %s123 = ssub.s32 %s21, %s28
      %p124 = scmp.eq.s32.totalorder %s123, 0
      %s126 = sadd.s32 %s125, 1
      %s127 = scalar_select %p124, %s125, %s126
      %p130 = pneg %p124
      %p131 = scmp.eq.s32.totalorder %s21, 1
      %p132 = por %p130, %p131
      %p133 = scmp.ne.s32.totalorder %s125, %s128
      %p134 = scmp.eq.s32.totalorder %s21, 0
      %p135 = por %p133, %p134
      %p136 = scmp.ne.s32.totalorder %s125, %s128
      %p137 = scmp.eq.s32.totalorder %s26, 1
      %p138 = por %p136, %p137
      %p139 = scmp.ne.s32.totalorder %s128, %s129
      %p140 = scmp.eq.s32.totalorder %s26, 0
      %p141 = por %p139, %p140
      %p142 = scmp.ne.s32.totalorder %s128, %s129
      %p143 = scmp.eq.s32.totalorder %s27, 1
      %p144 = por %p142, %p143
      %p146 = scmp.ne.s32.totalorder %s129, %s145
      %p147 = scmp.eq.s32.totalorder %s27, 0
      %p148 = por %p146, %p147
      %p149 = scmp.le.s32.totalorder 1, %s21
      %p150 = scmp.lt.s32.totalorder %s21, 3
      %p151 = pnand %p149, %p150
      %p152 = pneg %p151
      // Predicated region
      $region9: #{double_conv.3} parent=5 // pred_check
        _
      $region10: #{double_conv.3} parent=5 // pred_check_branch
        %154 = sbr.rel (%p151) target = $region12
      $region11: #{double_conv.3} parent=5 // pred_region
        %s155 = ssub.s32 %s21, 1
        // Predicated region
        $region13: #{double_conv.3} parent=11 // pred_check
          %p156 = pneg %p68
        $region14: #{double_conv.3} parent=11 // pred_check_branch
          %158 = sbr.rel (%p156) target = $region16
        $region15: #{double_conv.3} parent=11 // pred_region
          %s160 = ssub.s32 128, 128
          %161 = vsyncadd [#allocation7], %s160
          %s163 = sshll.u32 [#allocation6], 4
          %s164 = int_to_ptr.vmem [resolvable:$true] %s163
          %166 = dma.hbm_to_vmem [thread:$0]  %s1, 128, %s164, [#allocation7]
        $region16: #{double_conv.3} parent=11 // pred_fallthru
          _
        // Predicated region
        $region17: #{double_conv.3} parent=11 // pred_check
          %p167 = pneg %p89
        $region18: #{double_conv.3} parent=11 // pred_check_branch
          %169 = sbr.rel (%p167) target = $region20
        $region19: #{double_conv.3} parent=11 // pred_region
          %s171 = ssub.s32 128, 128
          %172 = vsyncadd [#allocation7], %s171
          %s174 = sshll.u32 [#allocation8], 4
          %s175 = int_to_ptr.vmem [resolvable:$true] %s174
          %177 = dma.hbm_to_vmem [thread:$0]  %s2, 128, %s175, [#allocation7]
        $region20: #{double_conv.3} parent=11 // pred_fallthru
          _
      $region12: #{double_conv.3} parent=5 // pred_fallthru
        _
      %p178 = scmp.lt.s32.totalorder %s21, 2
      // Predicated region
      $region21: #{double_conv.3} parent=5 // pred_check
        %p179 = pneg %p178
      $region22: #{double_conv.3} parent=5 // pred_check_branch
        %181 = sbr.rel (%p179) target = $region24
      $region23: #{double_conv.3} parent=5 // pred_region
        // Predicated region
        $region25: #{double_conv.3} parent=23 // pred_check
          %p182 = pneg %p41
        $region26: #{double_conv.3} parent=23 // pred_check_branch
          %184 = sbr.rel (%p182) target = $region28
        $region27: #{double_conv.3} parent=23 // pred_region
          %s185 = sand.u32 %s31, 1
          %s186 = scalar_lea.sflag [#allocation4], %s185
          %s187 = sand.u32 %s31, 1
          %s188 = smul.addr %s187, 40
          %s189 = scalar_lea.vmem [#allocation3], %s188
          %s191 = ssub.s32 640, 640
          %192 = vsyncadd %s186, %s191
          %s193 = smul.addr %s21, 10
          %s194 = smul.addr %s193, 64
          %s195 = scalar_lea.hbm %s0, %s194
          %s197 = sshll.u32 %s189, 4
          %s198 = int_to_ptr.vmem [resolvable:$true] %s197
          %200 = dma.hbm_to_vmem [thread:$0]  %s195, 640, %s198, %s186
        $region28: #{double_conv.3} parent=23 // pred_fallthru
          _
      $region24: #{double_conv.3} parent=5 // pred_fallthru
        _
      %p201 = scmp.le.s32.totalorder 1, %s21
      %p202 = scmp.lt.s32.totalorder %s21, 3
      %p203 = pnand %p201, %p202
      %p204 = pneg %p203
      // Predicated region
      $region29: #{double_conv.3} parent=5 // pred_check
        _
      $region30: #{double_conv.3} parent=5 // pred_check_branch
        %206 = sbr.rel (%p203) target = $region32
      $region31: #{double_conv.3} parent=5 // pred_region
        %s207 = ssub.s32 %s21, 1
        %s208 = sand.u32 %s34, 1
        %s209 = scalar_lea.sflag [#allocation4], %s208
        %s210 = sand.u32 %s34, 1
        %s211 = smul.addr %s210, 40
        %s212 = scalar_lea.vmem [#allocation3], %s211
        // Predicated region
        $region33: #{double_conv.3} parent=31 // pred_check
          %p213 = pneg %p47
        $region34: #{double_conv.3} parent=31 // pred_check_branch
          %215 = sbr.rel (%p213) target = $region36
        $region35: #{double_conv.3} parent=31 // pred_region
          %216 = dma.done %s209, 640
        $region36: #{double_conv.3} parent=31 // pred_fallthru
          _
        // Predicated region
        $region37: #{double_conv.3} parent=31 // pred_check
          %p217 = pneg %p68
        $region38: #{double_conv.3} parent=31 // pred_check_branch
          %219 = sbr.rel (%p217) target = $region40
        $region39: #{double_conv.3} parent=31 // pred_region
          %220 = dma.done [#allocation7], 128
        $region40: #{double_conv.3} parent=31 // pred_fallthru
          _
        // Predicated region
        $region41: #{double_conv.3} parent=31 // pred_check
          %p221 = pneg %p89
        $region42: #{double_conv.3} parent=31 // pred_check_branch
          %223 = sbr.rel (%p221) target = $region44
        $region43: #{double_conv.3} parent=31 // pred_region
          %224 = dma.done [#allocation7], 128
        $region44: #{double_conv.3} parent=31 // pred_fallthru
          _
        %s225 = sand.u32 %s34, 1
        %s226 = scalar_lea.sflag [#allocation4], %s225
        %s227 = sand.u32 %s34, 1
        %s228 = smul.addr %s227, 40
        %s229 = scalar_lea.vmem [#allocation3], %s228
        %p230 = pneg %p47
        %p231 = pneg %p44
        %p232 = pneg %p68
        %p233 = pneg %p65
        %p234 = pneg %p89
        %p235 = pneg %p86
        %p236 = pneg %p115
        %p237 = pneg %p112
        %s238 = sand.u32 %s102, 1
        %s239 = scalar_lea.sflag [#allocation5], %s238
        %s240 = sand.u32 %s102, 1
        %s241 = smul.addr %s240, 64
        %s242 = scalar_lea.vmem [#allocation9], %s241
        %p243 = pneg %p141
        %p244 = pneg %p138
        %s245 = sand.u32 %s128, 1
        %s246 = scalar_lea.sflag [#allocation11], %s245
        %s247 = sand.u32 %s128, 1
        %s248 = smul.addr %s247, 2
        %s249 = scalar_lea.vmem [#allocation10], %s248
        %v250 = vld [vmem:[%s212] sm:$0xff]
        %v251 = vld [vmem:[%s212 + $0x8] sm:$0xff]
        %v252 = vld [vmem:[%s212 + $0x10] sm:$0xff]
        %v253 = vld [vmem:[%s212 + $0x18] sm:$0xff]
        %v258 = vcombine.high %v250, %v250
        %v259 = vcombine.high %v251, %v251
        %v260 = vcombine.high %v252, %v252
        %v261 = vcombine.high %v253, %v253
        %262 = vrot.lane.b32.xlu0 %v250, 111
        %v263 = vpop.permute.xlu0 %262
        %264 = vrot.lane.b32.xlu0 %v258, 111
        %v265 = vpop.permute.xlu0 %264
        %266 = vrot.lane.b32.xlu0 %v251, 111
        %v267 = vpop.permute.xlu0 %266
        %268 = vrot.lane.b32.xlu0 %v259, 111
        %v269 = vpop.permute.xlu0 %268
        %270 = vrot.lane.b32.xlu0 %v252, 111
        %v271 = vpop.permute.xlu0 %270
        %272 = vrot.lane.b32.xlu0 %v260, 111
        %v273 = vpop.permute.xlu0 %272
        %274 = vrot.lane.b32.xlu0 %v253, 111
        %v275 = vpop.permute.xlu0 %274
        %276 = vrot.lane.b32.xlu0 %v261, 111
        %v277 = vpop.permute.xlu0 %276
        %vm278 = vcmask 908288
        %v279 = vsel %vm278, %v263, %v265
        %v280 = vsel %vm278, %v265, %v267
        %v281 = vsel %vm278, %v267, %v269
        %v282 = vsel %vm278, %v269, %v271
        %v283 = vsel %vm278, %v271, %v273
        %v284 = vsel %vm278, %v273, %v275
        %v285 = vsel %vm278, %v275, %v277
        %294 = vst [vmem:[#allocation2] sm:$0xf] %v279
        %295 = vst [vmem:[#allocation2 + $0x8] sm:$0xf] %v280
        %296 = vst [vmem:[#allocation2 + $0x10] sm:$0xf] %v281
        %297 = vst [vmem:[#allocation2 + $0x18] sm:$0xf] %v282
        %298 = vst [vmem:[#allocation2 + $0x20] sm:$0xf] %v283
        %299 = vst [vmem:[#allocation2 + $0x28] sm:$0xf] %v284
        %300 = vst [vmem:[#allocation2 + $0x30] sm:$0xf] %v285
        %vm301 = vcmask 846848
        %302 = vst.msk [vmem:[#allocation2 + $0x38] sm:$0xf] %vm301, %v277
        %v303 = vld [vmem:[%s212] sm:$0xff]
        %v304 = vld [vmem:[%s212 + $0x8] sm:$0xff]
        %v305 = vld [vmem:[%s212 + $0x10] sm:$0xff]
        %v306 = vld [vmem:[%s212 + $0x18] sm:$0xff]
        %v311 = vcombine.low %v303, %v303
        %v312 = vcombine.low %v304, %v304
        %v313 = vcombine.low %v305, %v305
        %v314 = vcombine.low %v306, %v306
        %315 = vrot.lane.b32.xlu0 %v311, 110
        %v316 = vpop.permute.xlu0 %315
        %317 = vrot.lane.b32.xlu0 %v303, 110
        %v318 = vpop.permute.xlu0 %317
        %319 = vrot.lane.b32.xlu0 %v312, 110
        %v320 = vpop.permute.xlu0 %319
        %321 = vrot.lane.b32.xlu0 %v304, 110
        %v322 = vpop.permute.xlu0 %321
        %323 = vrot.lane.b32.xlu0 %v313, 110
        %v324 = vpop.permute.xlu0 %323
        %325 = vrot.lane.b32.xlu0 %v305, 110
        %v326 = vpop.permute.xlu0 %325
        %327 = vrot.lane.b32.xlu0 %v314, 110
        %v328 = vpop.permute.xlu0 %327
        %329 = vrot.lane.b32.xlu0 %v306, 110
        %v330 = vpop.permute.xlu0 %329
        %vm331 = vcmask 900096
        %v332 = vsel %vm331, %v316, %v318
        %v333 = vsel %vm331, %v318, %v320
        %v334 = vsel %vm331, %v320, %v322
        %v335 = vsel %vm331, %v322, %v324
        %v336 = vsel %vm331, %v324, %v326
        %v337 = vsel %vm331, %v326, %v328
        %v338 = vsel %vm331, %v328, %v330
        %347 = vst [vmem:[#allocation2] sm:$0xf0] %v332
        %348 = vst [vmem:[#allocation2 + $0x8] sm:$0xf0] %v333
        %349 = vst [vmem:[#allocation2 + $0x10] sm:$0xf0] %v334
        %350 = vst [vmem:[#allocation2 + $0x18] sm:$0xf0] %v335
        %351 = vst [vmem:[#allocation2 + $0x20] sm:$0xf0] %v336
        %352 = vst [vmem:[#allocation2 + $0x28] sm:$0xf0] %v337
        %353 = vst [vmem:[#allocation2 + $0x30] sm:$0xf0] %v338
        %vm354 = vcmask 850948
        %355 = vst.msk [vmem:[#allocation2 + $0x38] sm:$0xf0] %vm354, %v330
        %v356 = vld [vmem:[%s212] sm:$0xff]
        %v357 = vld [vmem:[%s212 + $0x8] sm:$0xff]
        %v358 = vld [vmem:[%s212 + $0x10] sm:$0xff]
        %v359 = vld [vmem:[%s212 + $0x18] sm:$0xff]
        %v364 = vcombine.high %v356, %v356
        %v365 = vcombine.high %v357, %v357
        %v366 = vcombine.high %v358, %v358
        %v367 = vcombine.high %v359, %v359
        %368 = vrot.lane.b32.xlu0 %v356, 109
        %v369 = vpop.permute.xlu0 %368
        %370 = vrot.lane.b32.xlu0 %v364, 109
        %v371 = vpop.permute.xlu0 %370
        %372 = vrot.lane.b32.xlu0 %v357, 109
        %v373 = vpop.permute.xlu0 %372
        %374 = vrot.lane.b32.xlu0 %v365, 109
        %v375 = vpop.permute.xlu0 %374
        %376 = vrot.lane.b32.xlu0 %v358, 109
        %v377 = vpop.permute.xlu0 %376
        %378 = vrot.lane.b32.xlu0 %v366, 109
        %v379 = vpop.permute.xlu0 %378
        %380 = vrot.lane.b32.xlu0 %v359, 109
        %v381 = vpop.permute.xlu0 %380
        %382 = vrot.lane.b32.xlu0 %v367, 109
        %v383 = vpop.permute.xlu0 %382
        %vm384 = vcmask 891904
        %v385 = vsel %vm384, %v369, %v371
        %v386 = vsel %vm384, %v371, %v373
        %v387 = vsel %vm384, %v373, %v375
        %v388 = vsel %vm384, %v375, %v377
        %v389 = vsel %vm384, %v377, %v379
        %v390 = vsel %vm384, %v379, %v381
        %v391 = vsel %vm384, %v381, %v383
        %400 = vst [vmem:[#allocation2 + $0x40] sm:$0xf] %v385
        %401 = vst [vmem:[#allocation2 + $0x48] sm:$0xf] %v386
        %402 = vst [vmem:[#allocation2 + $0x50] sm:$0xf] %v387
        %403 = vst [vmem:[#allocation2 + $0x58] sm:$0xf] %v388
        %404 = vst [vmem:[#allocation2 + $0x60] sm:$0xf] %v389
        %405 = vst [vmem:[#allocation2 + $0x68] sm:$0xf] %v390
        %406 = vst [vmem:[#allocation2 + $0x70] sm:$0xf] %v391
        %407 = vst.msk [vmem:[#allocation2 + $0x78] sm:$0xf] %vm301, %v383
        %v408 = vld [vmem:[%s212] sm:$0xff]
        %v409 = vld [vmem:[%s212 + $0x8] sm:$0xff]
        %v410 = vld [vmem:[%s212 + $0x10] sm:$0xff]
        %v411 = vld [vmem:[%s212 + $0x18] sm:$0xff]
        %v412 = vld [vmem:[%s212 + $0x20] sm:$0xf]
        %v418 = vcombine.low %v408, %v408
        %v419 = vcombine.low %v409, %v409
        %v420 = vcombine.low %v410, %v410
        %v421 = vcombine.low %v411, %v411
        %v422 = vcombine.low %v412, %v412
        %423 = vrot.lane.b32.xlu0 %v418, 101
        %v424 = vpop.permute.xlu0 %423
        %425 = vrot.lane.b32.xlu0 %v408, 101
        %v426 = vpop.permute.xlu0 %425
        %427 = vrot.lane.b32.xlu0 %v419, 101
        %v428 = vpop.permute.xlu0 %427
        %429 = vrot.lane.b32.xlu0 %v409, 101
        %v430 = vpop.permute.xlu0 %429
        %431 = vrot.lane.b32.xlu0 %v420, 101
        %v432 = vpop.permute.xlu0 %431
        %433 = vrot.lane.b32.xlu0 %v410, 101
        %v434 = vpop.permute.xlu0 %433
        %435 = vrot.lane.b32.xlu0 %v421, 101
        %v436 = vpop.permute.xlu0 %435
        %437 = vrot.lane.b32.xlu0 %v411, 101
        %v438 = vpop.permute.xlu0 %437
        %439 = vrot.lane.b32.xlu0 %v422, 101
        %v440 = vpop.permute.xlu0 %439
        %vm441 = vcmask 826368
        %v442 = vsel %vm441, %v424, %v426
        %v443 = vsel %vm441, %v426, %v428
        %v444 = vsel %vm441, %v428, %v430
        %v445 = vsel %vm441, %v430, %v432
        %v446 = vsel %vm441, %v432, %v434
        %v447 = vsel %vm441, %v434, %v436
        %v448 = vsel %vm441, %v436, %v438
        %v449 = vsel %vm441, %v438, %v440
        %458 = vst [vmem:[#allocation2 + $0x40] sm:$0xf0] %v442
        %459 = vst [vmem:[#allocation2 + $0x48] sm:$0xf0] %v443
        %460 = vst [vmem:[#allocation2 + $0x50] sm:$0xf0] %v444
        %461 = vst [vmem:[#allocation2 + $0x58] sm:$0xf0] %v445
        %462 = vst [vmem:[#allocation2 + $0x60] sm:$0xf0] %v446
        %463 = vst [vmem:[#allocation2 + $0x68] sm:$0xf0] %v447
        %464 = vst [vmem:[#allocation2 + $0x70] sm:$0xf0] %v448
        %465 = vst.msk [vmem:[#allocation2 + $0x78] sm:$0xf0] %vm354, %v449
        %v466 = vld [vmem:[%s212] sm:$0xff]
        %v467 = vld [vmem:[%s212 + $0x8] sm:$0xff]
        %v468 = vld [vmem:[%s212 + $0x10] sm:$0xff]
        %v469 = vld [vmem:[%s212 + $0x18] sm:$0xff]
        %v470 = vld [vmem:[%s212 + $0x20] sm:$0xf]
        %v476 = vcombine.high %v466, %v466
        %v477 = vcombine.high %v467, %v467
        %v478 = vcombine.high %v468, %v468
        %v479 = vcombine.high %v469, %v469
        %480 = vrot.lane.b32.xlu0 %v466, 100
        %v481 = vpop.permute.xlu0 %480
        %482 = vrot.lane.b32.xlu0 %v476, 100
        %v483 = vpop.permute.xlu0 %482
        %484 = vrot.lane.b32.xlu0 %v467, 100
        %v485 = vpop.permute.xlu0 %484
        %486 = vrot.lane.b32.xlu0 %v477, 100
        %v487 = vpop.permute.xlu0 %486
        %488 = vrot.lane.b32.xlu0 %v468, 100
        %v489 = vpop.permute.xlu0 %488
        %490 = vrot.lane.b32.xlu0 %v478, 100
        %v491 = vpop.permute.xlu0 %490
        %492 = vrot.lane.b32.xlu0 %v469, 100
        %v493 = vpop.permute.xlu0 %492
        %494 = vrot.lane.b32.xlu0 %v479, 100
        %v495 = vpop.permute.xlu0 %494
        %496 = vrot.lane.b32.xlu0 %v470, 100
        %v497 = vpop.permute.xlu0 %496
        %vm498 = vcmask 818176
        %v499 = vsel %vm498, %v481, %v483
        %v500 = vsel %vm498, %v483, %v485
        %v501 = vsel %vm498, %v485, %v487
        %v502 = vsel %vm498, %v487, %v489
        %v503 = vsel %vm498, %v489, %v491
        %v504 = vsel %vm498, %v491, %v493
        %v505 = vsel %vm498, %v493, %v495
        %v506 = vsel %vm498, %v495, %v497
        %515 = vst [vmem:[#allocation2 + $0x80] sm:$0xf] %v499
        %516 = vst [vmem:[#allocation2 + $0x88] sm:$0xf] %v500
        %517 = vst [vmem:[#allocation2 + $0x90] sm:$0xf] %v501
        %518 = vst [vmem:[#allocation2 + $0x98] sm:$0xf] %v502
        %519 = vst [vmem:[#allocation2 + $0xa0] sm:$0xf] %v503
        %520 = vst [vmem:[#allocation2 + $0xa8] sm:$0xf] %v504
        %521 = vst [vmem:[#allocation2 + $0xb0] sm:$0xf] %v505
        %522 = vst.msk [vmem:[#allocation2 + $0xb8] sm:$0xf] %vm301, %v506
        %v523 = vld [vmem:[%s212] sm:$0xff]
        %v524 = vld [vmem:[%s212 + $0x8] sm:$0xff]
        %v525 = vld [vmem:[%s212 + $0x10] sm:$0xff]
        %v526 = vld [vmem:[%s212 + $0x18] sm:$0xff]
        %v527 = vld [vmem:[%s212 + $0x20] sm:$0xf]
        %v533 = vcombine.low %v523, %v523
        %v534 = vcombine.low %v524, %v524
        %v535 = vcombine.low %v525, %v525
        %v536 = vcombine.low %v526, %v526
        %v537 = vcombine.low %v527, %v527
        %538 = vrot.lane.b32.xlu0 %v533, 99
        %v539 = vpop.permute.xlu0 %538
        %540 = vrot.lane.b32.xlu0 %v523, 99
        %v541 = vpop.permute.xlu0 %540
        %542 = vrot.lane.b32.xlu0 %v534, 99
        %v543 = vpop.permute.xlu0 %542
        %544 = vrot.lane.b32.xlu0 %v524, 99
        %v545 = vpop.permute.xlu0 %544
        %546 = vrot.lane.b32.xlu0 %v535, 99
        %v547 = vpop.permute.xlu0 %546
        %548 = vrot.lane.b32.xlu0 %v525, 99
        %v549 = vpop.permute.xlu0 %548
        %550 = vrot.lane.b32.xlu0 %v536, 99
        %v551 = vpop.permute.xlu0 %550
        %552 = vrot.lane.b32.xlu0 %v526, 99
        %v553 = vpop.permute.xlu0 %552
        %554 = vrot.lane.b32.xlu0 %v537, 99
        %v555 = vpop.permute.xlu0 %554
        %vm556 = vcmask 809984
        %v557 = vsel %vm556, %v539, %v541
        %v558 = vsel %vm556, %v541, %v543
        %v559 = vsel %vm556, %v543, %v545
        %v560 = vsel %vm556, %v545, %v547
        %v561 = vsel %vm556, %v547, %v549
        %v562 = vsel %vm556, %v549, %v551
        %v563 = vsel %vm556, %v551, %v553
        %v564 = vsel %vm556, %v553, %v555
        %573 = vst [vmem:[#allocation2 + $0x80] sm:$0xf0] %v557
        %574 = vst [vmem:[#allocation2 + $0x88] sm:$0xf0] %v558
        %575 = vst [vmem:[#allocation2 + $0x90] sm:$0xf0] %v559
        %576 = vst [vmem:[#allocation2 + $0x98] sm:$0xf0] %v560
        %577 = vst [vmem:[#allocation2 + $0xa0] sm:$0xf0] %v561
        %578 = vst [vmem:[#allocation2 + $0xa8] sm:$0xf0] %v562
        %579 = vst [vmem:[#allocation2 + $0xb0] sm:$0xf0] %v563
        %580 = vst.msk [vmem:[#allocation2 + $0xb8] sm:$0xf0] %vm354, %v564
        %v581 = vld [vmem:[%s212] sm:$0xff]
        %v582 = vld [vmem:[%s212 + $0x8] sm:$0xff]
        %v583 = vld [vmem:[%s212 + $0x10] sm:$0xff]
        %v584 = vld [vmem:[%s212 + $0x18] sm:$0xff]
        %v585 = vld [vmem:[%s212 + $0x20] sm:$0xf]
        %v591 = vcombine.high %v581, %v581
        %v592 = vcombine.high %v582, %v582
        %v593 = vcombine.high %v583, %v583
        %v594 = vcombine.high %v584, %v584
        %595 = vrot.lane.b32.xlu0 %v581, 91
        %v596 = vpop.permute.xlu0 %595
        %597 = vrot.lane.b32.xlu0 %v591, 91
        %v598 = vpop.permute.xlu0 %597
        %599 = vrot.lane.b32.xlu0 %v582, 91
        %v600 = vpop.permute.xlu0 %599
        %601 = vrot.lane.b32.xlu0 %v592, 91
        %v602 = vpop.permute.xlu0 %601
        %603 = vrot.lane.b32.xlu0 %v583, 91
        %v604 = vpop.permute.xlu0 %603
        %605 = vrot.lane.b32.xlu0 %v593, 91
        %v606 = vpop.permute.xlu0 %605
        %607 = vrot.lane.b32.xlu0 %v584, 91
        %v608 = vpop.permute.xlu0 %607
        %609 = vrot.lane.b32.xlu0 %v594, 91
        %v610 = vpop.permute.xlu0 %609
        %611 = vrot.lane.b32.xlu0 %v585, 91
        %v612 = vpop.permute.xlu0 %611
        %vm613 = vcmask 744448
        %v614 = vsel %vm613, %v596, %v598
        %v615 = vsel %vm613, %v598, %v600
        %v616 = vsel %vm613, %v600, %v602
        %v617 = vsel %vm613, %v602, %v604
        %v618 = vsel %vm613, %v604, %v606
        %v619 = vsel %vm613, %v606, %v608
        %v620 = vsel %vm613, %v608, %v610
        %v621 = vsel %vm613, %v610, %v612
        %630 = vst [vmem:[#allocation2 + $0xc0] sm:$0xf] %v614
        %631 = vst [vmem:[#allocation2 + $0xc8] sm:$0xf] %v615
        %632 = vst [vmem:[#allocation2 + $0xd0] sm:$0xf] %v616
        %633 = vst [vmem:[#allocation2 + $0xd8] sm:$0xf] %v617
        %634 = vst [vmem:[#allocation2 + $0xe0] sm:$0xf] %v618
        %635 = vst [vmem:[#allocation2 + $0xe8] sm:$0xf] %v619
        %636 = vst [vmem:[#allocation2 + $0xf0] sm:$0xf] %v620
        %637 = vst.msk [vmem:[#allocation2 + $0xf8] sm:$0xf] %vm301, %v621
        %v638 = vld [vmem:[%s212] sm:$0xff]
        %v639 = vld [vmem:[%s212 + $0x8] sm:$0xff]
        %v640 = vld [vmem:[%s212 + $0x10] sm:$0xff]
        %v641 = vld [vmem:[%s212 + $0x18] sm:$0xff]
        %v642 = vld [vmem:[%s212 + $0x20] sm:$0xf]
        %v648 = vcombine.low %v638, %v638
        %v649 = vcombine.low %v639, %v639
        %v650 = vcombine.low %v640, %v640
        %v651 = vcombine.low %v641, %v641
        %v652 = vcombine.low %v642, %v642
        %653 = vrot.lane.b32.xlu0 %v648, 90
        %v654 = vpop.permute.xlu0 %653
        %655 = vrot.lane.b32.xlu0 %v638, 90
        %v656 = vpop.permute.xlu0 %655
        %657 = vrot.lane.b32.xlu0 %v649, 90
        %v658 = vpop.permute.xlu0 %657
        %659 = vrot.lane.b32.xlu0 %v639, 90
        %v660 = vpop.permute.xlu0 %659
        %661 = vrot.lane.b32.xlu0 %v650, 90
        %v662 = vpop.permute.xlu0 %661
        %663 = vrot.lane.b32.xlu0 %v640, 90
        %v664 = vpop.permute.xlu0 %663
        %665 = vrot.lane.b32.xlu0 %v651, 90
        %v666 = vpop.permute.xlu0 %665
        %667 = vrot.lane.b32.xlu0 %v641, 90
        %v668 = vpop.permute.xlu0 %667
        %669 = vrot.lane.b32.xlu0 %v652, 90
        %v670 = vpop.permute.xlu0 %669
        %vm671 = vcmask 736256
        %v672 = vsel %vm671, %v654, %v656
        %v673 = vsel %vm671, %v656, %v658
        %v674 = vsel %vm671, %v658, %v660
        %v675 = vsel %vm671, %v660, %v662
        %v676 = vsel %vm671, %v662, %v664
        %v677 = vsel %vm671, %v664, %v666
        %v678 = vsel %vm671, %v666, %v668
        %v679 = vsel %vm671, %v668, %v670
        %688 = vst [vmem:[#allocation2 + $0xc0] sm:$0xf0] %v672
        %689 = vst [vmem:[#allocation2 + $0xc8] sm:$0xf0] %v673
        %690 = vst [vmem:[#allocation2 + $0xd0] sm:$0xf0] %v674
        %691 = vst [vmem:[#allocation2 + $0xd8] sm:$0xf0] %v675
        %692 = vst [vmem:[#allocation2 + $0xe0] sm:$0xf0] %v676
        %693 = vst [vmem:[#allocation2 + $0xe8] sm:$0xf0] %v677
        %694 = vst [vmem:[#allocation2 + $0xf0] sm:$0xf0] %v678
        %695 = vst.msk [vmem:[#allocation2 + $0xf8] sm:$0xf0] %vm354, %v679
        %v696 = vld [vmem:[%s212] sm:$0xff]
        %v697 = vld [vmem:[%s212 + $0x8] sm:$0xff]
        %v698 = vld [vmem:[%s212 + $0x10] sm:$0xff]
        %v699 = vld [vmem:[%s212 + $0x18] sm:$0xff]
        %v700 = vld [vmem:[%s212 + $0x20] sm:$0xf]
        %v706 = vcombine.high %v696, %v696
        %v707 = vcombine.high %v697, %v697
        %v708 = vcombine.high %v698, %v698
        %v709 = vcombine.high %v699, %v699
        %710 = vrot.lane.b32.xlu0 %v696, 89
        %v711 = vpop.permute.xlu0 %710
        %712 = vrot.lane.b32.xlu0 %v706, 89
        %v713 = vpop.permute.xlu0 %712
        %714 = vrot.lane.b32.xlu0 %v697, 89
        %v715 = vpop.permute.xlu0 %714
        %716 = vrot.lane.b32.xlu0 %v707, 89
        %v717 = vpop.permute.xlu0 %716
        %718 = vrot.lane.b32.xlu0 %v698, 89
        %v719 = vpop.permute.xlu0 %718
        %720 = vrot.lane.b32.xlu0 %v708, 89
        %v721 = vpop.permute.xlu0 %720
        %722 = vrot.lane.b32.xlu0 %v699, 89
        %v723 = vpop.permute.xlu0 %722
        %724 = vrot.lane.b32.xlu0 %v709, 89
        %v725 = vpop.permute.xlu0 %724
        %726 = vrot.lane.b32.xlu0 %v700, 89
        %v727 = vpop.permute.xlu0 %726
        %vm728 = vcmask 728064
        %v729 = vsel %vm728, %v711, %v713
        %v730 = vsel %vm728, %v713, %v715
        %v731 = vsel %vm728, %v715, %v717
        %v732 = vsel %vm728, %v717, %v719
        %v733 = vsel %vm728, %v719, %v721
        %v734 = vsel %vm728, %v721, %v723
        %v735 = vsel %vm728, %v723, %v725
        %v736 = vsel %vm728, %v725, %v727
        %745 = vst [vmem:[#allocation2 + $0x100] sm:$0xf] %v729
        %746 = vst [vmem:[#allocation2 + $0x108] sm:$0xf] %v730
        %747 = vst [vmem:[#allocation2 + $0x110] sm:$0xf] %v731
        %748 = vst [vmem:[#allocation2 + $0x118] sm:$0xf] %v732
        %749 = vst [vmem:[#allocation2 + $0x120] sm:$0xf] %v733
        %750 = vst [vmem:[#allocation2 + $0x128] sm:$0xf] %v734
        %751 = vst [vmem:[#allocation2 + $0x130] sm:$0xf] %v735
        %752 = vst.msk [vmem:[#allocation2 + $0x138] sm:$0xf] %vm301, %v736
        %v753 = vld [vmem:[%s212] sm:$0xff]
        %v754 = vld [vmem:[%s212 + $0x8] sm:$0xff]
        %v755 = vld [vmem:[%s212 + $0x10] sm:$0xff]
        %v756 = vld [vmem:[%s212 + $0x18] sm:$0xff]
        %v757 = vld [vmem:[%s212 + $0x20] sm:$0xf]
        %v763 = vcombine.low %v753, %v753
        %v764 = vcombine.low %v754, %v754
        %v765 = vcombine.low %v755, %v755
        %v766 = vcombine.low %v756, %v756
        %v767 = vcombine.low %v757, %v757
        %768 = vrot.lane.b32.xlu0 %v763, 11
        %v769 = vpop.permute.xlu0 %768
        %770 = vrot.lane.b32.xlu0 %v753, 11
        %v771 = vpop.permute.xlu0 %770
        %772 = vrot.lane.b32.xlu0 %v764, 11
        %v773 = vpop.permute.xlu0 %772
        %774 = vrot.lane.b32.xlu0 %v754, 11
        %v775 = vpop.permute.xlu0 %774
        %776 = vrot.lane.b32.xlu0 %v765, 11
        %v777 = vpop.permute.xlu0 %776
        %778 = vrot.lane.b32.xlu0 %v755, 11
        %v779 = vpop.permute.xlu0 %778
        %780 = vrot.lane.b32.xlu0 %v766, 11
        %v781 = vpop.permute.xlu0 %780
        %782 = vrot.lane.b32.xlu0 %v756, 11
        %v783 = vpop.permute.xlu0 %782
        %784 = vrot.lane.b32.xlu0 %v767, 11
        %v785 = vpop.permute.xlu0 %784
        %vm786 = vcmask 89088
        %v787 = vsel %vm786, %v769, %v771
        %v788 = vsel %vm786, %v771, %v773
        %v789 = vsel %vm786, %v773, %v775
        %v790 = vsel %vm786, %v775, %v777
        %v791 = vsel %vm786, %v777, %v779
        %v792 = vsel %vm786, %v779, %v781
        %v793 = vsel %vm786, %v781, %v783
        %v794 = vsel %vm786, %v783, %v785
        %803 = vst [vmem:[#allocation2 + $0x100] sm:$0xf0] %v787
        %804 = vst [vmem:[#allocation2 + $0x108] sm:$0xf0] %v788
        %805 = vst [vmem:[#allocation2 + $0x110] sm:$0xf0] %v789
        %806 = vst [vmem:[#allocation2 + $0x118] sm:$0xf0] %v790
        %807 = vst [vmem:[#allocation2 + $0x120] sm:$0xf0] %v791
        %808 = vst [vmem:[#allocation2 + $0x128] sm:$0xf0] %v792
        %809 = vst [vmem:[#allocation2 + $0x130] sm:$0xf0] %v793
        %810 = vst.msk [vmem:[#allocation2 + $0x138] sm:$0xf0] %vm354, %v794
        %v811 = vld [vmem:[%s212] sm:$0xff]
        %v812 = vld [vmem:[%s212 + $0x8] sm:$0xff]
        %v813 = vld [vmem:[%s212 + $0x10] sm:$0xff]
        %v814 = vld [vmem:[%s212 + $0x18] sm:$0xff]
        %v815 = vld [vmem:[%s212 + $0x20] sm:$0xf]
        %v821 = vcombine.high %v811, %v811
        %v822 = vcombine.high %v812, %v812
        %v823 = vcombine.high %v813, %v813
        %v824 = vcombine.high %v814, %v814
        %825 = vrot.lane.b32.xlu0 %v811, 10
        %v826 = vpop.permute.xlu0 %825
        %827 = vrot.lane.b32.xlu0 %v821, 10
        %v828 = vpop.permute.xlu0 %827
        %829 = vrot.lane.b32.xlu0 %v812, 10
        %v830 = vpop.permute.xlu0 %829
        %831 = vrot.lane.b32.xlu0 %v822, 10
        %v832 = vpop.permute.xlu0 %831
        %833 = vrot.lane.b32.xlu0 %v813, 10
        %v834 = vpop.permute.xlu0 %833
        %835 = vrot.lane.b32.xlu0 %v823, 10
        %v836 = vpop.permute.xlu0 %835
        %837 = vrot.lane.b32.xlu0 %v814, 10
        %v838 = vpop.permute.xlu0 %837
        %839 = vrot.lane.b32.xlu0 %v824, 10
        %v840 = vpop.permute.xlu0 %839
        %841 = vrot.lane.b32.xlu0 %v815, 10
        %v842 = vpop.permute.xlu0 %841
        %vm843 = vcmask 80896
        %v844 = vsel %vm843, %v826, %v828
        %v845 = vsel %vm843, %v828, %v830
        %v846 = vsel %vm843, %v830, %v832
        %v847 = vsel %vm843, %v832, %v834
        %v848 = vsel %vm843, %v834, %v836
        %v849 = vsel %vm843, %v836, %v838
        %v850 = vsel %vm843, %v838, %v840
        %v851 = vsel %vm843, %v840, %v842
        %860 = vst [vmem:[#allocation2 + $0x140] sm:$0xf] %v844
        %861 = vst [vmem:[#allocation2 + $0x148] sm:$0xf] %v845
        %862 = vst [vmem:[#allocation2 + $0x150] sm:$0xf] %v846
        %863 = vst [vmem:[#allocation2 + $0x158] sm:$0xf] %v847
        %864 = vst [vmem:[#allocation2 + $0x160] sm:$0xf] %v848
        %865 = vst [vmem:[#allocation2 + $0x168] sm:$0xf] %v849
        %866 = vst [vmem:[#allocation2 + $0x170] sm:$0xf] %v850
        %867 = vst.msk [vmem:[#allocation2 + $0x178] sm:$0xf] %vm301, %v851
        %v868 = vld [vmem:[%s212] sm:$0xff]
        %v869 = vld [vmem:[%s212 + $0x8] sm:$0xff]
        %v870 = vld [vmem:[%s212 + $0x10] sm:$0xff]
        %v871 = vld [vmem:[%s212 + $0x18] sm:$0xff]
        %v872 = vld [vmem:[%s212 + $0x20] sm:$0xf]
        %v878 = vcombine.low %v868, %v868
        %v879 = vcombine.low %v869, %v869
        %v880 = vcombine.low %v870, %v870
        %v881 = vcombine.low %v871, %v871
        %v882 = vcombine.low %v872, %v872
        %883 = vrot.lane.b32.xlu0 %v878, 9
        %v884 = vpop.permute.xlu0 %883
        %885 = vrot.lane.b32.xlu0 %v868, 9
        %v886 = vpop.permute.xlu0 %885
        %887 = vrot.lane.b32.xlu0 %v879, 9
        %v888 = vpop.permute.xlu0 %887
        %889 = vrot.lane.b32.xlu0 %v869, 9
        %v890 = vpop.permute.xlu0 %889
        %891 = vrot.lane.b32.xlu0 %v880, 9
        %v892 = vpop.permute.xlu0 %891
        %893 = vrot.lane.b32.xlu0 %v870, 9
        %v894 = vpop.permute.xlu0 %893
        %895 = vrot.lane.b32.xlu0 %v881, 9
        %v896 = vpop.permute.xlu0 %895
        %897 = vrot.lane.b32.xlu0 %v871, 9
        %v898 = vpop.permute.xlu0 %897
        %899 = vrot.lane.b32.xlu0 %v882, 9
        %v900 = vpop.permute.xlu0 %899
        %vm901 = vcmask 72704
        %v902 = vsel %vm901, %v884, %v886
        %v903 = vsel %vm901, %v886, %v888
        %v904 = vsel %vm901, %v888, %v890
        %v905 = vsel %vm901, %v890, %v892
        %v906 = vsel %vm901, %v892, %v894
        %v907 = vsel %vm901, %v894, %v896
        %v908 = vsel %vm901, %v896, %v898
        %v909 = vsel %vm901, %v898, %v900
        %918 = vst [vmem:[#allocation2 + $0x140] sm:$0xf0] %v902
        %919 = vst [vmem:[#allocation2 + $0x148] sm:$0xf0] %v903
        %920 = vst [vmem:[#allocation2 + $0x150] sm:$0xf0] %v904
        %921 = vst [vmem:[#allocation2 + $0x158] sm:$0xf0] %v905
        %922 = vst [vmem:[#allocation2 + $0x160] sm:$0xf0] %v906
        %923 = vst [vmem:[#allocation2 + $0x168] sm:$0xf0] %v907
        %924 = vst [vmem:[#allocation2 + $0x170] sm:$0xf0] %v908
        %925 = vst.msk [vmem:[#allocation2 + $0x178] sm:$0xf0] %vm354, %v909
        %v926 = vld [vmem:[%s212] sm:$0xff]
        %v927 = vld [vmem:[%s212 + $0x8] sm:$0xff]
        %v928 = vld [vmem:[%s212 + $0x10] sm:$0xff]
        %v929 = vld [vmem:[%s212 + $0x18] sm:$0xff]
        %v930 = vld [vmem:[%s212 + $0x20] sm:$0xf]
        %v936 = vcombine.high %v926, %v926
        %v937 = vcombine.high %v927, %v927
        %v938 = vcombine.high %v928, %v928
        %v939 = vcombine.high %v929, %v929
        %940 = vrot.lane.b32.xlu0 %v926, 1
        %v941 = vpop.permute.xlu0 %940
        %942 = vrot.lane.b32.xlu0 %v936, 1
        %v943 = vpop.permute.xlu0 %942
        %944 = vrot.lane.b32.xlu0 %v927, 1
        %v945 = vpop.permute.xlu0 %944
        %946 = vrot.lane.b32.xlu0 %v937, 1
        %v947 = vpop.permute.xlu0 %946
        %948 = vrot.lane.b32.xlu0 %v928, 1
        %v949 = vpop.permute.xlu0 %948
        %950 = vrot.lane.b32.xlu0 %v938, 1
        %v951 = vpop.permute.xlu0 %950
        %952 = vrot.lane.b32.xlu0 %v929, 1
        %v953 = vpop.permute.xlu0 %952
        %954 = vrot.lane.b32.xlu0 %v939, 1
        %v955 = vpop.permute.xlu0 %954
        %956 = vrot.lane.b32.xlu0 %v930, 1
        %v957 = vpop.permute.xlu0 %956
        %vm958 = vcmask 7168
        %v959 = vsel %vm958, %v941, %v943
        %v960 = vsel %vm958, %v943, %v945
        %v961 = vsel %vm958, %v945, %v947
        %v962 = vsel %vm958, %v947, %v949
        %v963 = vsel %vm958, %v949, %v951
        %v964 = vsel %vm958, %v951, %v953
        %v965 = vsel %vm958, %v953, %v955
        %v966 = vsel %vm958, %v955, %v957
        %975 = vst [vmem:[#allocation2 + $0x180] sm:$0xf] %v959
        %976 = vst [vmem:[#allocation2 + $0x188] sm:$0xf] %v960
        %977 = vst [vmem:[#allocation2 + $0x190] sm:$0xf] %v961
        %978 = vst [vmem:[#allocation2 + $0x198] sm:$0xf] %v962
        %979 = vst [vmem:[#allocation2 + $0x1a0] sm:$0xf] %v963
        %980 = vst [vmem:[#allocation2 + $0x1a8] sm:$0xf] %v964
        %981 = vst [vmem:[#allocation2 + $0x1b0] sm:$0xf] %v965
        %982 = vst.msk [vmem:[#allocation2 + $0x1b8] sm:$0xf] %vm301, %v966
        %v983 = vld [vmem:[%s212 + $0x4] sm:$0xff]
        %v984 = vld [vmem:[%s212 + $0xc] sm:$0xff]
        %v985 = vld [vmem:[%s212 + $0x14] sm:$0xff]
        %v986 = vld [vmem:[%s212 + $0x1c] sm:$0xff]
        %v991 = vcombine.low %v983, %v983
        %v992 = vcombine.low %v984, %v984
        %v993 = vcombine.low %v985, %v985
        %v994 = vcombine.low %v986, %v986
        %999 = vst [vmem:[#allocation2 + $0x180] sm:$0xf0] %v991
        %1000 = vst [vmem:[#allocation2 + $0x188] sm:$0xf0] %v983
        %1001 = vst [vmem:[#allocation2 + $0x190] sm:$0xf0] %v992
        %1002 = vst [vmem:[#allocation2 + $0x198] sm:$0xf0] %v984
        %1003 = vst [vmem:[#allocation2 + $0x1a0] sm:$0xf0] %v993
        %1004 = vst [vmem:[#allocation2 + $0x1a8] sm:$0xf0] %v985
        %1005 = vst [vmem:[#allocation2 + $0x1b0] sm:$0xf0] %v994
        %1006 = vst.msk [vmem:[#allocation2 + $0x1b8] sm:$0xf0] %vm354, %v986
        %v1007 = vld [vmem:[%s212 + $0x4] sm:$0xff]
        %v1008 = vld [vmem:[%s212 + $0xc] sm:$0xff]
        %v1009 = vld [vmem:[%s212 + $0x14] sm:$0xff]
        %v1010 = vld [vmem:[%s212 + $0x1c] sm:$0xff]
        %v1015 = vcombine.high %v1007, %v1007
        %v1016 = vcombine.high %v1008, %v1008
        %v1017 = vcombine.high %v1009, %v1009
        %v1018 = vcombine.high %v1010, %v1010
        %1019 = vrot.lane.b32.xlu0 %v1007, 127
        %v1020 = vpop.permute.xlu0 %1019
        %1021 = vrot.lane.b32.xlu0 %v1015, 127
        %v1022 = vpop.permute.xlu0 %1021
        %1023 = vrot.lane.b32.xlu0 %v1008, 127
        %v1024 = vpop.permute.xlu0 %1023
        %1025 = vrot.lane.b32.xlu0 %v1016, 127
        %v1026 = vpop.permute.xlu0 %1025
        %1027 = vrot.lane.b32.xlu0 %v1009, 127
        %v1028 = vpop.permute.xlu0 %1027
        %1029 = vrot.lane.b32.xlu0 %v1017, 127
        %v1030 = vpop.permute.xlu0 %1029
        %1031 = vrot.lane.b32.xlu0 %v1010, 127
        %v1032 = vpop.permute.xlu0 %1031
        %1033 = vrot.lane.b32.xlu0 %v1018, 127
        %v1034 = vpop.permute.xlu0 %1033
        %vm1035 = vcmask 1039360
        %v1036 = vsel %vm1035, %v1020, %v1022
        %v1037 = vsel %vm1035, %v1022, %v1024
        %v1038 = vsel %vm1035, %v1024, %v1026
        %v1039 = vsel %vm1035, %v1026, %v1028
        %v1040 = vsel %vm1035, %v1028, %v1030
        %v1041 = vsel %vm1035, %v1030, %v1032
        %v1042 = vsel %vm1035, %v1032, %v1034
        %1051 = vst [vmem:[#allocation2 + $0x1c0] sm:$0xf] %v1036
        %1052 = vst [vmem:[#allocation2 + $0x1c8] sm:$0xf] %v1037
        %1053 = vst [vmem:[#allocation2 + $0x1d0] sm:$0xf] %v1038
        %1054 = vst [vmem:[#allocation2 + $0x1d8] sm:$0xf] %v1039
        %1055 = vst [vmem:[#allocation2 + $0x1e0] sm:$0xf] %v1040
        %1056 = vst [vmem:[#allocation2 + $0x1e8] sm:$0xf] %v1041
        %1057 = vst [vmem:[#allocation2 + $0x1f0] sm:$0xf] %v1042
        %1058 = vst.msk [vmem:[#allocation2 + $0x1f8] sm:$0xf] %vm301, %v1034
        %v1059 = vld [vmem:[%s212 + $0x4] sm:$0xff]
        %v1060 = vld [vmem:[%s212 + $0xc] sm:$0xff]
        %v1061 = vld [vmem:[%s212 + $0x14] sm:$0xff]
        %v1062 = vld [vmem:[%s212 + $0x1c] sm:$0xff]
        %v1067 = vcombine.low %v1059, %v1059
        %v1068 = vcombine.low %v1060, %v1060
        %v1069 = vcombine.low %v1061, %v1061
        %v1070 = vcombine.low %v1062, %v1062
        %1071 = vrot.lane.b32.xlu0 %v1067, 119
        %v1072 = vpop.permute.xlu0 %1071
        %1073 = vrot.lane.b32.xlu0 %v1059, 119
        %v1074 = vpop.permute.xlu0 %1073
        %1075 = vrot.lane.b32.xlu0 %v1068, 119
        %v1076 = vpop.permute.xlu0 %1075
        %1077 = vrot.lane.b32.xlu0 %v1060, 119
        %v1078 = vpop.permute.xlu0 %1077
        %1079 = vrot.lane.b32.xlu0 %v1069, 119
        %v1080 = vpop.permute.xlu0 %1079
        %1081 = vrot.lane.b32.xlu0 %v1061, 119
        %v1082 = vpop.permute.xlu0 %1081
        %1083 = vrot.lane.b32.xlu0 %v1070, 119
        %v1084 = vpop.permute.xlu0 %1083
        %1085 = vrot.lane.b32.xlu0 %v1062, 119
        %v1086 = vpop.permute.xlu0 %1085
        %vm1087 = vcmask 973824
        %v1088 = vsel %vm1087, %v1072, %v1074
        %v1089 = vsel %vm1087, %v1074, %v1076
        %v1090 = vsel %vm1087, %v1076, %v1078
        %v1091 = vsel %vm1087, %v1078, %v1080
        %v1092 = vsel %vm1087, %v1080, %v1082
        %v1093 = vsel %vm1087, %v1082, %v1084
        %v1094 = vsel %vm1087, %v1084, %v1086
        %1103 = vst [vmem:[#allocation2 + $0x1c0] sm:$0xf0] %v1088
        %1104 = vst [vmem:[#allocation2 + $0x1c8] sm:$0xf0] %v1089
        %1105 = vst [vmem:[#allocation2 + $0x1d0] sm:$0xf0] %v1090
        %1106 = vst [vmem:[#allocation2 + $0x1d8] sm:$0xf0] %v1091
        %1107 = vst [vmem:[#allocation2 + $0x1e0] sm:$0xf0] %v1092
        %1108 = vst [vmem:[#allocation2 + $0x1e8] sm:$0xf0] %v1093
        %1109 = vst [vmem:[#allocation2 + $0x1f0] sm:$0xf0] %v1094
        %1110 = vst.msk [vmem:[#allocation2 + $0x1f8] sm:$0xf0] %vm354, %v1086
        %v1111 = vld [vmem:[%s212 + $0x4] sm:$0xff]
        %v1112 = vld [vmem:[%s212 + $0xc] sm:$0xff]
        %v1113 = vld [vmem:[%s212 + $0x14] sm:$0xff]
        %v1114 = vld [vmem:[%s212 + $0x1c] sm:$0xff]
        %v1119 = vcombine.high %v1111, %v1111
        %v1120 = vcombine.high %v1112, %v1112
        %v1121 = vcombine.high %v1113, %v1113
        %v1122 = vcombine.high %v1114, %v1114
        %1123 = vrot.lane.b32.xlu0 %v1111, 118
        %v1124 = vpop.permute.xlu0 %1123
        %1125 = vrot.lane.b32.xlu0 %v1119, 118
        %v1126 = vpop.permute.xlu0 %1125
        %1127 = vrot.lane.b32.xlu0 %v1112, 118
        %v1128 = vpop.permute.xlu0 %1127
        %1129 = vrot.lane.b32.xlu0 %v1120, 118
        %v1130 = vpop.permute.xlu0 %1129
        %1131 = vrot.lane.b32.xlu0 %v1113, 118
        %v1132 = vpop.permute.xlu0 %1131
        %1133 = vrot.lane.b32.xlu0 %v1121, 118
        %v1134 = vpop.permute.xlu0 %1133
        %1135 = vrot.lane.b32.xlu0 %v1114, 118
        %v1136 = vpop.permute.xlu0 %1135
        %1137 = vrot.lane.b32.xlu0 %v1122, 118
        %v1138 = vpop.permute.xlu0 %1137
        %vm1139 = vcmask 965632
        %v1140 = vsel %vm1139, %v1124, %v1126
        %v1141 = vsel %vm1139, %v1126, %v1128
        %v1142 = vsel %vm1139, %v1128, %v1130
        %v1143 = vsel %vm1139, %v1130, %v1132
        %v1144 = vsel %vm1139, %v1132, %v1134
        %v1145 = vsel %vm1139, %v1134, %v1136
        %v1146 = vsel %vm1139, %v1136, %v1138
        %1155 = vst [vmem:[#allocation2 + $0x200] sm:$0xf] %v1140
        %1156 = vst [vmem:[#allocation2 + $0x208] sm:$0xf] %v1141
        %1157 = vst [vmem:[#allocation2 + $0x210] sm:$0xf] %v1142
        %1158 = vst [vmem:[#allocation2 + $0x218] sm:$0xf] %v1143
        %1159 = vst [vmem:[#allocation2 + $0x220] sm:$0xf] %v1144
        %1160 = vst [vmem:[#allocation2 + $0x228] sm:$0xf] %v1145
        %1161 = vst [vmem:[#allocation2 + $0x230] sm:$0xf] %v1146
        %1162 = vst.msk [vmem:[#allocation2 + $0x238] sm:$0xf] %vm301, %v1138
        %v1163 = vld [vmem:[%s212 + $0x4] sm:$0xff]
        %v1164 = vld [vmem:[%s212 + $0xc] sm:$0xff]
        %v1165 = vld [vmem:[%s212 + $0x14] sm:$0xff]
        %v1166 = vld [vmem:[%s212 + $0x1c] sm:$0xff]
        %v1171 = vcombine.low %v1163, %v1163
        %v1172 = vcombine.low %v1164, %v1164
        %v1173 = vcombine.low %v1165, %v1165
        %v1174 = vcombine.low %v1166, %v1166
        %1175 = vrot.lane.b32.xlu0 %v1171, 117
        %v1176 = vpop.permute.xlu0 %1175
        %1177 = vrot.lane.b32.xlu0 %v1163, 117
        %v1178 = vpop.permute.xlu0 %1177
        %1179 = vrot.lane.b32.xlu0 %v1172, 117
        %v1180 = vpop.permute.xlu0 %1179
        %1181 = vrot.lane.b32.xlu0 %v1164, 117
        %v1182 = vpop.permute.xlu0 %1181
        %1183 = vrot.lane.b32.xlu0 %v1173, 117
        %v1184 = vpop.permute.xlu0 %1183
        %1185 = vrot.lane.b32.xlu0 %v1165, 117
        %v1186 = vpop.permute.xlu0 %1185
        %1187 = vrot.lane.b32.xlu0 %v1174, 117
        %v1188 = vpop.permute.xlu0 %1187
        %1189 = vrot.lane.b32.xlu0 %v1166, 117
        %v1190 = vpop.permute.xlu0 %1189
        %vm1191 = vcmask 957440
        %v1192 = vsel %vm1191, %v1176, %v1178
        %v1193 = vsel %vm1191, %v1178, %v1180
        %v1194 = vsel %vm1191, %v1180, %v1182
        %v1195 = vsel %vm1191, %v1182, %v1184
        %v1196 = vsel %vm1191, %v1184, %v1186
        %v1197 = vsel %vm1191, %v1186, %v1188
        %v1198 = vsel %vm1191, %v1188, %v1190
        %1207 = vst [vmem:[#allocation2 + $0x200] sm:$0xf0] %v1192
        %1208 = vst [vmem:[#allocation2 + $0x208] sm:$0xf0] %v1193
        %1209 = vst [vmem:[#allocation2 + $0x210] sm:$0xf0] %v1194
        %1210 = vst [vmem:[#allocation2 + $0x218] sm:$0xf0] %v1195
        %1211 = vst [vmem:[#allocation2 + $0x220] sm:$0xf0] %v1196
        %1212 = vst [vmem:[#allocation2 + $0x228] sm:$0xf0] %v1197
        %1213 = vst [vmem:[#allocation2 + $0x230] sm:$0xf0] %v1198
        %1214 = vst.msk [vmem:[#allocation2 + $0x238] sm:$0xf0] %vm354, %v1190
        %v1215 = vld [vmem:[%s212 + $0x4] sm:$0xff]
        %v1216 = vld [vmem:[%s212 + $0xc] sm:$0xff]
        %v1217 = vld [vmem:[%s212 + $0x14] sm:$0xff]
        %v1218 = vld [vmem:[%s212 + $0x1c] sm:$0xff]
        %v1219 = vld [vmem:[%s212 + $0x24] sm:$0xf]
        %v1225 = vcombine.high %v1215, %v1215
        %v1226 = vcombine.high %v1216, %v1216
        %v1227 = vcombine.high %v1217, %v1217
        %v1228 = vcombine.high %v1218, %v1218
        %1229 = vrot.lane.b32.xlu0 %v1215, 39
        %v1230 = vpop.permute.xlu0 %1229
        %1231 = vrot.lane.b32.xlu0 %v1225, 39
        %v1232 = vpop.permute.xlu0 %1231
        %1233 = vrot.lane.b32.xlu0 %v1216, 39
        %v1234 = vpop.permute.xlu0 %1233
        %1235 = vrot.lane.b32.xlu0 %v1226, 39
        %v1236 = vpop.permute.xlu0 %1235
        %1237 = vrot.lane.b32.xlu0 %v1217, 39
        %v1238 = vpop.permute.xlu0 %1237
        %1239 = vrot.lane.b32.xlu0 %v1227, 39
        %v1240 = vpop.permute.xlu0 %1239
        %1241 = vrot.lane.b32.xlu0 %v1218, 39
        %v1242 = vpop.permute.xlu0 %1241
        %1243 = vrot.lane.b32.xlu0 %v1228, 39
        %v1244 = vpop.permute.xlu0 %1243
        %1245 = vrot.lane.b32.xlu0 %v1219, 39
        %v1246 = vpop.permute.xlu0 %1245
        %vm1247 = vcmask 318464
        %v1248 = vsel %vm1247, %v1230, %v1232
        %v1249 = vsel %vm1247, %v1232, %v1234
        %v1250 = vsel %vm1247, %v1234, %v1236
        %v1251 = vsel %vm1247, %v1236, %v1238
        %v1252 = vsel %vm1247, %v1238, %v1240
        %v1253 = vsel %vm1247, %v1240, %v1242
        %v1254 = vsel %vm1247, %v1242, %v1244
        %v1255 = vsel %vm1247, %v1244, %v1246
        %1264 = vst [vmem:[#allocation2 + $0x240] sm:$0xf] %v1248
        %1265 = vst [vmem:[#allocation2 + $0x248] sm:$0xf] %v1249
        %1266 = vst [vmem:[#allocation2 + $0x250] sm:$0xf] %v1250
        %1267 = vst [vmem:[#allocation2 + $0x258] sm:$0xf] %v1251
        %1268 = vst [vmem:[#allocation2 + $0x260] sm:$0xf] %v1252
        %1269 = vst [vmem:[#allocation2 + $0x268] sm:$0xf] %v1253
        %1270 = vst [vmem:[#allocation2 + $0x270] sm:$0xf] %v1254
        %1271 = vst.msk [vmem:[#allocation2 + $0x278] sm:$0xf] %vm301, %v1255
        %v1272 = vld [vmem:[%s212 + $0x4] sm:$0xff]
        %v1273 = vld [vmem:[%s212 + $0xc] sm:$0xff]
        %v1274 = vld [vmem:[%s212 + $0x14] sm:$0xff]
        %v1275 = vld [vmem:[%s212 + $0x1c] sm:$0xff]
        %v1276 = vld [vmem:[%s212 + $0x24] sm:$0xf]
        %v1282 = vcombine.low %v1272, %v1272
        %v1283 = vcombine.low %v1273, %v1273
        %v1284 = vcombine.low %v1274, %v1274
        %v1285 = vcombine.low %v1275, %v1275
        %v1286 = vcombine.low %v1276, %v1276
        %1287 = vrot.lane.b32.xlu0 %v1282, 38
        %v1288 = vpop.permute.xlu0 %1287
        %1289 = vrot.lane.b32.xlu0 %v1272, 38
        %v1290 = vpop.permute.xlu0 %1289
        %1291 = vrot.lane.b32.xlu0 %v1283, 38
        %v1292 = vpop.permute.xlu0 %1291
        %1293 = vrot.lane.b32.xlu0 %v1273, 38
        %v1294 = vpop.permute.xlu0 %1293
        %1295 = vrot.lane.b32.xlu0 %v1284, 38
        %v1296 = vpop.permute.xlu0 %1295
        %1297 = vrot.lane.b32.xlu0 %v1274, 38
        %v1298 = vpop.permute.xlu0 %1297
        %1299 = vrot.lane.b32.xlu0 %v1285, 38
        %v1300 = vpop.permute.xlu0 %1299
        %1301 = vrot.lane.b32.xlu0 %v1275, 38
        %v1302 = vpop.permute.xlu0 %1301
        %1303 = vrot.lane.b32.xlu0 %v1286, 38
        %v1304 = vpop.permute.xlu0 %1303
        %vm1305 = vcmask 310272
        %v1306 = vsel %vm1305, %v1288, %v1290
        %v1307 = vsel %vm1305, %v1290, %v1292
        %v1308 = vsel %vm1305, %v1292, %v1294
        %v1309 = vsel %vm1305, %v1294, %v1296
        %v1310 = vsel %vm1305, %v1296, %v1298
        %v1311 = vsel %vm1305, %v1298, %v1300
        %v1312 = vsel %vm1305, %v1300, %v1302
        %v1313 = vsel %vm1305, %v1302, %v1304
        %1322 = vst [vmem:[#allocation2 + $0x240] sm:$0xf0] %v1306
        %1323 = vst [vmem:[#allocation2 + $0x248] sm:$0xf0] %v1307
        %1324 = vst [vmem:[#allocation2 + $0x250] sm:$0xf0] %v1308
        %1325 = vst [vmem:[#allocation2 + $0x258] sm:$0xf0] %v1309
        %1326 = vst [vmem:[#allocation2 + $0x260] sm:$0xf0] %v1310
        %1327 = vst [vmem:[#allocation2 + $0x268] sm:$0xf0] %v1311
        %1328 = vst [vmem:[#allocation2 + $0x270] sm:$0xf0] %v1312
        %1329 = vst.msk [vmem:[#allocation2 + $0x278] sm:$0xf0] %vm354, %v1313
        %v1330 = vld [vmem:[%s212 + $0x4] sm:$0xff]
        %v1331 = vld [vmem:[%s212 + $0xc] sm:$0xff]
        %v1332 = vld [vmem:[%s212 + $0x14] sm:$0xff]
        %v1333 = vld [vmem:[%s212 + $0x1c] sm:$0xff]
        %v1334 = vld [vmem:[%s212 + $0x24] sm:$0xf]
        %v1340 = vcombine.high %v1330, %v1330
        %v1341 = vcombine.high %v1331, %v1331
        %v1342 = vcombine.high %v1332, %v1332
        %v1343 = vcombine.high %v1333, %v1333
        %1344 = vrot.lane.b32.xlu0 %v1330, 37
        %v1345 = vpop.permute.xlu0 %1344
        %1346 = vrot.lane.b32.xlu0 %v1340, 37
        %v1347 = vpop.permute.xlu0 %1346
        %1348 = vrot.lane.b32.xlu0 %v1331, 37
        %v1349 = vpop.permute.xlu0 %1348
        %1350 = vrot.lane.b32.xlu0 %v1341, 37
        %v1351 = vpop.permute.xlu0 %1350
        %1352 = vrot.lane.b32.xlu0 %v1332, 37
        %v1353 = vpop.permute.xlu0 %1352
        %1354 = vrot.lane.b32.xlu0 %v1342, 37
        %v1355 = vpop.permute.xlu0 %1354
        %1356 = vrot.lane.b32.xlu0 %v1333, 37
        %v1357 = vpop.permute.xlu0 %1356
        %1358 = vrot.lane.b32.xlu0 %v1343, 37
        %v1359 = vpop.permute.xlu0 %1358
        %1360 = vrot.lane.b32.xlu0 %v1334, 37
        %v1361 = vpop.permute.xlu0 %1360
        %vm1362 = vcmask 302080
        %v1363 = vsel %vm1362, %v1345, %v1347
        %v1364 = vsel %vm1362, %v1347, %v1349
        %v1365 = vsel %vm1362, %v1349, %v1351
        %v1366 = vsel %vm1362, %v1351, %v1353
        %v1367 = vsel %vm1362, %v1353, %v1355
        %v1368 = vsel %vm1362, %v1355, %v1357
        %v1369 = vsel %vm1362, %v1357, %v1359
        %v1370 = vsel %vm1362, %v1359, %v1361
        %1379 = vst [vmem:[#allocation2 + $0x280] sm:$0xf] %v1363
        %1380 = vst [vmem:[#allocation2 + $0x288] sm:$0xf] %v1364
        %1381 = vst [vmem:[#allocation2 + $0x290] sm:$0xf] %v1365
        %1382 = vst [vmem:[#allocation2 + $0x298] sm:$0xf] %v1366
        %1383 = vst [vmem:[#allocation2 + $0x2a0] sm:$0xf] %v1367
        %1384 = vst [vmem:[#allocation2 + $0x2a8] sm:$0xf] %v1368
        %1385 = vst [vmem:[#allocation2 + $0x2b0] sm:$0xf] %v1369
        %1386 = vst.msk [vmem:[#allocation2 + $0x2b8] sm:$0xf] %vm301, %v1370
        %v1387 = vld [vmem:[%s212 + $0x4] sm:$0xff]
        %v1388 = vld [vmem:[%s212 + $0xc] sm:$0xff]
        %v1389 = vld [vmem:[%s212 + $0x14] sm:$0xff]
        %v1390 = vld [vmem:[%s212 + $0x1c] sm:$0xff]
        %v1391 = vld [vmem:[%s212 + $0x24] sm:$0xf]
        %v1397 = vcombine.low %v1387, %v1387
        %v1398 = vcombine.low %v1388, %v1388
        %v1399 = vcombine.low %v1389, %v1389
        %v1400 = vcombine.low %v1390, %v1390
        %v1401 = vcombine.low %v1391, %v1391
        %1402 = vrot.lane.b32.xlu0 %v1397, 29
        %v1403 = vpop.permute.xlu0 %1402
        %1404 = vrot.lane.b32.xlu0 %v1387, 29
        %v1405 = vpop.permute.xlu0 %1404
        %1406 = vrot.lane.b32.xlu0 %v1398, 29
        %v1407 = vpop.permute.xlu0 %1406
        %1408 = vrot.lane.b32.xlu0 %v1388, 29
        %v1409 = vpop.permute.xlu0 %1408
        %1410 = vrot.lane.b32.xlu0 %v1399, 29
        %v1411 = vpop.permute.xlu0 %1410
        %1412 = vrot.lane.b32.xlu0 %v1389, 29
        %v1413 = vpop.permute.xlu0 %1412
        %1414 = vrot.lane.b32.xlu0 %v1400, 29
        %v1415 = vpop.permute.xlu0 %1414
        %1416 = vrot.lane.b32.xlu0 %v1390, 29
        %v1417 = vpop.permute.xlu0 %1416
        %1418 = vrot.lane.b32.xlu0 %v1401, 29
        %v1419 = vpop.permute.xlu0 %1418
        %vm1420 = vcmask 236544
        %v1421 = vsel %vm1420, %v1403, %v1405
        %v1422 = vsel %vm1420, %v1405, %v1407
        %v1423 = vsel %vm1420, %v1407, %v1409
        %v1424 = vsel %vm1420, %v1409, %v1411
        %v1425 = vsel %vm1420, %v1411, %v1413
        %v1426 = vsel %vm1420, %v1413, %v1415
        %v1427 = vsel %vm1420, %v1415, %v1417
        %v1428 = vsel %vm1420, %v1417, %v1419
        %1437 = vst [vmem:[#allocation2 + $0x280] sm:$0xf0] %v1421
        %1438 = vst [vmem:[#allocation2 + $0x288] sm:$0xf0] %v1422
        %1439 = vst [vmem:[#allocation2 + $0x290] sm:$0xf0] %v1423
        %1440 = vst [vmem:[#allocation2 + $0x298] sm:$0xf0] %v1424
        %1441 = vst [vmem:[#allocation2 + $0x2a0] sm:$0xf0] %v1425
        %1442 = vst [vmem:[#allocation2 + $0x2a8] sm:$0xf0] %v1426
        %1443 = vst [vmem:[#allocation2 + $0x2b0] sm:$0xf0] %v1427
        %1444 = vst.msk [vmem:[#allocation2 + $0x2b8] sm:$0xf0] %vm354, %v1428
        %v1445 = vld [vmem:[%s212 + $0x4] sm:$0xff]
        %v1446 = vld [vmem:[%s212 + $0xc] sm:$0xff]
        %v1447 = vld [vmem:[%s212 + $0x14] sm:$0xff]
        %v1448 = vld [vmem:[%s212 + $0x1c] sm:$0xff]
        %v1449 = vld [vmem:[%s212 + $0x24] sm:$0xf]
        %v1455 = vcombine.high %v1445, %v1445
        %v1456 = vcombine.high %v1446, %v1446
        %v1457 = vcombine.high %v1447, %v1447
        %v1458 = vcombine.high %v1448, %v1448
        %1459 = vrot.lane.b32.xlu0 %v1445, 28
        %v1460 = vpop.permute.xlu0 %1459
        %1461 = vrot.lane.b32.xlu0 %v1455, 28
        %v1462 = vpop.permute.xlu0 %1461
        %1463 = vrot.lane.b32.xlu0 %v1446, 28
        %v1464 = vpop.permute.xlu0 %1463
        %1465 = vrot.lane.b32.xlu0 %v1456, 28
        %v1466 = vpop.permute.xlu0 %1465
        %1467 = vrot.lane.b32.xlu0 %v1447, 28
        %v1468 = vpop.permute.xlu0 %1467
        %1469 = vrot.lane.b32.xlu0 %v1457, 28
        %v1470 = vpop.permute.xlu0 %1469
        %1471 = vrot.lane.b32.xlu0 %v1448, 28
        %v1472 = vpop.permute.xlu0 %1471
        %1473 = vrot.lane.b32.xlu0 %v1458, 28
        %v1474 = vpop.permute.xlu0 %1473
        %1475 = vrot.lane.b32.xlu0 %v1449, 28
        %v1476 = vpop.permute.xlu0 %1475
        %vm1477 = vcmask 228352
        %v1478 = vsel %vm1477, %v1460, %v1462
        %v1479 = vsel %vm1477, %v1462, %v1464
        %v1480 = vsel %vm1477, %v1464, %v1466
        %v1481 = vsel %vm1477, %v1466, %v1468
        %v1482 = vsel %vm1477, %v1468, %v1470
        %v1483 = vsel %vm1477, %v1470, %v1472
        %v1484 = vsel %vm1477, %v1472, %v1474
        %v1485 = vsel %vm1477, %v1474, %v1476
        %1494 = vst [vmem:[#allocation2 + $0x2c0] sm:$0xf] %v1478
        %1495 = vst [vmem:[#allocation2 + $0x2c8] sm:$0xf] %v1479
        %1496 = vst [vmem:[#allocation2 + $0x2d0] sm:$0xf] %v1480
        %1497 = vst [vmem:[#allocation2 + $0x2d8] sm:$0xf] %v1481
        %1498 = vst [vmem:[#allocation2 + $0x2e0] sm:$0xf] %v1482
        %1499 = vst [vmem:[#allocation2 + $0x2e8] sm:$0xf] %v1483
        %1500 = vst [vmem:[#allocation2 + $0x2f0] sm:$0xf] %v1484
        %1501 = vst.msk [vmem:[#allocation2 + $0x2f8] sm:$0xf] %vm301, %v1485
        %v1502 = vld [vmem:[%s212 + $0x4] sm:$0xff]
        %v1503 = vld [vmem:[%s212 + $0xc] sm:$0xff]
        %v1504 = vld [vmem:[%s212 + $0x14] sm:$0xff]
        %v1505 = vld [vmem:[%s212 + $0x1c] sm:$0xff]
        %v1506 = vld [vmem:[%s212 + $0x24] sm:$0xf]
        %v1512 = vcombine.low %v1502, %v1502
        %v1513 = vcombine.low %v1503, %v1503
        %v1514 = vcombine.low %v1504, %v1504
        %v1515 = vcombine.low %v1505, %v1505
        %v1516 = vcombine.low %v1506, %v1506
        %1517 = vrot.lane.b32.xlu0 %v1512, 27
        %v1518 = vpop.permute.xlu0 %1517
        %1519 = vrot.lane.b32.xlu0 %v1502, 27
        %v1520 = vpop.permute.xlu0 %1519
        %1521 = vrot.lane.b32.xlu0 %v1513, 27
        %v1522 = vpop.permute.xlu0 %1521
        %1523 = vrot.lane.b32.xlu0 %v1503, 27
        %v1524 = vpop.permute.xlu0 %1523
        %1525 = vrot.lane.b32.xlu0 %v1514, 27
        %v1526 = vpop.permute.xlu0 %1525
        %1527 = vrot.lane.b32.xlu0 %v1504, 27
        %v1528 = vpop.permute.xlu0 %1527
        %1529 = vrot.lane.b32.xlu0 %v1515, 27
        %v1530 = vpop.permute.xlu0 %1529
        %1531 = vrot.lane.b32.xlu0 %v1505, 27
        %v1532 = vpop.permute.xlu0 %1531
        %1533 = vrot.lane.b32.xlu0 %v1516, 27
        %v1534 = vpop.permute.xlu0 %1533
        %vm1535 = vcmask 220160
        %v1536 = vsel %vm1535, %v1518, %v1520
        %v1537 = vsel %vm1535, %v1520, %v1522
        %v1538 = vsel %vm1535, %v1522, %v1524
        %v1539 = vsel %vm1535, %v1524, %v1526
        %v1540 = vsel %vm1535, %v1526, %v1528
        %v1541 = vsel %vm1535, %v1528, %v1530
        %v1542 = vsel %vm1535, %v1530, %v1532
        %v1543 = vsel %vm1535, %v1532, %v1534
        %1552 = vst [vmem:[#allocation2 + $0x2c0] sm:$0xf0] %v1536
        %1553 = vst [vmem:[#allocation2 + $0x2c8] sm:$0xf0] %v1537
        %1554 = vst [vmem:[#allocation2 + $0x2d0] sm:$0xf0] %v1538
        %1555 = vst [vmem:[#allocation2 + $0x2d8] sm:$0xf0] %v1539
        %1556 = vst [vmem:[#allocation2 + $0x2e0] sm:$0xf0] %v1540
        %1557 = vst [vmem:[#allocation2 + $0x2e8] sm:$0xf0] %v1541
        %1558 = vst [vmem:[#allocation2 + $0x2f0] sm:$0xf0] %v1542
        %1559 = vst.msk [vmem:[#allocation2 + $0x2f8] sm:$0xf0] %vm354, %v1543
        %v1560 = vld [vmem:[%s212 + $0x4] sm:$0xff]
        %v1561 = vld [vmem:[%s212 + $0xc] sm:$0xff]
        %v1562 = vld [vmem:[%s212 + $0x14] sm:$0xff]
        %v1563 = vld [vmem:[%s212 + $0x1c] sm:$0xff]
        %v1564 = vld [vmem:[%s212 + $0x24] sm:$0xf]
        %v1570 = vcombine.high %v1560, %v1560
        %v1571 = vcombine.high %v1561, %v1561
        %v1572 = vcombine.high %v1562, %v1562
        %v1573 = vcombine.high %v1563, %v1563
        %1574 = vrot.lane.b32.xlu0 %v1560, 19
        %v1575 = vpop.permute.xlu0 %1574
        %1576 = vrot.lane.b32.xlu0 %v1570, 19
        %v1577 = vpop.permute.xlu0 %1576
        %1578 = vrot.lane.b32.xlu0 %v1561, 19
        %v1579 = vpop.permute.xlu0 %1578
        %1580 = vrot.lane.b32.xlu0 %v1571, 19
        %v1581 = vpop.permute.xlu0 %1580
        %1582 = vrot.lane.b32.xlu0 %v1562, 19
        %v1583 = vpop.permute.xlu0 %1582
        %1584 = vrot.lane.b32.xlu0 %v1572, 19
        %v1585 = vpop.permute.xlu0 %1584
        %1586 = vrot.lane.b32.xlu0 %v1563, 19
        %v1587 = vpop.permute.xlu0 %1586
        %1588 = vrot.lane.b32.xlu0 %v1573, 19
        %v1589 = vpop.permute.xlu0 %1588
        %1590 = vrot.lane.b32.xlu0 %v1564, 19
        %v1591 = vpop.permute.xlu0 %1590
        %vm1592 = vcmask 154624
        %v1593 = vsel %vm1592, %v1575, %v1577
        %v1594 = vsel %vm1592, %v1577, %v1579
        %v1595 = vsel %vm1592, %v1579, %v1581
        %v1596 = vsel %vm1592, %v1581, %v1583
        %v1597 = vsel %vm1592, %v1583, %v1585
        %v1598 = vsel %vm1592, %v1585, %v1587
        %v1599 = vsel %vm1592, %v1587, %v1589
        %v1600 = vsel %vm1592, %v1589, %v1591
        %1609 = vst [vmem:[#allocation2 + $0x300] sm:$0xf] %v1593
        %1610 = vst [vmem:[#allocation2 + $0x308] sm:$0xf] %v1594
        %1611 = vst [vmem:[#allocation2 + $0x310] sm:$0xf] %v1595
        %1612 = vst [vmem:[#allocation2 + $0x318] sm:$0xf] %v1596
        %1613 = vst [vmem:[#allocation2 + $0x320] sm:$0xf] %v1597
        %1614 = vst [vmem:[#allocation2 + $0x328] sm:$0xf] %v1598
        %1615 = vst [vmem:[#allocation2 + $0x330] sm:$0xf] %v1599
        %1616 = vst.msk [vmem:[#allocation2 + $0x338] sm:$0xf] %vm301, %v1600
        %v1617 = vld [vmem:[%s212 + $0x4] sm:$0xff]
        %v1618 = vld [vmem:[%s212 + $0xc] sm:$0xff]
        %v1619 = vld [vmem:[%s212 + $0x14] sm:$0xff]
        %v1620 = vld [vmem:[%s212 + $0x1c] sm:$0xff]
        %v1621 = vld [vmem:[%s212 + $0x24] sm:$0xf]
        %v1627 = vcombine.low %v1617, %v1617
        %v1628 = vcombine.low %v1618, %v1618
        %v1629 = vcombine.low %v1619, %v1619
        %v1630 = vcombine.low %v1620, %v1620
        %v1631 = vcombine.low %v1621, %v1621
        %1632 = vrot.lane.b32.xlu0 %v1627, 18
        %v1633 = vpop.permute.xlu0 %1632
        %1634 = vrot.lane.b32.xlu0 %v1617, 18
        %v1635 = vpop.permute.xlu0 %1634
        %1636 = vrot.lane.b32.xlu0 %v1628, 18
        %v1637 = vpop.permute.xlu0 %1636
        %1638 = vrot.lane.b32.xlu0 %v1618, 18
        %v1639 = vpop.permute.xlu0 %1638
        %1640 = vrot.lane.b32.xlu0 %v1629, 18
        %v1641 = vpop.permute.xlu0 %1640
        %1642 = vrot.lane.b32.xlu0 %v1619, 18
        %v1643 = vpop.permute.xlu0 %1642
        %1644 = vrot.lane.b32.xlu0 %v1630, 18
        %v1645 = vpop.permute.xlu0 %1644
        %1646 = vrot.lane.b32.xlu0 %v1620, 18
        %v1647 = vpop.permute.xlu0 %1646
        %1648 = vrot.lane.b32.xlu0 %v1631, 18
        %v1649 = vpop.permute.xlu0 %1648
        %vm1650 = vcmask 146432
        %v1651 = vsel %vm1650, %v1633, %v1635
        %v1652 = vsel %vm1650, %v1635, %v1637
        %v1653 = vsel %vm1650, %v1637, %v1639
        %v1654 = vsel %vm1650, %v1639, %v1641
        %v1655 = vsel %vm1650, %v1641, %v1643
        %v1656 = vsel %vm1650, %v1643, %v1645
        %v1657 = vsel %vm1650, %v1645, %v1647
        %v1658 = vsel %vm1650, %v1647, %v1649
        %1667 = vst [vmem:[#allocation2 + $0x300] sm:$0xf0] %v1651
        %1668 = vst [vmem:[#allocation2 + $0x308] sm:$0xf0] %v1652
        %1669 = vst [vmem:[#allocation2 + $0x310] sm:$0xf0] %v1653
        %1670 = vst [vmem:[#allocation2 + $0x318] sm:$0xf0] %v1654
        %1671 = vst [vmem:[#allocation2 + $0x320] sm:$0xf0] %v1655
        %1672 = vst [vmem:[#allocation2 + $0x328] sm:$0xf0] %v1656
        %1673 = vst [vmem:[#allocation2 + $0x330] sm:$0xf0] %v1657
        %1674 = vst.msk [vmem:[#allocation2 + $0x338] sm:$0xf0] %vm354, %v1658
        %v1675 = vld [vmem:[%s212 + $0x4] sm:$0xff]
        %v1676 = vld [vmem:[%s212 + $0xc] sm:$0xff]
        %v1677 = vld [vmem:[%s212 + $0x14] sm:$0xff]
        %v1678 = vld [vmem:[%s212 + $0x1c] sm:$0xff]
        %v1679 = vld [vmem:[%s212 + $0x24] sm:$0xf]
        %v1685 = vcombine.high %v1675, %v1675
        %v1686 = vcombine.high %v1676, %v1676
        %v1687 = vcombine.high %v1677, %v1677
        %v1688 = vcombine.high %v1678, %v1678
        %1689 = vrot.lane.b32.xlu0 %v1675, 17
        %v1690 = vpop.permute.xlu0 %1689
        %1691 = vrot.lane.b32.xlu0 %v1685, 17
        %v1692 = vpop.permute.xlu0 %1691
        %1693 = vrot.lane.b32.xlu0 %v1676, 17
        %v1694 = vpop.permute.xlu0 %1693
        %1695 = vrot.lane.b32.xlu0 %v1686, 17
        %v1696 = vpop.permute.xlu0 %1695
        %1697 = vrot.lane.b32.xlu0 %v1677, 17
        %v1698 = vpop.permute.xlu0 %1697
        %1699 = vrot.lane.b32.xlu0 %v1687, 17
        %v1700 = vpop.permute.xlu0 %1699
        %1701 = vrot.lane.b32.xlu0 %v1678, 17
        %v1702 = vpop.permute.xlu0 %1701
        %1703 = vrot.lane.b32.xlu0 %v1688, 17
        %v1704 = vpop.permute.xlu0 %1703
        %1705 = vrot.lane.b32.xlu0 %v1679, 17
        %v1706 = vpop.permute.xlu0 %1705
        %vm1707 = vcmask 138240
        %v1708 = vsel %vm1707, %v1690, %v1692
        %v1709 = vsel %vm1707, %v1692, %v1694
        %v1710 = vsel %vm1707, %v1694, %v1696
        %v1711 = vsel %vm1707, %v1696, %v1698
        %v1712 = vsel %vm1707, %v1698, %v1700
        %v1713 = vsel %vm1707, %v1700, %v1702
        %v1714 = vsel %vm1707, %v1702, %v1704
        %v1715 = vsel %vm1707, %v1704, %v1706
        %1724 = vst [vmem:[#allocation2 + $0x340] sm:$0xf] %v1708
        %1725 = vst [vmem:[#allocation2 + $0x348] sm:$0xf] %v1709
        %1726 = vst [vmem:[#allocation2 + $0x350] sm:$0xf] %v1710
        %1727 = vst [vmem:[#allocation2 + $0x358] sm:$0xf] %v1711
        %1728 = vst [vmem:[#allocation2 + $0x360] sm:$0xf] %v1712
        %1729 = vst [vmem:[#allocation2 + $0x368] sm:$0xf] %v1713
        %1730 = vst [vmem:[#allocation2 + $0x370] sm:$0xf] %v1714
        %1731 = vst.msk [vmem:[#allocation2 + $0x378] sm:$0xf] %vm301, %v1715
        %v1732 = vld [vmem:[#allocation8] sm:$0xff]
        %v1733 = vld [vmem:[#allocation2] sm:$0xff]
        %v1734 = vld [vmem:[#allocation2 + $0x8] sm:$0xff]
        %v1735 = vld [vmem:[#allocation2 + $0x10] sm:$0xff]
        %v1736 = vld [vmem:[#allocation2 + $0x18] sm:$0xff]
        %v1737 = vld [vmem:[#allocation2 + $0x20] sm:$0xff]
        %v1738 = vld [vmem:[#allocation2 + $0x28] sm:$0xff]
        %v1739 = vld [vmem:[#allocation2 + $0x30] sm:$0xff]
        %v1740 = vld [vmem:[#allocation2 + $0x38] sm:$0xff]
        %v1741 = vld [vmem:[#allocation2 + $0x40] sm:$0xff]
        %v1742 = vld [vmem:[#allocation2 + $0x48] sm:$0xff]
        %v1743 = vld [vmem:[#allocation2 + $0x50] sm:$0xff]
        %v1744 = vld [vmem:[#allocation2 + $0x58] sm:$0xff]
        %v1745 = vld [vmem:[#allocation2 + $0x60] sm:$0xff]
        %v1746 = vld [vmem:[#allocation2 + $0x68] sm:$0xff]
        %v1747 = vld [vmem:[#allocation2 + $0x70] sm:$0xff]
        %v1748 = vld [vmem:[#allocation2 + $0x78] sm:$0xff]
        %v1749 = vld [vmem:[#allocation2 + $0x80] sm:$0xff]
        %v1750 = vld [vmem:[#allocation2 + $0x88] sm:$0xff]
        %v1751 = vld [vmem:[#allocation2 + $0x90] sm:$0xff]
        %v1752 = vld [vmem:[#allocation2 + $0x98] sm:$0xff]
        %v1753 = vld [vmem:[#allocation2 + $0xa0] sm:$0xff]
        %v1754 = vld [vmem:[#allocation2 + $0xa8] sm:$0xff]
        %v1755 = vld [vmem:[#allocation2 + $0xb0] sm:$0xff]
        %v1756 = vld [vmem:[#allocation2 + $0xb8] sm:$0xff]
        %v1757 = vld [vmem:[#allocation2 + $0xc0] sm:$0xff]
        %v1758 = vld [vmem:[#allocation2 + $0xc8] sm:$0xff]
        %v1759 = vld [vmem:[#allocation2 + $0xd0] sm:$0xff]
        %v1760 = vld [vmem:[#allocation2 + $0xd8] sm:$0xff]
        %v1761 = vld [vmem:[#allocation2 + $0xe0] sm:$0xff]
        %v1762 = vld [vmem:[#allocation2 + $0xe8] sm:$0xff]
        %v1763 = vld [vmem:[#allocation2 + $0xf0] sm:$0xff]
        %v1764 = vld [vmem:[#allocation2 + $0xf8] sm:$0xff]
        %v1765 = vld [vmem:[#allocation2 + $0x100] sm:$0xff]
        %v1766 = vld [vmem:[#allocation2 + $0x108] sm:$0xff]
        %v1767 = vld [vmem:[#allocation2 + $0x110] sm:$0xff]
        %v1768 = vld [vmem:[#allocation2 + $0x118] sm:$0xff]
        %v1769 = vld [vmem:[#allocation2 + $0x120] sm:$0xff]
        %v1770 = vld [vmem:[#allocation2 + $0x128] sm:$0xff]
        %v1771 = vld [vmem:[#allocation2 + $0x130] sm:$0xff]
        %v1772 = vld [vmem:[#allocation2 + $0x138] sm:$0xff]
        %v1773 = vld [vmem:[#allocation2 + $0x140] sm:$0xff]
        %v1774 = vld [vmem:[#allocation2 + $0x148] sm:$0xff]
        %v1775 = vld [vmem:[#allocation2 + $0x150] sm:$0xff]
        %v1776 = vld [vmem:[#allocation2 + $0x158] sm:$0xff]
        %v1777 = vld [vmem:[#allocation2 + $0x160] sm:$0xff]
        %v1778 = vld [vmem:[#allocation2 + $0x168] sm:$0xff]
        %v1779 = vld [vmem:[#allocation2 + $0x170] sm:$0xff]
        %v1780 = vld [vmem:[#allocation2 + $0x178] sm:$0xff]
        %v1781 = vld [vmem:[#allocation2 + $0x180] sm:$0xff]
        %v1782 = vld [vmem:[#allocation2 + $0x188] sm:$0xff]
        %v1783 = vld [vmem:[#allocation2 + $0x190] sm:$0xff]
        %v1784 = vld [vmem:[#allocation2 + $0x198] sm:$0xff]
        %v1785 = vld [vmem:[#allocation2 + $0x1a0] sm:$0xff]
        %v1786 = vld [vmem:[#allocation2 + $0x1a8] sm:$0xff]
        %v1787 = vld [vmem:[#allocation2 + $0x1b0] sm:$0xff]
        %v1788 = vld [vmem:[#allocation2 + $0x1b8] sm:$0xff]
        %v1789 = vld [vmem:[#allocation2 + $0x1c0] sm:$0xff]
        %v1790 = vld [vmem:[#allocation2 + $0x1c8] sm:$0xff]
        %v1791 = vld [vmem:[#allocation2 + $0x1d0] sm:$0xff]
        %v1792 = vld [vmem:[#allocation2 + $0x1d8] sm:$0xff]
        %v1793 = vld [vmem:[#allocation2 + $0x1e0] sm:$0xff]
        %v1794 = vld [vmem:[#allocation2 + $0x1e8] sm:$0xff]
        %v1795 = vld [vmem:[#allocation2 + $0x1f0] sm:$0xff]
        %v1796 = vld [vmem:[#allocation2 + $0x1f8] sm:$0xff]
        %v1797 = vld [vmem:[#allocation2 + $0x200] sm:$0xff]
        %v1798 = vld [vmem:[#allocation2 + $0x208] sm:$0xff]
        %v1799 = vld [vmem:[#allocation2 + $0x210] sm:$0xff]
        %v1800 = vld [vmem:[#allocation2 + $0x218] sm:$0xff]
        %v1801 = vld [vmem:[#allocation2 + $0x220] sm:$0xff]
        %v1802 = vld [vmem:[#allocation2 + $0x228] sm:$0xff]
        %v1803 = vld [vmem:[#allocation2 + $0x230] sm:$0xff]
        %v1804 = vld [vmem:[#allocation2 + $0x238] sm:$0xff]
        %v1805 = vld [vmem:[#allocation2 + $0x240] sm:$0xff]
        %v1806 = vld [vmem:[#allocation2 + $0x248] sm:$0xff]
        %v1807 = vld [vmem:[#allocation2 + $0x250] sm:$0xff]
        %v1808 = vld [vmem:[#allocation2 + $0x258] sm:$0xff]
        %v1809 = vld [vmem:[#allocation2 + $0x260] sm:$0xff]
        %v1810 = vld [vmem:[#allocation2 + $0x268] sm:$0xff]
        %v1811 = vld [vmem:[#allocation2 + $0x270] sm:$0xff]
        %v1812 = vld [vmem:[#allocation2 + $0x278] sm:$0xff]
        %v1813 = vld [vmem:[#allocation2 + $0x280] sm:$0xff]
        %v1814 = vld [vmem:[#allocation2 + $0x288] sm:$0xff]
        %v1815 = vld [vmem:[#allocation2 + $0x290] sm:$0xff]
        %v1816 = vld [vmem:[#allocation2 + $0x298] sm:$0xff]
        %v1817 = vld [vmem:[#allocation2 + $0x2a0] sm:$0xff]
        %v1818 = vld [vmem:[#allocation2 + $0x2a8] sm:$0xff]
        %v1819 = vld [vmem:[#allocation2 + $0x2b0] sm:$0xff]
        %v1820 = vld [vmem:[#allocation2 + $0x2b8] sm:$0xff]
        %v1821 = vld [vmem:[#allocation2 + $0x2c0] sm:$0xff]
        %v1822 = vld [vmem:[#allocation2 + $0x2c8] sm:$0xff]
        %v1823 = vld [vmem:[#allocation2 + $0x2d0] sm:$0xff]
        %v1824 = vld [vmem:[#allocation2 + $0x2d8] sm:$0xff]
        %v1825 = vld [vmem:[#allocation2 + $0x2e0] sm:$0xff]
        %v1826 = vld [vmem:[#allocation2 + $0x2e8] sm:$0xff]
        %v1827 = vld [vmem:[#allocation2 + $0x2f0] sm:$0xff]
        %v1828 = vld [vmem:[#allocation2 + $0x2f8] sm:$0xff]
        %v1829 = vld [vmem:[#allocation2 + $0x300] sm:$0xff]
        %v1830 = vld [vmem:[#allocation2 + $0x308] sm:$0xff]
        %v1831 = vld [vmem:[#allocation2 + $0x310] sm:$0xff]
        %v1832 = vld [vmem:[#allocation2 + $0x318] sm:$0xff]
        %v1833 = vld [vmem:[#allocation2 + $0x320] sm:$0xff]
        %v1834 = vld [vmem:[#allocation2 + $0x328] sm:$0xff]
        %v1835 = vld [vmem:[#allocation2 + $0x330] sm:$0xff]
        %v1836 = vld [vmem:[#allocation2 + $0x338] sm:$0xff]
        %v1837 = vld [vmem:[#allocation2 + $0x340] sm:$0xf]
        %v1838 = vld [vmem:[#allocation2 + $0x348] sm:$0xf]
        %v1839 = vld [vmem:[#allocation2 + $0x350] sm:$0xf]
        %v1840 = vld [vmem:[#allocation2 + $0x358] sm:$0xf]
        %v1841 = vld [vmem:[#allocation2 + $0x360] sm:$0xf]
        %v1842 = vld [vmem:[#allocation2 + $0x368] sm:$0xf]
        %v1843 = vld [vmem:[#allocation2 + $0x370] sm:$0xf]
        %v1844 = vld [vmem:[#allocation2 + $0x378] sm:$0xf]
        %vm1845 = vcmask 883712
        %v1847 = vsel %vm1845, %v1732, 0
        %vm1849 = vcmask 1043456
        %v1851 = vsel %vm1849, %v1837, 0
        %v1854 = vsel %vm1849, %v1838, 0
        %v1857 = vsel %vm1849, %v1839, 0
        %v1860 = vsel %vm1849, %v1840, 0
        %v1863 = vsel %vm1849, %v1841, 0
        %v1866 = vsel %vm1849, %v1842, 0
        %v1869 = vsel %vm1849, %v1843, 0
        %v1872 = vsel %vm1849, %v1844, 0
        %1874 = vmatprep.subr.mxu0 %v1734
        %1875 = vmatpush1.msra.mxu0 %v1733
        %1876 = vmatprep.subr.mxu0 %v1742
        %1877 = vmatpush1.msra.mxu0 %v1741
        %1878 = vmatprep.subr.mxu0 %v1750
        %1879 = vmatpush1.msra.mxu0 %v1749
        %1880 = vmatprep.subr.mxu0 %v1758
        %1881 = vmatpush1.msra.mxu0 %v1757
        %1882 = vmatprep.subr.mxu0 %v1766
        %1883 = vmatpush1.msra.mxu0 %v1765
        %1884 = vmatprep.subr.mxu0 %v1774
        %1885 = vmatpush1.msra.mxu0 %v1773
        %1886 = vmatprep.subr.mxu0 %v1782
        %1887 = vmatpush1.msra.mxu0 %v1781
        %1888 = vmatprep.subr.mxu0 %v1790
        %1889 = vmatpush1.msra.mxu0 %v1789
        %1890 = vmatprep.subr.mxu0 %v1798
        %1891 = vmatpush1.msra.mxu0 %v1797
        %1892 = vmatprep.subr.mxu0 %v1806
        %1893 = vmatpush1.msra.mxu0 %v1805
        %1894 = vmatprep.subr.mxu0 %v1814
        %1895 = vmatpush1.msra.mxu0 %v1813
        %1896 = vmatprep.subr.mxu0 %v1822
        %1897 = vmatpush1.msra.mxu0 %v1821
        %1898 = vmatprep.subr.mxu0 %v1830
        %1899 = vmatpush1.msra.mxu0 %v1829
        %1900 = vmatprep.subr.mxu0 %v1854
        %1901 = vmatpush1.msra.mxu0 %v1851
        %1902 = vmatprep.subr.mxu0 0.0
        %1903 = vmatpush1.msra.mxu0 0.0
        %1904 = vmatprep.subr.mxu0 0.0
        %1905 = vmatpush1.msra.mxu0 0.0
        %1906 = vmatprep.subr.mxu0 0.0
        %1907 = vmatpush1.msra.mxu0 0.0
        %1908 = vmatprep.subr.mxu0 0.0
        %1909 = vmatpush1.msra.mxu0 0.0
        %1910 = vmatprep.subr.mxu0 0.0
        %1911 = vmatpush1.msra.mxu0 0.0
        %1912 = vmatprep.subr.mxu0 0.0
        %1913 = vmatpush1.msra.mxu0 0.0
        %1914 = vmatprep.subr.mxu0 0.0
        %1915 = vmatpush1.msra.mxu0 0.0
        %1916 = vmatprep.subr.mxu0 0.0
        %1917 = vmatpush1.msra.mxu0 0.0
        %1918 = vmatprep.subr.mxu0 0.0
        %1919 = vmatpush1.msra.mxu0 0.0
        %1920 = vmatprep.subr.mxu0 0.0
        %1921 = vmatpush1.msra.mxu0 0.0
        %1922 = vmatprep.subr.mxu0 0.0
        %1923 = vmatpush1.msra.mxu0 0.0
        %1924 = vmatprep.subr.mxu0 0.0
        %1925 = vmatpush1.msra.mxu0 0.0
        %1926 = vmatprep.subr.mxu0 0.0
        %1927 = vmatpush1.msra.mxu0 0.0
        %1928 = vmatprep.subr.mxu0 0.0
        %1929 = vmatpush1.msra.mxu0 0.0
        %1930 = vmatprep.subr.mxu0 0.0
        %1931 = vmatpush1.msra.mxu0 0.0
        %1932 = vmatprep.subr.mxu0 0.0
        %1933 = vmatpush1.msra.mxu0 0.0
        %1934 = vmatprep.subr.mxu0 0.0
        %1935 = vmatpush1.msra.mxu0 0.0
        %1936 = vmatprep.subr.mxu0 0.0
        %1937 = vmatpush1.msra.mxu0 0.0
        %1938 = vmatprep.mubr.f32.mxu0 0.0
        %1939 = vmatmul.mubr.f32.gmra.mrb[0].mxu0 %v1847
        %v1940 = vpop.f32.mrb[0].mxu0
        %v1941 = vadd.f32 0.0, %v1940
        %v1942 = vpop.f32.mrb[0].mxu0
        %v1943 = vadd.f32 0.0, %v1942
        %1944 = vdwg.mxu0
        %1945 = vmatprep.subr.mxu0 %v1736
        %1946 = vmatpush1.msra.mxu0 %v1735
        %1947 = vmatprep.subr.mxu0 %v1744
        %1948 = vmatpush1.msra.mxu0 %v1743
        %1949 = vmatprep.subr.mxu0 %v1752
        %1950 = vmatpush1.msra.mxu0 %v1751
        %1951 = vmatprep.subr.mxu0 %v1760
        %1952 = vmatpush1.msra.mxu0 %v1759
        %1953 = vmatprep.subr.mxu0 %v1768
        %1954 = vmatpush1.msra.mxu0 %v1767
        %1955 = vmatprep.subr.mxu0 %v1776
        %1956 = vmatpush1.msra.mxu0 %v1775
        %1957 = vmatprep.subr.mxu0 %v1784
        %1958 = vmatpush1.msra.mxu0 %v1783
        %1959 = vmatprep.subr.mxu0 %v1792
        %1960 = vmatpush1.msra.mxu0 %v1791
        %1961 = vmatprep.subr.mxu0 %v1800
        %1962 = vmatpush1.msra.mxu0 %v1799
        %1963 = vmatprep.subr.mxu0 %v1808
        %1964 = vmatpush1.msra.mxu0 %v1807
        %1965 = vmatprep.subr.mxu0 %v1816
        %1966 = vmatpush1.msra.mxu0 %v1815
        %1967 = vmatprep.subr.mxu0 %v1824
        %1968 = vmatpush1.msra.mxu0 %v1823
        %1969 = vmatprep.subr.mxu0 %v1832
        %1970 = vmatpush1.msra.mxu0 %v1831
        %1971 = vmatprep.subr.mxu0 %v1860
        %1972 = vmatpush1.msra.mxu0 %v1857
        %1973 = vmatprep.subr.mxu0 0.0
        %1974 = vmatpush1.msra.mxu0 0.0
        %1975 = vmatprep.subr.mxu0 0.0
        %1976 = vmatpush1.msra.mxu0 0.0
        %1977 = vmatprep.subr.mxu0 0.0
        %1978 = vmatpush1.msra.mxu0 0.0
        %1979 = vmatprep.subr.mxu0 0.0
        %1980 = vmatpush1.msra.mxu0 0.0
        %1981 = vmatprep.subr.mxu0 0.0
        %1982 = vmatpush1.msra.mxu0 0.0
        %1983 = vmatprep.subr.mxu0 0.0
        %1984 = vmatpush1.msra.mxu0 0.0
        %1985 = vmatprep.subr.mxu0 0.0
        %1986 = vmatpush1.msra.mxu0 0.0
        %1987 = vmatprep.subr.mxu0 0.0
        %1988 = vmatpush1.msra.mxu0 0.0
        %1989 = vmatprep.subr.mxu0 0.0
        %1990 = vmatpush1.msra.mxu0 0.0
        %1991 = vmatprep.subr.mxu0 0.0
        %1992 = vmatpush1.msra.mxu0 0.0
        %1993 = vmatprep.subr.mxu0 0.0
        %1994 = vmatpush1.msra.mxu0 0.0
        %1995 = vmatprep.subr.mxu0 0.0
        %1996 = vmatpush1.msra.mxu0 0.0
        %1997 = vmatprep.subr.mxu0 0.0
        %1998 = vmatpush1.msra.mxu0 0.0
        %1999 = vmatprep.subr.mxu0 0.0
        %2000 = vmatpush1.msra.mxu0 0.0
        %2001 = vmatprep.subr.mxu0 0.0
        %2002 = vmatpush1.msra.mxu0 0.0
        %2003 = vmatprep.subr.mxu0 0.0
        %2004 = vmatpush1.msra.mxu0 0.0
        %2005 = vmatprep.subr.mxu0 0.0
        %2006 = vmatpush1.msra.mxu0 0.0
        %2007 = vmatprep.subr.mxu0 0.0
        %2008 = vmatpush1.msra.mxu0 0.0
        %2009 = vmatprep.mubr.f32.mxu0 0.0
        %2010 = vmatmul.mubr.f32.gmra.mrb[0].mxu0 %v1847
        %v2011 = vpop.f32.mrb[0].mxu0
        %v2012 = vadd.f32 0.0, %v2011
        %v2013 = vpop.f32.mrb[0].mxu0
        %v2014 = vadd.f32 0.0, %v2013
        %2015 = vdwg.mxu0
        %2016 = vmatprep.subr.mxu0 %v1738
        %2017 = vmatpush1.msra.mxu0 %v1737
        %2018 = vmatprep.subr.mxu0 %v1746
        %2019 = vmatpush1.msra.mxu0 %v1745
        %2020 = vmatprep.subr.mxu0 %v1754
        %2021 = vmatpush1.msra.mxu0 %v1753
        %2022 = vmatprep.subr.mxu0 %v1762
        %2023 = vmatpush1.msra.mxu0 %v1761
        %2024 = vmatprep.subr.mxu0 %v1770
        %2025 = vmatpush1.msra.mxu0 %v1769
        %2026 = vmatprep.subr.mxu0 %v1778
        %2027 = vmatpush1.msra.mxu0 %v1777
        %2028 = vmatprep.subr.mxu0 %v1786
        %2029 = vmatpush1.msra.mxu0 %v1785
        %2030 = vmatprep.subr.mxu0 %v1794
        %2031 = vmatpush1.msra.mxu0 %v1793
        %2032 = vmatprep.subr.mxu0 %v1802
        %2033 = vmatpush1.msra.mxu0 %v1801
        %2034 = vmatprep.subr.mxu0 %v1810
        %2035 = vmatpush1.msra.mxu0 %v1809
        %2036 = vmatprep.subr.mxu0 %v1818
        %2037 = vmatpush1.msra.mxu0 %v1817
        %2038 = vmatprep.subr.mxu0 %v1826
        %2039 = vmatpush1.msra.mxu0 %v1825
        %2040 = vmatprep.subr.mxu0 %v1834
        %2041 = vmatpush1.msra.mxu0 %v1833
        %2042 = vmatprep.subr.mxu0 %v1866
        %2043 = vmatpush1.msra.mxu0 %v1863
        %2044 = vmatprep.subr.mxu0 0.0
        %2045 = vmatpush1.msra.mxu0 0.0
        %2046 = vmatprep.subr.mxu0 0.0
        %2047 = vmatpush1.msra.mxu0 0.0
        %2048 = vmatprep.subr.mxu0 0.0
        %2049 = vmatpush1.msra.mxu0 0.0
        %2050 = vmatprep.subr.mxu0 0.0
        %2051 = vmatpush1.msra.mxu0 0.0
        %2052 = vmatprep.subr.mxu0 0.0
        %2053 = vmatpush1.msra.mxu0 0.0
        %2054 = vmatprep.subr.mxu0 0.0
        %2055 = vmatpush1.msra.mxu0 0.0
        %2056 = vmatprep.subr.mxu0 0.0
        %2057 = vmatpush1.msra.mxu0 0.0
        %2058 = vmatprep.subr.mxu0 0.0
        %2059 = vmatpush1.msra.mxu0 0.0
        %2060 = vmatprep.subr.mxu0 0.0
        %2061 = vmatpush1.msra.mxu0 0.0
        %2062 = vmatprep.subr.mxu0 0.0
        %2063 = vmatpush1.msra.mxu0 0.0
        %2064 = vmatprep.subr.mxu0 0.0
        %2065 = vmatpush1.msra.mxu0 0.0
        %2066 = vmatprep.subr.mxu0 0.0
        %2067 = vmatpush1.msra.mxu0 0.0
        %2068 = vmatprep.subr.mxu0 0.0
        %2069 = vmatpush1.msra.mxu0 0.0
        %2070 = vmatprep.subr.mxu0 0.0
        %2071 = vmatpush1.msra.mxu0 0.0
        %2072 = vmatprep.subr.mxu0 0.0
        %2073 = vmatpush1.msra.mxu0 0.0
        %2074 = vmatprep.subr.mxu0 0.0
        %2075 = vmatpush1.msra.mxu0 0.0
        %2076 = vmatprep.subr.mxu0 0.0
        %2077 = vmatpush1.msra.mxu0 0.0
        %2078 = vmatprep.subr.mxu0 0.0
        %2079 = vmatpush1.msra.mxu0 0.0
        %2080 = vmatprep.mubr.f32.mxu0 0.0
        %2081 = vmatmul.mubr.f32.gmra.mrb[0].mxu0 %v1847
        %v2082 = vpop.f32.mrb[0].mxu0
        %v2083 = vadd.f32 0.0, %v2082
        %v2084 = vpop.f32.mrb[0].mxu0
        %v2085 = vadd.f32 0.0, %v2084
        %2086 = vdwg.mxu0
        %2087 = vmatprep.subr.mxu0 %v1740
        %2088 = vmatpush1.msra.mxu0 %v1739
        %2089 = vmatprep.subr.mxu0 %v1748
        %2090 = vmatpush1.msra.mxu0 %v1747
        %2091 = vmatprep.subr.mxu0 %v1756
        %2092 = vmatpush1.msra.mxu0 %v1755
        %2093 = vmatprep.subr.mxu0 %v1764
        %2094 = vmatpush1.msra.mxu0 %v1763
        %2095 = vmatprep.subr.mxu0 %v1772
        %2096 = vmatpush1.msra.mxu0 %v1771
        %2097 = vmatprep.subr.mxu0 %v1780
        %2098 = vmatpush1.msra.mxu0 %v1779
        %2099 = vmatprep.subr.mxu0 %v1788
        %2100 = vmatpush1.msra.mxu0 %v1787
        %2101 = vmatprep.subr.mxu0 %v1796
        %2102 = vmatpush1.msra.mxu0 %v1795
        %2103 = vmatprep.subr.mxu0 %v1804
        %2104 = vmatpush1.msra.mxu0 %v1803
        %2105 = vmatprep.subr.mxu0 %v1812
        %2106 = vmatpush1.msra.mxu0 %v1811
        %2107 = vmatprep.subr.mxu0 %v1820
        %2108 = vmatpush1.msra.mxu0 %v1819
        %2109 = vmatprep.subr.mxu0 %v1828
        %2110 = vmatpush1.msra.mxu0 %v1827
        %2111 = vmatprep.subr.mxu0 %v1836
        %2112 = vmatpush1.msra.mxu0 %v1835
        %2113 = vmatprep.subr.mxu0 %v1872
        %2114 = vmatpush1.msra.mxu0 %v1869
        %2115 = vmatprep.subr.mxu0 0.0
        %2116 = vmatpush1.msra.mxu0 0.0
        %2117 = vmatprep.subr.mxu0 0.0
        %2118 = vmatpush1.msra.mxu0 0.0
        %2119 = vmatprep.subr.mxu0 0.0
        %2120 = vmatpush1.msra.mxu0 0.0
        %2121 = vmatprep.subr.mxu0 0.0
        %2122 = vmatpush1.msra.mxu0 0.0
        %2123 = vmatprep.subr.mxu0 0.0
        %2124 = vmatpush1.msra.mxu0 0.0
        %2125 = vmatprep.subr.mxu0 0.0
        %2126 = vmatpush1.msra.mxu0 0.0
        %2127 = vmatprep.subr.mxu0 0.0
        %2128 = vmatpush1.msra.mxu0 0.0
        %2129 = vmatprep.subr.mxu0 0.0
        %2130 = vmatpush1.msra.mxu0 0.0
        %2131 = vmatprep.subr.mxu0 0.0
        %2132 = vmatpush1.msra.mxu0 0.0
        %2133 = vmatprep.subr.mxu0 0.0
        %2134 = vmatpush1.msra.mxu0 0.0
        %2135 = vmatprep.subr.mxu0 0.0
        %2136 = vmatpush1.msra.mxu0 0.0
        %2137 = vmatprep.subr.mxu0 0.0
        %2138 = vmatpush1.msra.mxu0 0.0
        %2139 = vmatprep.subr.mxu0 0.0
        %2140 = vmatpush1.msra.mxu0 0.0
        %2141 = vmatprep.subr.mxu0 0.0
        %2142 = vmatpush1.msra.mxu0 0.0
        %2143 = vmatprep.subr.mxu0 0.0
        %2144 = vmatpush1.msra.mxu0 0.0
        %2145 = vmatprep.subr.mxu0 0.0
        %2146 = vmatpush1.msra.mxu0 0.0
        %2147 = vmatprep.subr.mxu0 0.0
        %2148 = vmatpush1.msra.mxu0 0.0
        %2149 = vmatprep.subr.mxu0 0.0
        %2150 = vmatpush1.msra.mxu0 0.0
        %2151 = vmatprep.mubr.f32.mxu0 0.0
        %2152 = vmatmul.mubr.f32.gmra.mrb[0].mxu0 %v1847
        %v2153 = vpop.f32.mrb[0].mxu0
        %v2154 = vadd.f32 0.0, %v2153
        %v2155 = vpop.f32.mrb[0].mxu0
        %v2156 = vadd.f32 0.0, %v2155
        %2157 = vdwg.mxu0
        %2158 = vst [vmem:[%s242] sm:$0xff] %v1941
        %2159 = vst [vmem:[%s242 + $0x8] sm:$0xff] %v1943
        %2160 = vst [vmem:[%s242 + $0x10] sm:$0xff] %v2012
        %2161 = vst [vmem:[%s242 + $0x18] sm:$0xff] %v2014
        %2162 = vst [vmem:[%s242 + $0x20] sm:$0xff] %v2083
        %2163 = vst [vmem:[%s242 + $0x28] sm:$0xff] %v2085
        %2164 = vst [vmem:[%s242 + $0x30] sm:$0xff] %v2154
        %vm2165 = vcmask 850944
        %2166 = vst.msk [vmem:[%s242 + $0x38] sm:$0xff] %vm2165, %v2156
        %v2167 = vld [vmem:[#allocation6] sm:$0xff]
        %v2169 = vlaneseq
        %v2170 = vshrl.u32 %v2169, 7
        %v2171 = vsub.s32 0, %v2170
        %v2172 = vrot.slane %v2167, %v2171
        %v2173 = vlaneseq
        %v2174 = vshrl.u32 %v2173, 7
        %v2175 = vsub.s32 1, %v2174
        %v2176 = vrot.slane %v2167, %v2175
        %v2177 = vlaneseq
        %v2178 = vshrl.u32 %v2177, 7
        %v2179 = vsub.s32 2, %v2178
        %v2180 = vrot.slane %v2167, %v2179
        %v2181 = vlaneseq
        %v2182 = vshrl.u32 %v2181, 7
        %v2183 = vsub.s32 3, %v2182
        %v2184 = vrot.slane %v2167, %v2183
        %v2185 = vlaneseq
        %v2186 = vshrl.u32 %v2185, 7
        %v2187 = vsub.s32 4, %v2186
        %v2188 = vrot.slane %v2167, %v2187
        %v2189 = vlaneseq
        %v2190 = vshrl.u32 %v2189, 7
        %v2191 = vsub.s32 5, %v2190
        %v2192 = vrot.slane %v2167, %v2191
        %v2193 = vlaneseq
        %v2194 = vshrl.u32 %v2193, 7
        %v2195 = vsub.s32 6, %v2194
        %v2196 = vrot.slane %v2167, %v2195
        %v2197 = vlaneseq
        %v2198 = vshrl.u32 %v2197, 7
        %v2199 = vsub.s32 7, %v2198
        %v2200 = vrot.slane %v2167, %v2199
        %v2209 = vmul.f32 %v1941, %v2172
        %v2210 = vmul.f32 %v1943, %v2176
        %v2211 = vmul.f32 %v2012, %v2180
        %v2212 = vmul.f32 %v2014, %v2184
        %v2213 = vmul.f32 %v2083, %v2188
        %v2214 = vmul.f32 %v2085, %v2192
        %v2215 = vmul.f32 %v2154, %v2196
        %v2216 = vmul.f32 %v2156, %v2200
        %v2217 = vadd.f32 %v2209, %v2210
        %v2218 = vadd.f32 %v2217, %v2211
        %v2219 = vadd.f32 %v2218, %v2212
        %v2220 = vadd.f32 %v2219, %v2213
        %v2221 = vadd.f32 %v2220, %v2214
        %v2222 = vadd.f32 %v2221, %v2215
        %v2223 = vsel %vm2165, %v2216, 0.0
        %v2224 = vadd.f32 %v2222, %v2223
        %2225 = vadd.xlane.f32.xlu0 %v2224
        %v2226 = vpop.xlane.xlu0 %2225
        %v2228 = vlaneseq
        %v2229 = vand.u32 %v2228, 127
        %v2230 = vlaneseq
        %v2231 = vshrl.u32 %v2230, 7
        %v2232 = vsub.s32 %v2229, %v2231
        %v2233 = vrot.slane %v2226, %v2232
        %vm2235 = vcmask 57344
        %2236 = vst.msk [vmem:[%s249] sm:$0x1] %vm2235, %v2233
        %v2237 = vmul.f32 %v2209, %v1941
        %v2238 = vmul.f32 %v2210, %v1943
        %v2239 = vmul.f32 %v2211, %v2012
        %v2240 = vmul.f32 %v2212, %v2014
        %v2241 = vmul.f32 %v2213, %v2083
        %v2242 = vmul.f32 %v2214, %v2085
        %v2243 = vmul.f32 %v2215, %v2154
        %v2244 = vmul.f32 %v2216, %v2156
        %v2245 = vadd.f32 %v2237, %v2238
        %v2246 = vadd.f32 %v2245, %v2239
        %v2247 = vadd.f32 %v2246, %v2240
        %v2248 = vadd.f32 %v2247, %v2241
        %v2249 = vadd.f32 %v2248, %v2242
        %v2250 = vadd.f32 %v2249, %v2243
        %v2251 = vsel %vm2165, %v2244, 0.0
        %v2252 = vadd.f32 %v2250, %v2251
        %2253 = vadd.xlane.f32.xlu0 %v2252
        %v2254 = vpop.xlane.xlu0 %2253
        %v2256 = vlaneseq
        %v2257 = vshrl.u32 %v2256, 7
        %v2258 = vsub.s32 %v2229, %v2257
        %v2259 = vrot.slane %v2254, %v2258
        %2261 = vst.msk [vmem:[%s249 + $0x1] sm:$0x1] %vm2235, %v2259
        %s2262 = sand.u32 %s102, 1
        %s2263 = scalar_lea.sflag [#allocation5], %s2262
        %s2264 = sand.u32 %s102, 1
        %s2265 = smul.addr %s2264, 64
        %s2266 = scalar_lea.vmem [#allocation9], %s2265
        %s2267 = sand.u32 %s128, 1
        %s2268 = scalar_lea.sflag [#allocation11], %s2267
        %s2269 = sand.u32 %s128, 1
        %s2270 = smul.addr %s2269, 2
        %s2271 = scalar_lea.vmem [#allocation10], %s2270
        // Predicated region
        $region45: #{double_conv.3} parent=31 // pred_check
          %p2272 = pneg %p112
        $region46: #{double_conv.3} parent=31 // pred_check_branch
          %2274 = sbr.rel (%p2272) target = $region48
        $region47: #{double_conv.3} parent=31 // pred_region
          %s2276 = ssub.s32 1024, 1024
          %2277 = vsyncadd %s2263, %s2276
          %s2278 = smul.addr %s26, 8
          %s2279 = smul.addr %s2278, 128
          %s2280 = scalar_lea.hbm %s3, %s2279
          %s2282 = sshll.u32 %s2266, 4
          %s2283 = int_to_ptr.vmem [resolvable:$true] %s2282
          %2285 = dma.vmem_to_hbm [thread:$0]  %s2283, 1024, %s2280, %s2263
        $region48: #{double_conv.3} parent=31 // pred_fallthru
          _
        // Predicated region
        $region49: #{double_conv.3} parent=31 // pred_check
          %p2286 = pneg %p138
        $region50: #{double_conv.3} parent=31 // pred_check_branch
          %2288 = sbr.rel (%p2286) target = $region52
        $region51: #{double_conv.3} parent=31 // pred_region
          %s2290 = ssub.s32 32, 32
          %2291 = vsyncadd %s2268, %s2290
          %s2292 = smul.addr %s26, 32
          %s2293 = scalar_lea.hbm %s4, %s2292
          %s2295 = sshll.u32 %s2271, 4
          %s2296 = int_to_ptr.vmem [resolvable:$true] %s2295
          %2298 = dma.vmem_to_hbm [thread:$0]  %s2296, 32, %s2293, %s2268
        $region52: #{double_conv.3} parent=31 // pred_fallthru
          _
      $region32: #{double_conv.3} parent=5 // pred_fallthru
        _
      %p2299 = scmp.le.s32.totalorder 2, %s21
      // Predicated region
      $region53: #{double_conv.3} parent=5 // pred_check
        %p2300 = pneg %p2299
      $region54: #{double_conv.3} parent=5 // pred_check_branch
        %2302 = sbr.rel (%p2300) target = $region56
      $region55: #{double_conv.3} parent=5 // pred_region
        %s2303 = ssub.s32 %s21, 2
        // Predicated region
        $region57: #{double_conv.3} parent=55 // pred_check
          %p2304 = pneg %p118
        $region58: #{double_conv.3} parent=55 // pred_check_branch
          %2306 = sbr.rel (%p2304) target = $region60
        $region59: #{double_conv.3} parent=55 // pred_region
          %s2307 = sand.u32 %s103, 1
          %s2308 = scalar_lea.sflag [#allocation5], %s2307
          %s2309 = sand.u32 %s103, 1
          %s2310 = smul.addr %s2309, 64
          %s2311 = scalar_lea.vmem [#allocation9], %s2310
          %2312 = dma.done %s2308, 1024
        $region60: #{double_conv.3} parent=55 // pred_fallthru
          _
        // Predicated region
        $region61: #{double_conv.3} parent=55 // pred_check
          %p2313 = pneg %p144
        $region62: #{double_conv.3} parent=55 // pred_check_branch
          %2315 = sbr.rel (%p2313) target = $region64
        $region63: #{double_conv.3} parent=55 // pred_region
          %s2316 = sand.u32 %s129, 1
          %s2317 = scalar_lea.sflag [#allocation11], %s2316
          %s2318 = sand.u32 %s129, 1
          %s2319 = smul.addr %s2318, 2
          %s2320 = scalar_lea.vmem [#allocation10], %s2319
          %2321 = dma.done %s2317, 32
        $region64: #{double_conv.3} parent=55 // pred_fallthru
          _
      $region56: #{double_conv.3} parent=5 // pred_fallthru
        _
    $region6: #{double_conv.3} parent=1 // loop_footer
      %s25 = sadd.s32 1, %s21
    $region7: #{double_conv.3} parent=1 // loop_footer_branch
      %20 = sbr.rel target = $region3
    $region8: #{double_conv.3} parent=1 // loop_exit
      _
    %2322 = vsyncpa [#allocation4], 1
    %s2323 = scalar_lea.sflag [#allocation4], 1
    %2324 = vsyncpa %s2323, 1
    %2325 = vsyncpa [#allocation7], 1
    %2326 = vsyncpa [#allocation5], 1
    %s2327 = scalar_lea.sflag [#allocation5], 1
    %2328 = vsyncpa %s2327, 1
    %2329 = vsyncpa [#allocation11], 1
    %s2330 = scalar_lea.sflag [#allocation11], 1
    %2331 = vsyncpa %s2330, 1

// kernel: double_conv.4
$region0: #{double_conv.4}
  #allocation0 [shape = 'u32[]', space=smem, size = 0x4, offset = 0x4, fixed_abs, tag = 'smem constant byte address 0x4 - core index']
  #allocation1 [shape = 'u32[144,128]{1,0:T(1,128)}', space=vmem, size = 0x12000, scoped, tag = 'internal scratch']
  #allocation2 [shape = 'f32[8,1256]{1,0:T(8,128)}', space=vmem, size = 0xa000, scoped, tag = 'scratch operand']
  #allocation3 [shape = 'f32[216,1000]{1,0:T(8,128)}', space=vmem, size = 0xd8000, scoped, tag = 'scratch operand']
  %s0 = inlined_call_operand.hbm [shape: f32[2,8,1000], index: 0, kind: input, shape index: {}]
  %s1 = inlined_call_operand.hbm [shape: f32[8,1], index: 1, kind: input, shape index: {}]
  %s2 = inlined_call_operand.hbm [shape: f32[8,1], index: 2, kind: input, shape index: {}]
  %s3 = inlined_call_operand.hbm [shape: f32[1,1000], index: 3, kind: input, shape index: {}]
  %s4 = inlined_call_operand.hbm [shape: f32[8,216], index: 4, kind: input, shape index: {}]
  %s5 = inlined_call_operand.hbm [shape: f32[2,8,1000], index: 5, kind: output, shape index: {0}]
  %s6 = inlined_call_operand.hbm [shape: f32[2,2,8], index: 6, kind: output, shape index: {1}]
  %7 = xla_tuple %s5, %s6
  %s8 = sld [smem:[#allocation0]]
  $region81: #{double_conv.4} parent=0
    _
  %s10 = ssub.s32 1, %s8
  %s11 = scalar_select 0, %s10, %s8
  $region1: #{double_conv.4} parent=0
    #allocation4 [shape = 'u8[65536]{0}', space=vmem, size = 0x10000, scoped, tag = 'input window, operand 0']
    #allocation5 [shape = 's32[2]{0}', space=sflag, size = 0x8, scoped, tag = 'scoped memory for double_conv.4']
    #allocation6 [shape = 's32[2]{0}', space=sflag, size = 0x8, scoped, tag = 'scoped memory for double_conv.4']
    #allocation7 [shape = 'u8[4096]{0}', space=vmem, size = 0x1000, scoped, tag = 'input window, operand 1, single buffered']
    #allocation8 [shape = 's32[1]{0}', space=sflag, size = 0x4, scoped, tag = 'scoped memory for double_conv.4']
    #allocation9 [shape = 'u8[4096]{0}', space=vmem, size = 0x1000, scoped, tag = 'input window, operand 2, single buffered']
    #allocation10 [shape = 'u8[4096]{0}', space=vmem, size = 0x1000, scoped, tag = 'input window, operand 3, single buffered']
    #allocation11 [shape = 's32[1]{0}', space=sflag, size = 0x4, scoped, tag = 'scoped memory for double_conv.4']
    #allocation12 [shape = 'u8[8192]{0}', space=vmem, size = 0x2000, scoped, tag = 'input window, operand 4, single buffered']
    #allocation13 [shape = 'u8[65536]{0}', space=vmem, size = 0x10000, scoped, tag = 'output window, operand 0']
    #allocation14 [shape = 'u8[2048]{0}', space=vmem, size = 0x800, scoped, tag = 'output window, operand 1']
    #allocation15 [shape = 's32[2]{0}', space=sflag, size = 0x8, scoped, tag = 'scoped memory for double_conv.4']
    %12 = vsyncpa [#allocation5], 0
    %s13 = scalar_lea.sflag [#allocation5], 1
    %14 = vsyncpa %s13, 0
    %15 = vsyncpa [#allocation8], 0
    %16 = vsyncpa [#allocation11], 0
    %17 = vsyncpa [#allocation6], 0
    %s18 = scalar_lea.sflag [#allocation6], 1
    %19 = vsyncpa %s18, 0
    %20 = vsyncpa [#allocation15], 0
    %s21 = scalar_lea.sflag [#allocation15], 1
    %22 = vsyncpa %s21, 0
    loop: start=0, step=1, limit=4
    $region2: #{double_conv.4} parent=1 // loop_pre_header
      _
    $region3: #{double_conv.4} parent=1 // loop_header
      %s24 = sphi 0, %s28
      %p25 = scmp.ge.s32.totalorder %s24, 4
      %s34 = sphi 0, %s36
      %s37 = sphi 0, %s34
      %s38 = sphi 0, %s37
      %s54 = sphi 0, %s38
      %s58 = sphi 0, %s58
      %s60 = sphi 0, %s58
      %s61 = sphi 0, %s60
      %s75 = sphi 0, %s61
      %s79 = sphi 0, %s79
      %s81 = sphi 0, %s79
      %s82 = sphi 0, %s81
      %s96 = sphi 0, %s82
      %s100 = sphi 0, %s100
      %s102 = sphi 0, %s100
      %s103 = sphi 0, %s102
      %s117 = sphi 0, %s103
      %s121 = sphi 0, %s121
      %s123 = sphi 0, %s121
      %s124 = sphi 0, %s123
      %s138 = sphi 0, %s124
      %s144 = sphi 0, %s146
      %s147 = sphi 0, %s144
      %s148 = sphi 0, %s147
      %s164 = sphi 0, %s148
      %s170 = sphi 0, %s172
      %s173 = sphi 0, %s170
      %s174 = sphi 0, %s173
      %s190 = sphi 0, %s174
    $region4: #{double_conv.4} parent=1 // loop_header_branch
      %27 = sbr.rel (%p25) target = $region8
    $region5: #{double_conv.4} parent=1 // loop_body
      %s29 = ssub.s32 %s24, 1
      %s30 = ssub.s32 %s24, 2
      %s31 = sadd.s32 %s24, 1
      %s32 = ssub.s32 %s24, %s31
      %p33 = scmp.eq.s32.totalorder %s32, 0
      %s35 = sadd.s32 %s34, 1
      %s36 = scalar_select %p33, %s34, %s35
      %p39 = pneg %p33
      %p40 = scmp.eq.s32.totalorder %s24, 1
      %p41 = por %p39, %p40
      %p42 = scmp.ne.s32.totalorder %s34, %s37
      %p43 = scmp.eq.s32.totalorder %s24, 0
      %p44 = por %p42, %p43
      %p45 = scmp.ne.s32.totalorder %s34, %s37
      %p46 = scmp.eq.s32.totalorder %s29, 1
      %p47 = por %p45, %p46
      %p48 = scmp.ne.s32.totalorder %s37, %s38
      %p49 = scmp.eq.s32.totalorder %s29, 0
      %p50 = por %p48, %p49
      %p51 = scmp.ne.s32.totalorder %s37, %s38
      %p52 = scmp.eq.s32.totalorder %s30, 1
      %p53 = por %p51, %p52
      %p55 = scmp.ne.s32.totalorder %s38, %s54
      %p56 = scmp.eq.s32.totalorder %s30, 0
      %p57 = por %p55, %p56
      %s59 = sadd.s32 %s58, 1
      %p62 = scmp.eq.s32.totalorder %s24, 1
      %p63 = scmp.ne.s32.totalorder %s58, %s60
      %p64 = scmp.eq.s32.totalorder %s24, 0
      %p65 = por %p63, %p64
      %p66 = scmp.ne.s32.totalorder %s58, %s60
      %p67 = scmp.eq.s32.totalorder %s29, 1
      %p68 = por %p66, %p67
      %p69 = scmp.ne.s32.totalorder %s60, %s61
      %p70 = scmp.eq.s32.totalorder %s29, 0
      %p71 = por %p69, %p70
      %p72 = scmp.ne.s32.totalorder %s60, %s61
      %p73 = scmp.eq.s32.totalorder %s30, 1
      %p74 = por %p72, %p73
      %p76 = scmp.ne.s32.totalorder %s61, %s75
      %p77 = scmp.eq.s32.totalorder %s30, 0
      %p78 = por %p76, %p77
      %s80 = sadd.s32 %s79, 1
      %p83 = scmp.eq.s32.totalorder %s24, 1
      %p84 = scmp.ne.s32.totalorder %s79, %s81
      %p85 = scmp.eq.s32.totalorder %s24, 0
      %p86 = por %p84, %p85
      %p87 = scmp.ne.s32.totalorder %s79, %s81
      %p88 = scmp.eq.s32.totalorder %s29, 1
      %p89 = por %p87, %p88
      %p90 = scmp.ne.s32.totalorder %s81, %s82
      %p91 = scmp.eq.s32.totalorder %s29, 0
      %p92 = por %p90, %p91
      %p93 = scmp.ne.s32.totalorder %s81, %s82
      %p94 = scmp.eq.s32.totalorder %s30, 1
      %p95 = por %p93, %p94
      %p97 = scmp.ne.s32.totalorder %s82, %s96
      %p98 = scmp.eq.s32.totalorder %s30, 0
      %p99 = por %p97, %p98
      %s101 = sadd.s32 %s100, 1
      %p104 = scmp.eq.s32.totalorder %s24, 1
      %p105 = scmp.ne.s32.totalorder %s100, %s102
      %p106 = scmp.eq.s32.totalorder %s24, 0
      %p107 = por %p105, %p106
      %p108 = scmp.ne.s32.totalorder %s100, %s102
      %p109 = scmp.eq.s32.totalorder %s29, 1
      %p110 = por %p108, %p109
      %p111 = scmp.ne.s32.totalorder %s102, %s103
      %p112 = scmp.eq.s32.totalorder %s29, 0
      %p113 = por %p111, %p112
      %p114 = scmp.ne.s32.totalorder %s102, %s103
      %p115 = scmp.eq.s32.totalorder %s30, 1
      %p116 = por %p114, %p115
      %p118 = scmp.ne.s32.totalorder %s103, %s117
      %p119 = scmp.eq.s32.totalorder %s30, 0
      %p120 = por %p118, %p119
      %s122 = sadd.s32 %s121, 1
      %p125 = scmp.eq.s32.totalorder %s24, 1
      %p126 = scmp.ne.s32.totalorder %s121, %s123
      %p127 = scmp.eq.s32.totalorder %s24, 0
      %p128 = por %p126, %p127
      %p129 = scmp.ne.s32.totalorder %s121, %s123
      %p130 = scmp.eq.s32.totalorder %s29, 1
      %p131 = por %p129, %p130
      %p132 = scmp.ne.s32.totalorder %s123, %s124
      %p133 = scmp.eq.s32.totalorder %s29, 0
      %p134 = por %p132, %p133
      %p135 = scmp.ne.s32.totalorder %s123, %s124
      %p136 = scmp.eq.s32.totalorder %s30, 1
      %p137 = por %p135, %p136
      %p139 = scmp.ne.s32.totalorder %s124, %s138
      %p140 = scmp.eq.s32.totalorder %s30, 0
      %p141 = por %p139, %p140
      %s142 = ssub.s32 %s24, %s31
      %p143 = scmp.eq.s32.totalorder %s142, 0
      %s145 = sadd.s32 %s144, 1
      %s146 = scalar_select %p143, %s144, %s145
      %p149 = pneg %p143
      %p150 = scmp.eq.s32.totalorder %s24, 1
      %p151 = por %p149, %p150
      %p152 = scmp.ne.s32.totalorder %s144, %s147
      %p153 = scmp.eq.s32.totalorder %s24, 0
      %p154 = por %p152, %p153
      %p155 = scmp.ne.s32.totalorder %s144, %s147
      %p156 = scmp.eq.s32.totalorder %s29, 1
      %p157 = por %p155, %p156
      %p158 = scmp.ne.s32.totalorder %s147, %s148
      %p159 = scmp.eq.s32.totalorder %s29, 0
      %p160 = por %p158, %p159
      %p161 = scmp.ne.s32.totalorder %s147, %s148
      %p162 = scmp.eq.s32.totalorder %s30, 1
      %p163 = por %p161, %p162
      %p165 = scmp.ne.s32.totalorder %s148, %s164
      %p166 = scmp.eq.s32.totalorder %s30, 0
      %p167 = por %p165, %p166
      %s168 = ssub.s32 %s24, %s31
      %p169 = scmp.eq.s32.totalorder %s168, 0
      %s171 = sadd.s32 %s170, 1
      %s172 = scalar_select %p169, %s170, %s171
      %p175 = pneg %p169
      %p176 = scmp.eq.s32.totalorder %s24, 1
      %p177 = por %p175, %p176
      %p178 = scmp.ne.s32.totalorder %s170, %s173
      %p179 = scmp.eq.s32.totalorder %s24, 0
      %p180 = por %p178, %p179
      %p181 = scmp.ne.s32.totalorder %s170, %s173
      %p182 = scmp.eq.s32.totalorder %s29, 1
      %p183 = por %p181, %p182
      %p184 = scmp.ne.s32.totalorder %s173, %s174
      %p185 = scmp.eq.s32.totalorder %s29, 0
      %p186 = por %p184, %p185
      %p187 = scmp.ne.s32.totalorder %s173, %s174
      %p188 = scmp.eq.s32.totalorder %s30, 1
      %p189 = por %p187, %p188
      %p191 = scmp.ne.s32.totalorder %s174, %s190
      %p192 = scmp.eq.s32.totalorder %s30, 0
      %p193 = por %p191, %p192
      %p194 = scmp.le.s32.totalorder 1, %s24
      %p195 = scmp.lt.s32.totalorder %s24, 3
      %p196 = pnand %p194, %p195
      %p197 = pneg %p196
      // Predicated region
      $region9: #{double_conv.4} parent=5 // pred_check
        _
      $region10: #{double_conv.4} parent=5 // pred_check_branch
        %199 = sbr.rel (%p196) target = $region12
      $region11: #{double_conv.4} parent=5 // pred_region
        %s200 = ssub.s32 %s24, 1
        // Predicated region
        $region13: #{double_conv.4} parent=11 // pred_check
          %p201 = pneg %p71
        $region14: #{double_conv.4} parent=11 // pred_check_branch
          %203 = sbr.rel (%p201) target = $region16
        $region15: #{double_conv.4} parent=11 // pred_region
          %s205 = ssub.s32 128, 128
          %206 = vsyncadd [#allocation8], %s205
          %s208 = sshll.u32 [#allocation7], 4
          %s209 = int_to_ptr.vmem [resolvable:$true] %s208
          %211 = dma.hbm_to_vmem [thread:$0]  %s1, 128, %s209, [#allocation8]
        $region16: #{double_conv.4} parent=11 // pred_fallthru
          _
        // Predicated region
        $region17: #{double_conv.4} parent=11 // pred_check
          %p212 = pneg %p92
        $region18: #{double_conv.4} parent=11 // pred_check_branch
          %214 = sbr.rel (%p212) target = $region20
        $region19: #{double_conv.4} parent=11 // pred_region
          %s216 = ssub.s32 128, 128
          %217 = vsyncadd [#allocation8], %s216
          %s219 = sshll.u32 [#allocation9], 4
          %s220 = int_to_ptr.vmem [resolvable:$true] %s219
          %222 = dma.hbm_to_vmem [thread:$0]  %s2, 128, %s220, [#allocation8]
        $region20: #{double_conv.4} parent=11 // pred_fallthru
          _
        // Predicated region
        $region21: #{double_conv.4} parent=11 // pred_check
          %p223 = pneg %p113
        $region22: #{double_conv.4} parent=11 // pred_check_branch
          %225 = sbr.rel (%p223) target = $region24
        $region23: #{double_conv.4} parent=11 // pred_region
          %s227 = ssub.s32 128, 128
          %228 = vsyncadd [#allocation11], %s227
          %s230 = sshll.u32 [#allocation10], 4
          %s231 = int_to_ptr.vmem [resolvable:$true] %s230
          %233 = dma.hbm_to_vmem [thread:$0]  %s3, 128, %s231, [#allocation11]
        $region24: #{double_conv.4} parent=11 // pred_fallthru
          _
        // Predicated region
        $region25: #{double_conv.4} parent=11 // pred_check
          %p234 = pneg %p134
        $region26: #{double_conv.4} parent=11 // pred_check_branch
          %236 = sbr.rel (%p234) target = $region28
        $region27: #{double_conv.4} parent=11 // pred_region
          %s238 = ssub.s32 256, 256
          %239 = vsyncadd [#allocation11], %s238
          %s241 = sshll.u32 [#allocation12], 4
          %s242 = int_to_ptr.vmem [resolvable:$true] %s241
          %244 = dma.hbm_to_vmem [thread:$0]  %s4, 256, %s242, [#allocation11]
        $region28: #{double_conv.4} parent=11 // pred_fallthru
          _
      $region12: #{double_conv.4} parent=5 // pred_fallthru
        _
      %p245 = scmp.lt.s32.totalorder %s24, 2
      // Predicated region
      $region29: #{double_conv.4} parent=5 // pred_check
        %p246 = pneg %p245
      $region30: #{double_conv.4} parent=5 // pred_check_branch
        %248 = sbr.rel (%p246) target = $region32
      $region31: #{double_conv.4} parent=5 // pred_region
        // Predicated region
        $region33: #{double_conv.4} parent=31 // pred_check
          %p249 = pneg %p44
        $region34: #{double_conv.4} parent=31 // pred_check_branch
          %251 = sbr.rel (%p249) target = $region36
        $region35: #{double_conv.4} parent=31 // pred_region
          %s252 = sand.u32 %s34, 1
          %s253 = scalar_lea.sflag [#allocation5], %s252
          %s254 = sand.u32 %s34, 1
          %s255 = smul.addr %s254, 64
          %s256 = scalar_lea.vmem [#allocation4], %s255
          %s258 = ssub.s32 1024, 1024
          %259 = vsyncadd %s253, %s258
          %s260 = smul.addr %s24, 8
          %s261 = smul.addr %s260, 128
          %s262 = scalar_lea.hbm %s0, %s261
          %s264 = sshll.u32 %s256, 4
          %s265 = int_to_ptr.vmem [resolvable:$true] %s264
          %267 = dma.hbm_to_vmem [thread:$0]  %s262, 1024, %s265, %s253
        $region36: #{double_conv.4} parent=31 // pred_fallthru
          _
      $region32: #{double_conv.4} parent=5 // pred_fallthru
        _
      %p268 = scmp.le.s32.totalorder 1, %s24
      %p269 = scmp.lt.s32.totalorder %s24, 3
      %p270 = pnand %p268, %p269
      %p271 = pneg %p270
      // Predicated region
      $region37: #{double_conv.4} parent=5 // pred_check
        _
      $region38: #{double_conv.4} parent=5 // pred_check_branch
        %273 = sbr.rel (%p270) target = $region40
      $region39: #{double_conv.4} parent=5 // pred_region
        %s274 = ssub.s32 %s24, 1
        %s275 = sand.u32 %s37, 1
        %s276 = scalar_lea.sflag [#allocation5], %s275
        %s277 = sand.u32 %s37, 1
        %s278 = smul.addr %s277, 64
        %s279 = scalar_lea.vmem [#allocation4], %s278
        // Predicated region
        $region41: #{double_conv.4} parent=39 // pred_check
          %p280 = pneg %p50
        $region42: #{double_conv.4} parent=39 // pred_check_branch
          %282 = sbr.rel (%p280) target = $region44
        $region43: #{double_conv.4} parent=39 // pred_region
          %283 = dma.done %s276, 1024
        $region44: #{double_conv.4} parent=39 // pred_fallthru
          _
        // Predicated region
        $region45: #{double_conv.4} parent=39 // pred_check
          %p284 = pneg %p71
        $region46: #{double_conv.4} parent=39 // pred_check_branch
          %286 = sbr.rel (%p284) target = $region48
        $region47: #{double_conv.4} parent=39 // pred_region
          %287 = dma.done [#allocation8], 128
        $region48: #{double_conv.4} parent=39 // pred_fallthru
          _
        // Predicated region
        $region49: #{double_conv.4} parent=39 // pred_check
          %p288 = pneg %p92
        $region50: #{double_conv.4} parent=39 // pred_check_branch
          %290 = sbr.rel (%p288) target = $region52
        $region51: #{double_conv.4} parent=39 // pred_region
          %291 = dma.done [#allocation8], 128
        $region52: #{double_conv.4} parent=39 // pred_fallthru
          _
        // Predicated region
        $region53: #{double_conv.4} parent=39 // pred_check
          %p292 = pneg %p113
        $region54: #{double_conv.4} parent=39 // pred_check_branch
          %294 = sbr.rel (%p292) target = $region56
        $region55: #{double_conv.4} parent=39 // pred_region
          %295 = dma.done [#allocation11], 128
        $region56: #{double_conv.4} parent=39 // pred_fallthru
          _
        // Predicated region
        $region57: #{double_conv.4} parent=39 // pred_check
          %p296 = pneg %p134
        $region58: #{double_conv.4} parent=39 // pred_check_branch
          %298 = sbr.rel (%p296) target = $region60
        $region59: #{double_conv.4} parent=39 // pred_region
          %299 = dma.done [#allocation11], 256
        $region60: #{double_conv.4} parent=39 // pred_fallthru
          _
        %s300 = sand.u32 %s37, 1
        %s301 = scalar_lea.sflag [#allocation5], %s300
        %s302 = sand.u32 %s37, 1
        %s303 = smul.addr %s302, 64
        %s304 = scalar_lea.vmem [#allocation4], %s303
        %p305 = pneg %p50
        %p306 = pneg %p47
        %p307 = pneg %p71
        %p308 = pneg %p68
        %p309 = pneg %p92
        %p310 = pneg %p89
        %p311 = pneg %p113
        %p312 = pneg %p110
        %p313 = pneg %p134
        %p314 = pneg %p131
        %p315 = pneg %p160
        %p316 = pneg %p157
        %s317 = sand.u32 %s147, 1
        %s318 = scalar_lea.sflag [#allocation6], %s317
        %s319 = sand.u32 %s147, 1
        %s320 = smul.addr %s319, 64
        %s321 = scalar_lea.vmem [#allocation13], %s320
        %p322 = pneg %p186
        %p323 = pneg %p183
        %s324 = sand.u32 %s173, 1
        %s325 = scalar_lea.sflag [#allocation15], %s324
        %s326 = sand.u32 %s173, 1
        %s327 = smul.addr %s326, 2
        %s328 = scalar_lea.vmem [#allocation14], %s327
        %v329 = vld [vmem:[#allocation10] sm:$0xff]
        %v330 = vld [vmem:[%s279] sm:$0xff]
        %v331 = vld [vmem:[%s279 + $0x8] sm:$0xff]
        %v332 = vld [vmem:[%s279 + $0x10] sm:$0xff]
        %v333 = vld [vmem:[%s279 + $0x18] sm:$0xff]
        %v334 = vld [vmem:[%s279 + $0x20] sm:$0xff]
        %v335 = vld [vmem:[%s279 + $0x28] sm:$0xff]
        %v336 = vld [vmem:[%s279 + $0x30] sm:$0xff]
        %v337 = vld [vmem:[%s279 + $0x38] sm:$0xff]
        %v338 = vld [vmem:[#allocation7] sm:$0xff]
        %340 = vset.pattern.permute.xlu0 0
        %341 = vperm.xlu0 %340, %v338
        %v342 = vpop.permute.xlu0 %341
        %v344 = vmul.f32 %v330, %v342
        %v345 = vmul.f32 %v331, %v342
        %v346 = vmul.f32 %v332, %v342
        %v347 = vmul.f32 %v333, %v342
        %v348 = vmul.f32 %v334, %v342
        %v349 = vmul.f32 %v335, %v342
        %v350 = vmul.f32 %v336, %v342
        %v351 = vmul.f32 %v337, %v342
        %v352 = vld [vmem:[#allocation9] sm:$0xff]
        %354 = vset.pattern.permute.xlu0 0
        %355 = vperm.xlu0 %354, %v352
        %v356 = vpop.permute.xlu0 %355
        %v358 = vadd.f32 %v344, %v356
        %v359 = vadd.f32 %v345, %v356
        %v360 = vadd.f32 %v346, %v356
        %v361 = vadd.f32 %v347, %v356
        %v362 = vadd.f32 %v348, %v356
        %v363 = vadd.f32 %v349, %v356
        %v364 = vadd.f32 %v350, %v356
        %v365 = vadd.f32 %v351, %v356
        %v366 = vmax.f32 %v358, 0.0
        %v367 = vmax.f32 %v359, 0.0
        %v368 = vmax.f32 %v360, 0.0
        %v369 = vmax.f32 %v361, 0.0
        %v370 = vmax.f32 %v362, 0.0
        %v371 = vmax.f32 %v363, 0.0
        %v372 = vmax.f32 %v364, 0.0
        %v373 = vmax.f32 %v365, 0.0
        %v375 = vlaneseq
        %v376 = vshrl.u32 %v375, 7
        %v377 = vsub.s32 0, %v376
        %v378 = vrot.slane %v329, %v377
        %v379 = vlaneseq
        %v380 = vshrl.u32 %v379, 7
        %v381 = vsub.s32 1, %v380
        %v382 = vrot.slane %v329, %v381
        %v383 = vlaneseq
        %v384 = vshrl.u32 %v383, 7
        %v385 = vsub.s32 2, %v384
        %v386 = vrot.slane %v329, %v385
        %v387 = vlaneseq
        %v388 = vshrl.u32 %v387, 7
        %v389 = vsub.s32 3, %v388
        %v390 = vrot.slane %v329, %v389
        %v391 = vlaneseq
        %v392 = vshrl.u32 %v391, 7
        %v393 = vsub.s32 4, %v392
        %v394 = vrot.slane %v329, %v393
        %v395 = vlaneseq
        %v396 = vshrl.u32 %v395, 7
        %v397 = vsub.s32 5, %v396
        %v398 = vrot.slane %v329, %v397
        %v399 = vlaneseq
        %v400 = vshrl.u32 %v399, 7
        %v401 = vsub.s32 6, %v400
        %v402 = vrot.slane %v329, %v401
        %v403 = vlaneseq
        %v404 = vshrl.u32 %v403, 7
        %v405 = vsub.s32 7, %v404
        %v406 = vrot.slane %v329, %v405
        %v415 = vmul.f32 %v366, %v378
        %v416 = vmul.f32 %v367, %v382
        %v417 = vmul.f32 %v368, %v386
        %v418 = vmul.f32 %v369, %v390
        %v419 = vmul.f32 %v370, %v394
        %v420 = vmul.f32 %v371, %v398
        %v421 = vmul.f32 %v372, %v402
        %v422 = vmul.f32 %v373, %v406
        %423 = vst [vmem:[#allocation2] sm:$0xff] 0.0
        %vm424 = vcmask 1048384
        %425 = vst.msk [vmem:[#allocation2 + $0x40] sm:$0xff] %vm424, 0.0
        %vm426 = vcmask 850944
        %427 = vst.msk [vmem:[#allocation2 + $0x48] sm:$0xff] %vm426, 0.0
        %428 = vst [vmem:[#allocation2 + $0x8] sm:$0xff] %v415
        %429 = vst [vmem:[#allocation2 + $0x10] sm:$0xff] %v416
        %430 = vst [vmem:[#allocation2 + $0x18] sm:$0xff] %v417
        %431 = vst [vmem:[#allocation2 + $0x20] sm:$0xff] %v418
        %432 = vst [vmem:[#allocation2 + $0x28] sm:$0xff] %v419
        %433 = vst [vmem:[#allocation2 + $0x30] sm:$0xff] %v420
        %434 = vst [vmem:[#allocation2 + $0x38] sm:$0xff] %v421
        %435 = vst.msk [vmem:[#allocation2 + $0x40] sm:$0xff] %vm426, %v422
        %v436 = vld [vmem:[#allocation2] sm:$0xff]
        %v437 = vld [vmem:[#allocation2 + $0x8] sm:$0xff]
        %v438 = vld [vmem:[#allocation2 + $0x10] sm:$0xff]
        %v439 = vld [vmem:[#allocation2 + $0x18] sm:$0xff]
        %v440 = vld [vmem:[#allocation2 + $0x20] sm:$0xff]
        %v441 = vld [vmem:[#allocation2 + $0x28] sm:$0xff]
        %v442 = vld [vmem:[#allocation2 + $0x30] sm:$0xff]
        %v443 = vld [vmem:[#allocation2 + $0x38] sm:$0xff]
        %452 = vrot.lane.b32.xlu0 %v436, 111
        %v453 = vpop.permute.xlu0 %452
        %454 = vrot.lane.b32.xlu0 %v437, 111
        %v455 = vpop.permute.xlu0 %454
        %456 = vrot.lane.b32.xlu0 %v438, 111
        %v457 = vpop.permute.xlu0 %456
        %458 = vrot.lane.b32.xlu0 %v439, 111
        %v459 = vpop.permute.xlu0 %458
        %460 = vrot.lane.b32.xlu0 %v440, 111
        %v461 = vpop.permute.xlu0 %460
        %462 = vrot.lane.b32.xlu0 %v441, 111
        %v463 = vpop.permute.xlu0 %462
        %464 = vrot.lane.b32.xlu0 %v442, 111
        %v465 = vpop.permute.xlu0 %464
        %466 = vrot.lane.b32.xlu0 %v443, 111
        %v467 = vpop.permute.xlu0 %466
        %vm468 = vcmask 908288
        %v469 = vsel %vm468, %v453, %v455
        %v470 = vsel %vm468, %v455, %v457
        %v471 = vsel %vm468, %v457, %v459
        %v472 = vsel %vm468, %v459, %v461
        %v473 = vsel %vm468, %v461, %v463
        %v474 = vsel %vm468, %v463, %v465
        %v475 = vsel %vm468, %v465, %v467
        %484 = vst [vmem:[#allocation3] sm:$0xff] %v469
        %485 = vst [vmem:[#allocation3 + $0x8] sm:$0xff] %v470
        %486 = vst [vmem:[#allocation3 + $0x10] sm:$0xff] %v471
        %487 = vst [vmem:[#allocation3 + $0x18] sm:$0xff] %v472
        %488 = vst [vmem:[#allocation3 + $0x20] sm:$0xff] %v473
        %489 = vst [vmem:[#allocation3 + $0x28] sm:$0xff] %v474
        %490 = vst [vmem:[#allocation3 + $0x30] sm:$0xff] %v475
        %491 = vst.msk [vmem:[#allocation3 + $0x38] sm:$0xff] %vm426, %v467
        %v492 = vld [vmem:[#allocation2] sm:$0xff]
        %v493 = vld [vmem:[#allocation2 + $0x8] sm:$0xff]
        %v494 = vld [vmem:[#allocation2 + $0x10] sm:$0xff]
        %v495 = vld [vmem:[#allocation2 + $0x18] sm:$0xff]
        %v496 = vld [vmem:[#allocation2 + $0x20] sm:$0xff]
        %v497 = vld [vmem:[#allocation2 + $0x28] sm:$0xff]
        %v498 = vld [vmem:[#allocation2 + $0x30] sm:$0xff]
        %v499 = vld [vmem:[#allocation2 + $0x38] sm:$0xff]
        %508 = vrot.lane.b32.xlu0 %v492, 110
        %v509 = vpop.permute.xlu0 %508
        %510 = vrot.lane.b32.xlu0 %v493, 110
        %v511 = vpop.permute.xlu0 %510
        %512 = vrot.lane.b32.xlu0 %v494, 110
        %v513 = vpop.permute.xlu0 %512
        %514 = vrot.lane.b32.xlu0 %v495, 110
        %v515 = vpop.permute.xlu0 %514
        %516 = vrot.lane.b32.xlu0 %v496, 110
        %v517 = vpop.permute.xlu0 %516
        %518 = vrot.lane.b32.xlu0 %v497, 110
        %v519 = vpop.permute.xlu0 %518
        %520 = vrot.lane.b32.xlu0 %v498, 110
        %v521 = vpop.permute.xlu0 %520
        %522 = vrot.lane.b32.xlu0 %v499, 110
        %v523 = vpop.permute.xlu0 %522
        %vm524 = vcmask 900096
        %v525 = vsel %vm524, %v509, %v511
        %v526 = vsel %vm524, %v511, %v513
        %v527 = vsel %vm524, %v513, %v515
        %v528 = vsel %vm524, %v515, %v517
        %v529 = vsel %vm524, %v517, %v519
        %v530 = vsel %vm524, %v519, %v521
        %v531 = vsel %vm524, %v521, %v523
        %540 = vst [vmem:[#allocation3 + $0x40] sm:$0xff] %v525
        %541 = vst [vmem:[#allocation3 + $0x48] sm:$0xff] %v526
        %542 = vst [vmem:[#allocation3 + $0x50] sm:$0xff] %v527
        %543 = vst [vmem:[#allocation3 + $0x58] sm:$0xff] %v528
        %544 = vst [vmem:[#allocation3 + $0x60] sm:$0xff] %v529
        %545 = vst [vmem:[#allocation3 + $0x68] sm:$0xff] %v530
        %546 = vst [vmem:[#allocation3 + $0x70] sm:$0xff] %v531
        %547 = vst.msk [vmem:[#allocation3 + $0x78] sm:$0xff] %vm426, %v523
        %v548 = vld [vmem:[#allocation2] sm:$0xff]
        %v549 = vld [vmem:[#allocation2 + $0x8] sm:$0xff]
        %v550 = vld [vmem:[#allocation2 + $0x10] sm:$0xff]
        %v551 = vld [vmem:[#allocation2 + $0x18] sm:$0xff]
        %v552 = vld [vmem:[#allocation2 + $0x20] sm:$0xff]
        %v553 = vld [vmem:[#allocation2 + $0x28] sm:$0xff]
        %v554 = vld [vmem:[#allocation2 + $0x30] sm:$0xff]
        %v555 = vld [vmem:[#allocation2 + $0x38] sm:$0xff]
        %564 = vrot.lane.b32.xlu0 %v548, 109
        %v565 = vpop.permute.xlu0 %564
        %566 = vrot.lane.b32.xlu0 %v549, 109
        %v567 = vpop.permute.xlu0 %566
        %568 = vrot.lane.b32.xlu0 %v550, 109
        %v569 = vpop.permute.xlu0 %568
        %570 = vrot.lane.b32.xlu0 %v551, 109
        %v571 = vpop.permute.xlu0 %570
        %572 = vrot.lane.b32.xlu0 %v552, 109
        %v573 = vpop.permute.xlu0 %572
        %574 = vrot.lane.b32.xlu0 %v553, 109
        %v575 = vpop.permute.xlu0 %574
        %576 = vrot.lane.b32.xlu0 %v554, 109
        %v577 = vpop.permute.xlu0 %576
        %578 = vrot.lane.b32.xlu0 %v555, 109
        %v579 = vpop.permute.xlu0 %578
        %vm580 = vcmask 891904
        %v581 = vsel %vm580, %v565, %v567
        %v582 = vsel %vm580, %v567, %v569
        %v583 = vsel %vm580, %v569, %v571
        %v584 = vsel %vm580, %v571, %v573
        %v585 = vsel %vm580, %v573, %v575
        %v586 = vsel %vm580, %v575, %v577
        %v587 = vsel %vm580, %v577, %v579
        %596 = vst [vmem:[#allocation3 + $0x80] sm:$0xff] %v581
        %597 = vst [vmem:[#allocation3 + $0x88] sm:$0xff] %v582
        %598 = vst [vmem:[#allocation3 + $0x90] sm:$0xff] %v583
        %599 = vst [vmem:[#allocation3 + $0x98] sm:$0xff] %v584
        %600 = vst [vmem:[#allocation3 + $0xa0] sm:$0xff] %v585
        %601 = vst [vmem:[#allocation3 + $0xa8] sm:$0xff] %v586
        %602 = vst [vmem:[#allocation3 + $0xb0] sm:$0xff] %v587
        %603 = vst.msk [vmem:[#allocation3 + $0xb8] sm:$0xff] %vm426, %v579
        %v604 = vld [vmem:[#allocation2] sm:$0xff]
        %v605 = vld [vmem:[#allocation2 + $0x8] sm:$0xff]
        %v606 = vld [vmem:[#allocation2 + $0x10] sm:$0xff]
        %v607 = vld [vmem:[#allocation2 + $0x18] sm:$0xff]
        %v608 = vld [vmem:[#allocation2 + $0x20] sm:$0xff]
        %v609 = vld [vmem:[#allocation2 + $0x28] sm:$0xff]
        %v610 = vld [vmem:[#allocation2 + $0x30] sm:$0xff]
        %v611 = vld [vmem:[#allocation2 + $0x38] sm:$0xff]
        %v612 = vld [vmem:[#allocation2 + $0x40] sm:$0xff]
        %622 = vrot.lane.b32.xlu0 %v604, 101
        %v623 = vpop.permute.xlu0 %622
        %624 = vrot.lane.b32.xlu0 %v605, 101
        %v625 = vpop.permute.xlu0 %624
        %626 = vrot.lane.b32.xlu0 %v606, 101
        %v627 = vpop.permute.xlu0 %626
        %628 = vrot.lane.b32.xlu0 %v607, 101
        %v629 = vpop.permute.xlu0 %628
        %630 = vrot.lane.b32.xlu0 %v608, 101
        %v631 = vpop.permute.xlu0 %630
        %632 = vrot.lane.b32.xlu0 %v609, 101
        %v633 = vpop.permute.xlu0 %632
        %634 = vrot.lane.b32.xlu0 %v610, 101
        %v635 = vpop.permute.xlu0 %634
        %636 = vrot.lane.b32.xlu0 %v611, 101
        %v637 = vpop.permute.xlu0 %636
        %638 = vrot.lane.b32.xlu0 %v612, 101
        %v639 = vpop.permute.xlu0 %638
        %vm640 = vcmask 826368
        %v641 = vsel %vm640, %v623, %v625
        %v642 = vsel %vm640, %v625, %v627
        %v643 = vsel %vm640, %v627, %v629
        %v644 = vsel %vm640, %v629, %v631
        %v645 = vsel %vm640, %v631, %v633
        %v646 = vsel %vm640, %v633, %v635
        %v647 = vsel %vm640, %v635, %v637
        %v648 = vsel %vm640, %v637, %v639
        %657 = vst [vmem:[#allocation3 + $0xc0] sm:$0xff] %v641
        %658 = vst [vmem:[#allocation3 + $0xc8] sm:$0xff] %v642
        %659 = vst [vmem:[#allocation3 + $0xd0] sm:$0xff] %v643
        %660 = vst [vmem:[#allocation3 + $0xd8] sm:$0xff] %v644
        %661 = vst [vmem:[#allocation3 + $0xe0] sm:$0xff] %v645
        %662 = vst [vmem:[#allocation3 + $0xe8] sm:$0xff] %v646
        %663 = vst [vmem:[#allocation3 + $0xf0] sm:$0xff] %v647
        %664 = vst.msk [vmem:[#allocation3 + $0xf8] sm:$0xff] %vm426, %v648
        %v665 = vld [vmem:[#allocation2] sm:$0xff]
        %v666 = vld [vmem:[#allocation2 + $0x8] sm:$0xff]
        %v667 = vld [vmem:[#allocation2 + $0x10] sm:$0xff]
        %v668 = vld [vmem:[#allocation2 + $0x18] sm:$0xff]
        %v669 = vld [vmem:[#allocation2 + $0x20] sm:$0xff]
        %v670 = vld [vmem:[#allocation2 + $0x28] sm:$0xff]
        %v671 = vld [vmem:[#allocation2 + $0x30] sm:$0xff]
        %v672 = vld [vmem:[#allocation2 + $0x38] sm:$0xff]
        %v673 = vld [vmem:[#allocation2 + $0x40] sm:$0xff]
        %683 = vrot.lane.b32.xlu0 %v665, 100
        %v684 = vpop.permute.xlu0 %683
        %685 = vrot.lane.b32.xlu0 %v666, 100
        %v686 = vpop.permute.xlu0 %685
        %687 = vrot.lane.b32.xlu0 %v667, 100
        %v688 = vpop.permute.xlu0 %687
        %689 = vrot.lane.b32.xlu0 %v668, 100
        %v690 = vpop.permute.xlu0 %689
        %691 = vrot.lane.b32.xlu0 %v669, 100
        %v692 = vpop.permute.xlu0 %691
        %693 = vrot.lane.b32.xlu0 %v670, 100
        %v694 = vpop.permute.xlu0 %693
        %695 = vrot.lane.b32.xlu0 %v671, 100
        %v696 = vpop.permute.xlu0 %695
        %697 = vrot.lane.b32.xlu0 %v672, 100
        %v698 = vpop.permute.xlu0 %697
        %699 = vrot.lane.b32.xlu0 %v673, 100
        %v700 = vpop.permute.xlu0 %699
        %vm701 = vcmask 818176
        %v702 = vsel %vm701, %v684, %v686
        %v703 = vsel %vm701, %v686, %v688
        %v704 = vsel %vm701, %v688, %v690
        %v705 = vsel %vm701, %v690, %v692
        %v706 = vsel %vm701, %v692, %v694
        %v707 = vsel %vm701, %v694, %v696
        %v708 = vsel %vm701, %v696, %v698
        %v709 = vsel %vm701, %v698, %v700
        %718 = vst [vmem:[#allocation3 + $0x100] sm:$0xff] %v702
        %719 = vst [vmem:[#allocation3 + $0x108] sm:$0xff] %v703
        %720 = vst [vmem:[#allocation3 + $0x110] sm:$0xff] %v704
        %721 = vst [vmem:[#allocation3 + $0x118] sm:$0xff] %v705
        %722 = vst [vmem:[#allocation3 + $0x120] sm:$0xff] %v706
        %723 = vst [vmem:[#allocation3 + $0x128] sm:$0xff] %v707
        %724 = vst [vmem:[#allocation3 + $0x130] sm:$0xff] %v708
        %725 = vst.msk [vmem:[#allocation3 + $0x138] sm:$0xff] %vm426, %v709
        %v726 = vld [vmem:[#allocation2] sm:$0xff]
        %v727 = vld [vmem:[#allocation2 + $0x8] sm:$0xff]
        %v728 = vld [vmem:[#allocation2 + $0x10] sm:$0xff]
        %v729 = vld [vmem:[#allocation2 + $0x18] sm:$0xff]
        %v730 = vld [vmem:[#allocation2 + $0x20] sm:$0xff]
        %v731 = vld [vmem:[#allocation2 + $0x28] sm:$0xff]
        %v732 = vld [vmem:[#allocation2 + $0x30] sm:$0xff]
        %v733 = vld [vmem:[#allocation2 + $0x38] sm:$0xff]
        %v734 = vld [vmem:[#allocation2 + $0x40] sm:$0xff]
        %744 = vrot.lane.b32.xlu0 %v726, 99
        %v745 = vpop.permute.xlu0 %744
        %746 = vrot.lane.b32.xlu0 %v727, 99
        %v747 = vpop.permute.xlu0 %746
        %748 = vrot.lane.b32.xlu0 %v728, 99
        %v749 = vpop.permute.xlu0 %748
        %750 = vrot.lane.b32.xlu0 %v729, 99
        %v751 = vpop.permute.xlu0 %750
        %752 = vrot.lane.b32.xlu0 %v730, 99
        %v753 = vpop.permute.xlu0 %752
        %754 = vrot.lane.b32.xlu0 %v731, 99
        %v755 = vpop.permute.xlu0 %754
        %756 = vrot.lane.b32.xlu0 %v732, 99
        %v757 = vpop.permute.xlu0 %756
        %758 = vrot.lane.b32.xlu0 %v733, 99
        %v759 = vpop.permute.xlu0 %758
        %760 = vrot.lane.b32.xlu0 %v734, 99
        %v761 = vpop.permute.xlu0 %760
        %vm762 = vcmask 809984
        %v763 = vsel %vm762, %v745, %v747
        %v764 = vsel %vm762, %v747, %v749
        %v765 = vsel %vm762, %v749, %v751
        %v766 = vsel %vm762, %v751, %v753
        %v767 = vsel %vm762, %v753, %v755
        %v768 = vsel %vm762, %v755, %v757
        %v769 = vsel %vm762, %v757, %v759
        %v770 = vsel %vm762, %v759, %v761
        %779 = vst [vmem:[#allocation3 + $0x140] sm:$0xff] %v763
        %780 = vst [vmem:[#allocation3 + $0x148] sm:$0xff] %v764
        %781 = vst [vmem:[#allocation3 + $0x150] sm:$0xff] %v765
        %782 = vst [vmem:[#allocation3 + $0x158] sm:$0xff] %v766
        %783 = vst [vmem:[#allocation3 + $0x160] sm:$0xff] %v767
        %784 = vst [vmem:[#allocation3 + $0x168] sm:$0xff] %v768
        %785 = vst [vmem:[#allocation3 + $0x170] sm:$0xff] %v769
        %786 = vst.msk [vmem:[#allocation3 + $0x178] sm:$0xff] %vm426, %v770
        %v787 = vld [vmem:[#allocation2] sm:$0xff]
        %v788 = vld [vmem:[#allocation2 + $0x8] sm:$0xff]
        %v789 = vld [vmem:[#allocation2 + $0x10] sm:$0xff]
        %v790 = vld [vmem:[#allocation2 + $0x18] sm:$0xff]
        %v791 = vld [vmem:[#allocation2 + $0x20] sm:$0xff]
        %v792 = vld [vmem:[#allocation2 + $0x28] sm:$0xff]
        %v793 = vld [vmem:[#allocation2 + $0x30] sm:$0xff]
        %v794 = vld [vmem:[#allocation2 + $0x38] sm:$0xff]
        %v795 = vld [vmem:[#allocation2 + $0x40] sm:$0xff]
        %805 = vrot.lane.b32.xlu0 %v787, 91
        %v806 = vpop.permute.xlu0 %805
        %807 = vrot.lane.b32.xlu0 %v788, 91
        %v808 = vpop.permute.xlu0 %807
        %809 = vrot.lane.b32.xlu0 %v789, 91
        %v810 = vpop.permute.xlu0 %809
        %811 = vrot.lane.b32.xlu0 %v790, 91
        %v812 = vpop.permute.xlu0 %811
        %813 = vrot.lane.b32.xlu0 %v791, 91
        %v814 = vpop.permute.xlu0 %813
        %815 = vrot.lane.b32.xlu0 %v792, 91
        %v816 = vpop.permute.xlu0 %815
        %817 = vrot.lane.b32.xlu0 %v793, 91
        %v818 = vpop.permute.xlu0 %817
        %819 = vrot.lane.b32.xlu0 %v794, 91
        %v820 = vpop.permute.xlu0 %819
        %821 = vrot.lane.b32.xlu0 %v795, 91
        %v822 = vpop.permute.xlu0 %821
        %vm823 = vcmask 744448
        %v824 = vsel %vm823, %v806, %v808
        %v825 = vsel %vm823, %v808, %v810
        %v826 = vsel %vm823, %v810, %v812
        %v827 = vsel %vm823, %v812, %v814
        %v828 = vsel %vm823, %v814, %v816
        %v829 = vsel %vm823, %v816, %v818
        %v830 = vsel %vm823, %v818, %v820
        %v831 = vsel %vm823, %v820, %v822
        %840 = vst [vmem:[#allocation3 + $0x180] sm:$0xff] %v824
        %841 = vst [vmem:[#allocation3 + $0x188] sm:$0xff] %v825
        %842 = vst [vmem:[#allocation3 + $0x190] sm:$0xff] %v826
        %843 = vst [vmem:[#allocation3 + $0x198] sm:$0xff] %v827
        %844 = vst [vmem:[#allocation3 + $0x1a0] sm:$0xff] %v828
        %845 = vst [vmem:[#allocation3 + $0x1a8] sm:$0xff] %v829
        %846 = vst [vmem:[#allocation3 + $0x1b0] sm:$0xff] %v830
        %847 = vst.msk [vmem:[#allocation3 + $0x1b8] sm:$0xff] %vm426, %v831
        %v848 = vld [vmem:[#allocation2] sm:$0xff]
        %v849 = vld [vmem:[#allocation2 + $0x8] sm:$0xff]
        %v850 = vld [vmem:[#allocation2 + $0x10] sm:$0xff]
        %v851 = vld [vmem:[#allocation2 + $0x18] sm:$0xff]
        %v852 = vld [vmem:[#allocation2 + $0x20] sm:$0xff]
        %v853 = vld [vmem:[#allocation2 + $0x28] sm:$0xff]
        %v854 = vld [vmem:[#allocation2 + $0x30] sm:$0xff]
        %v855 = vld [vmem:[#allocation2 + $0x38] sm:$0xff]
        %v856 = vld [vmem:[#allocation2 + $0x40] sm:$0xff]
        %866 = vrot.lane.b32.xlu0 %v848, 90
        %v867 = vpop.permute.xlu0 %866
        %868 = vrot.lane.b32.xlu0 %v849, 90
        %v869 = vpop.permute.xlu0 %868
        %870 = vrot.lane.b32.xlu0 %v850, 90
        %v871 = vpop.permute.xlu0 %870
        %872 = vrot.lane.b32.xlu0 %v851, 90
        %v873 = vpop.permute.xlu0 %872
        %874 = vrot.lane.b32.xlu0 %v852, 90
        %v875 = vpop.permute.xlu0 %874
        %876 = vrot.lane.b32.xlu0 %v853, 90
        %v877 = vpop.permute.xlu0 %876
        %878 = vrot.lane.b32.xlu0 %v854, 90
        %v879 = vpop.permute.xlu0 %878
        %880 = vrot.lane.b32.xlu0 %v855, 90
        %v881 = vpop.permute.xlu0 %880
        %882 = vrot.lane.b32.xlu0 %v856, 90
        %v883 = vpop.permute.xlu0 %882
        %vm884 = vcmask 736256
        %v885 = vsel %vm884, %v867, %v869
        %v886 = vsel %vm884, %v869, %v871
        %v887 = vsel %vm884, %v871, %v873
        %v888 = vsel %vm884, %v873, %v875
        %v889 = vsel %vm884, %v875, %v877
        %v890 = vsel %vm884, %v877, %v879
        %v891 = vsel %vm884, %v879, %v881
        %v892 = vsel %vm884, %v881, %v883
        %901 = vst [vmem:[#allocation3 + $0x1c0] sm:$0xff] %v885
        %902 = vst [vmem:[#allocation3 + $0x1c8] sm:$0xff] %v886
        %903 = vst [vmem:[#allocation3 + $0x1d0] sm:$0xff] %v887
        %904 = vst [vmem:[#allocation3 + $0x1d8] sm:$0xff] %v888
        %905 = vst [vmem:[#allocation3 + $0x1e0] sm:$0xff] %v889
        %906 = vst [vmem:[#allocation3 + $0x1e8] sm:$0xff] %v890
        %907 = vst [vmem:[#allocation3 + $0x1f0] sm:$0xff] %v891
        %908 = vst.msk [vmem:[#allocation3 + $0x1f8] sm:$0xff] %vm426, %v892
        %v909 = vld [vmem:[#allocation2] sm:$0xff]
        %v910 = vld [vmem:[#allocation2 + $0x8] sm:$0xff]
        %v911 = vld [vmem:[#allocation2 + $0x10] sm:$0xff]
        %v912 = vld [vmem:[#allocation2 + $0x18] sm:$0xff]
        %v913 = vld [vmem:[#allocation2 + $0x20] sm:$0xff]
        %v914 = vld [vmem:[#allocation2 + $0x28] sm:$0xff]
        %v915 = vld [vmem:[#allocation2 + $0x30] sm:$0xff]
        %v916 = vld [vmem:[#allocation2 + $0x38] sm:$0xff]
        %v917 = vld [vmem:[#allocation2 + $0x40] sm:$0xff]
        %927 = vrot.lane.b32.xlu0 %v909, 89
        %v928 = vpop.permute.xlu0 %927
        %929 = vrot.lane.b32.xlu0 %v910, 89
        %v930 = vpop.permute.xlu0 %929
        %931 = vrot.lane.b32.xlu0 %v911, 89
        %v932 = vpop.permute.xlu0 %931
        %933 = vrot.lane.b32.xlu0 %v912, 89
        %v934 = vpop.permute.xlu0 %933
        %935 = vrot.lane.b32.xlu0 %v913, 89
        %v936 = vpop.permute.xlu0 %935
        %937 = vrot.lane.b32.xlu0 %v914, 89
        %v938 = vpop.permute.xlu0 %937
        %939 = vrot.lane.b32.xlu0 %v915, 89
        %v940 = vpop.permute.xlu0 %939
        %941 = vrot.lane.b32.xlu0 %v916, 89
        %v942 = vpop.permute.xlu0 %941
        %943 = vrot.lane.b32.xlu0 %v917, 89
        %v944 = vpop.permute.xlu0 %943
        %vm945 = vcmask 728064
        %v946 = vsel %vm945, %v928, %v930
        %v947 = vsel %vm945, %v930, %v932
        %v948 = vsel %vm945, %v932, %v934
        %v949 = vsel %vm945, %v934, %v936
        %v950 = vsel %vm945, %v936, %v938
        %v951 = vsel %vm945, %v938, %v940
        %v952 = vsel %vm945, %v940, %v942
        %v953 = vsel %vm945, %v942, %v944
        %962 = vst [vmem:[#allocation3 + $0x200] sm:$0xff] %v946
        %963 = vst [vmem:[#allocation3 + $0x208] sm:$0xff] %v947
        %964 = vst [vmem:[#allocation3 + $0x210] sm:$0xff] %v948
        %965 = vst [vmem:[#allocation3 + $0x218] sm:$0xff] %v949
        %966 = vst [vmem:[#allocation3 + $0x220] sm:$0xff] %v950
        %967 = vst [vmem:[#allocation3 + $0x228] sm:$0xff] %v951
        %968 = vst [vmem:[#allocation3 + $0x230] sm:$0xff] %v952
        %969 = vst.msk [vmem:[#allocation3 + $0x238] sm:$0xff] %vm426, %v953
        %v970 = vld [vmem:[#allocation2] sm:$0xff]
        %v971 = vld [vmem:[#allocation2 + $0x8] sm:$0xff]
        %v972 = vld [vmem:[#allocation2 + $0x10] sm:$0xff]
        %v973 = vld [vmem:[#allocation2 + $0x18] sm:$0xff]
        %v974 = vld [vmem:[#allocation2 + $0x20] sm:$0xff]
        %v975 = vld [vmem:[#allocation2 + $0x28] sm:$0xff]
        %v976 = vld [vmem:[#allocation2 + $0x30] sm:$0xff]
        %v977 = vld [vmem:[#allocation2 + $0x38] sm:$0xff]
        %v978 = vld [vmem:[#allocation2 + $0x40] sm:$0xff]
        %988 = vrot.lane.b32.xlu0 %v970, 11
        %v989 = vpop.permute.xlu0 %988
        %990 = vrot.lane.b32.xlu0 %v971, 11
        %v991 = vpop.permute.xlu0 %990
        %992 = vrot.lane.b32.xlu0 %v972, 11
        %v993 = vpop.permute.xlu0 %992
        %994 = vrot.lane.b32.xlu0 %v973, 11
        %v995 = vpop.permute.xlu0 %994
        %996 = vrot.lane.b32.xlu0 %v974, 11
        %v997 = vpop.permute.xlu0 %996
        %998 = vrot.lane.b32.xlu0 %v975, 11
        %v999 = vpop.permute.xlu0 %998
        %1000 = vrot.lane.b32.xlu0 %v976, 11
        %v1001 = vpop.permute.xlu0 %1000
        %1002 = vrot.lane.b32.xlu0 %v977, 11
        %v1003 = vpop.permute.xlu0 %1002
        %1004 = vrot.lane.b32.xlu0 %v978, 11
        %v1005 = vpop.permute.xlu0 %1004
        %vm1006 = vcmask 89088
        %v1007 = vsel %vm1006, %v989, %v991
        %v1008 = vsel %vm1006, %v991, %v993
        %v1009 = vsel %vm1006, %v993, %v995
        %v1010 = vsel %vm1006, %v995, %v997
        %v1011 = vsel %vm1006, %v997, %v999
        %v1012 = vsel %vm1006, %v999, %v1001
        %v1013 = vsel %vm1006, %v1001, %v1003
        %v1014 = vsel %vm1006, %v1003, %v1005
        %1023 = vst [vmem:[#allocation3 + $0x240] sm:$0xff] %v1007
        %1024 = vst [vmem:[#allocation3 + $0x248] sm:$0xff] %v1008
        %1025 = vst [vmem:[#allocation3 + $0x250] sm:$0xff] %v1009
        %1026 = vst [vmem:[#allocation3 + $0x258] sm:$0xff] %v1010
        %1027 = vst [vmem:[#allocation3 + $0x260] sm:$0xff] %v1011
        %1028 = vst [vmem:[#allocation3 + $0x268] sm:$0xff] %v1012
        %1029 = vst [vmem:[#allocation3 + $0x270] sm:$0xff] %v1013
        %1030 = vst.msk [vmem:[#allocation3 + $0x278] sm:$0xff] %vm426, %v1014
        %v1031 = vld [vmem:[#allocation2] sm:$0xff]
        %v1032 = vld [vmem:[#allocation2 + $0x8] sm:$0xff]
        %v1033 = vld [vmem:[#allocation2 + $0x10] sm:$0xff]
        %v1034 = vld [vmem:[#allocation2 + $0x18] sm:$0xff]
        %v1035 = vld [vmem:[#allocation2 + $0x20] sm:$0xff]
        %v1036 = vld [vmem:[#allocation2 + $0x28] sm:$0xff]
        %v1037 = vld [vmem:[#allocation2 + $0x30] sm:$0xff]
        %v1038 = vld [vmem:[#allocation2 + $0x38] sm:$0xff]
        %v1039 = vld [vmem:[#allocation2 + $0x40] sm:$0xff]
        %1049 = vrot.lane.b32.xlu0 %v1031, 10
        %v1050 = vpop.permute.xlu0 %1049
        %1051 = vrot.lane.b32.xlu0 %v1032, 10
        %v1052 = vpop.permute.xlu0 %1051
        %1053 = vrot.lane.b32.xlu0 %v1033, 10
        %v1054 = vpop.permute.xlu0 %1053
        %1055 = vrot.lane.b32.xlu0 %v1034, 10
        %v1056 = vpop.permute.xlu0 %1055
        %1057 = vrot.lane.b32.xlu0 %v1035, 10
        %v1058 = vpop.permute.xlu0 %1057
        %1059 = vrot.lane.b32.xlu0 %v1036, 10
        %v1060 = vpop.permute.xlu0 %1059
        %1061 = vrot.lane.b32.xlu0 %v1037, 10
        %v1062 = vpop.permute.xlu0 %1061
        %1063 = vrot.lane.b32.xlu0 %v1038, 10
        %v1064 = vpop.permute.xlu0 %1063
        %1065 = vrot.lane.b32.xlu0 %v1039, 10
        %v1066 = vpop.permute.xlu0 %1065
        %vm1067 = vcmask 80896
        %v1068 = vsel %vm1067, %v1050, %v1052
        %v1069 = vsel %vm1067, %v1052, %v1054
        %v1070 = vsel %vm1067, %v1054, %v1056
        %v1071 = vsel %vm1067, %v1056, %v1058
        %v1072 = vsel %vm1067, %v1058, %v1060
        %v1073 = vsel %vm1067, %v1060, %v1062
        %v1074 = vsel %vm1067, %v1062, %v1064
        %v1075 = vsel %vm1067, %v1064, %v1066
        %1084 = vst [vmem:[#allocation3 + $0x280] sm:$0xff] %v1068
        %1085 = vst [vmem:[#allocation3 + $0x288] sm:$0xff] %v1069
        %1086 = vst [vmem:[#allocation3 + $0x290] sm:$0xff] %v1070
        %1087 = vst [vmem:[#allocation3 + $0x298] sm:$0xff] %v1071
        %1088 = vst [vmem:[#allocation3 + $0x2a0] sm:$0xff] %v1072
        %1089 = vst [vmem:[#allocation3 + $0x2a8] sm:$0xff] %v1073
        %1090 = vst [vmem:[#allocation3 + $0x2b0] sm:$0xff] %v1074
        %1091 = vst.msk [vmem:[#allocation3 + $0x2b8] sm:$0xff] %vm426, %v1075
        %v1092 = vld [vmem:[#allocation2] sm:$0xff]
        %v1093 = vld [vmem:[#allocation2 + $0x8] sm:$0xff]
        %v1094 = vld [vmem:[#allocation2 + $0x10] sm:$0xff]
        %v1095 = vld [vmem:[#allocation2 + $0x18] sm:$0xff]
        %v1096 = vld [vmem:[#allocation2 + $0x20] sm:$0xff]
        %v1097 = vld [vmem:[#allocation2 + $0x28] sm:$0xff]
        %v1098 = vld [vmem:[#allocation2 + $0x30] sm:$0xff]
        %v1099 = vld [vmem:[#allocation2 + $0x38] sm:$0xff]
        %v1100 = vld [vmem:[#allocation2 + $0x40] sm:$0xff]
        %1110 = vrot.lane.b32.xlu0 %v1092, 9
        %v1111 = vpop.permute.xlu0 %1110
        %1112 = vrot.lane.b32.xlu0 %v1093, 9
        %v1113 = vpop.permute.xlu0 %1112
        %1114 = vrot.lane.b32.xlu0 %v1094, 9
        %v1115 = vpop.permute.xlu0 %1114
        %1116 = vrot.lane.b32.xlu0 %v1095, 9
        %v1117 = vpop.permute.xlu0 %1116
        %1118 = vrot.lane.b32.xlu0 %v1096, 9
        %v1119 = vpop.permute.xlu0 %1118
        %1120 = vrot.lane.b32.xlu0 %v1097, 9
        %v1121 = vpop.permute.xlu0 %1120
        %1122 = vrot.lane.b32.xlu0 %v1098, 9
        %v1123 = vpop.permute.xlu0 %1122
        %1124 = vrot.lane.b32.xlu0 %v1099, 9
        %v1125 = vpop.permute.xlu0 %1124
        %1126 = vrot.lane.b32.xlu0 %v1100, 9
        %v1127 = vpop.permute.xlu0 %1126
        %vm1128 = vcmask 72704
        %v1129 = vsel %vm1128, %v1111, %v1113
        %v1130 = vsel %vm1128, %v1113, %v1115
        %v1131 = vsel %vm1128, %v1115, %v1117
        %v1132 = vsel %vm1128, %v1117, %v1119
        %v1133 = vsel %vm1128, %v1119, %v1121
        %v1134 = vsel %vm1128, %v1121, %v1123
        %v1135 = vsel %vm1128, %v1123, %v1125
        %v1136 = vsel %vm1128, %v1125, %v1127
        %1145 = vst [vmem:[#allocation3 + $0x2c0] sm:$0xff] %v1129
        %1146 = vst [vmem:[#allocation3 + $0x2c8] sm:$0xff] %v1130
        %1147 = vst [vmem:[#allocation3 + $0x2d0] sm:$0xff] %v1131
        %1148 = vst [vmem:[#allocation3 + $0x2d8] sm:$0xff] %v1132
        %1149 = vst [vmem:[#allocation3 + $0x2e0] sm:$0xff] %v1133
        %1150 = vst [vmem:[#allocation3 + $0x2e8] sm:$0xff] %v1134
        %1151 = vst [vmem:[#allocation3 + $0x2f0] sm:$0xff] %v1135
        %1152 = vst.msk [vmem:[#allocation3 + $0x2f8] sm:$0xff] %vm426, %v1136
        %v1153 = vld [vmem:[#allocation2] sm:$0xff]
        %v1154 = vld [vmem:[#allocation2 + $0x8] sm:$0xff]
        %v1155 = vld [vmem:[#allocation2 + $0x10] sm:$0xff]
        %v1156 = vld [vmem:[#allocation2 + $0x18] sm:$0xff]
        %v1157 = vld [vmem:[#allocation2 + $0x20] sm:$0xff]
        %v1158 = vld [vmem:[#allocation2 + $0x28] sm:$0xff]
        %v1159 = vld [vmem:[#allocation2 + $0x30] sm:$0xff]
        %v1160 = vld [vmem:[#allocation2 + $0x38] sm:$0xff]
        %v1161 = vld [vmem:[#allocation2 + $0x40] sm:$0xff]
        %1171 = vrot.lane.b32.xlu0 %v1153, 1
        %v1172 = vpop.permute.xlu0 %1171
        %1173 = vrot.lane.b32.xlu0 %v1154, 1
        %v1174 = vpop.permute.xlu0 %1173
        %1175 = vrot.lane.b32.xlu0 %v1155, 1
        %v1176 = vpop.permute.xlu0 %1175
        %1177 = vrot.lane.b32.xlu0 %v1156, 1
        %v1178 = vpop.permute.xlu0 %1177
        %1179 = vrot.lane.b32.xlu0 %v1157, 1
        %v1180 = vpop.permute.xlu0 %1179
        %1181 = vrot.lane.b32.xlu0 %v1158, 1
        %v1182 = vpop.permute.xlu0 %1181
        %1183 = vrot.lane.b32.xlu0 %v1159, 1
        %v1184 = vpop.permute.xlu0 %1183
        %1185 = vrot.lane.b32.xlu0 %v1160, 1
        %v1186 = vpop.permute.xlu0 %1185
        %1187 = vrot.lane.b32.xlu0 %v1161, 1
        %v1188 = vpop.permute.xlu0 %1187
        %vm1189 = vcmask 7168
        %v1190 = vsel %vm1189, %v1172, %v1174
        %v1191 = vsel %vm1189, %v1174, %v1176
        %v1192 = vsel %vm1189, %v1176, %v1178
        %v1193 = vsel %vm1189, %v1178, %v1180
        %v1194 = vsel %vm1189, %v1180, %v1182
        %v1195 = vsel %vm1189, %v1182, %v1184
        %v1196 = vsel %vm1189, %v1184, %v1186
        %v1197 = vsel %vm1189, %v1186, %v1188
        %1206 = vst [vmem:[#allocation3 + $0x300] sm:$0xff] %v1190
        %1207 = vst [vmem:[#allocation3 + $0x308] sm:$0xff] %v1191
        %1208 = vst [vmem:[#allocation3 + $0x310] sm:$0xff] %v1192
        %1209 = vst [vmem:[#allocation3 + $0x318] sm:$0xff] %v1193
        %1210 = vst [vmem:[#allocation3 + $0x320] sm:$0xff] %v1194
        %1211 = vst [vmem:[#allocation3 + $0x328] sm:$0xff] %v1195
        %1212 = vst [vmem:[#allocation3 + $0x330] sm:$0xff] %v1196
        %1213 = vst.msk [vmem:[#allocation3 + $0x338] sm:$0xff] %vm426, %v1197
        %v1214 = vld [vmem:[#allocation2 + $0x8] sm:$0xff]
        %v1215 = vld [vmem:[#allocation2 + $0x10] sm:$0xff]
        %v1216 = vld [vmem:[#allocation2 + $0x18] sm:$0xff]
        %v1217 = vld [vmem:[#allocation2 + $0x20] sm:$0xff]
        %v1218 = vld [vmem:[#allocation2 + $0x28] sm:$0xff]
        %v1219 = vld [vmem:[#allocation2 + $0x30] sm:$0xff]
        %v1220 = vld [vmem:[#allocation2 + $0x38] sm:$0xff]
        %v1221 = vld [vmem:[#allocation2 + $0x40] sm:$0xff]
        %1222 = vst [vmem:[#allocation3 + $0x340] sm:$0xff] %v1214
        %1223 = vst [vmem:[#allocation3 + $0x348] sm:$0xff] %v1215
        %1224 = vst [vmem:[#allocation3 + $0x350] sm:$0xff] %v1216
        %1225 = vst [vmem:[#allocation3 + $0x358] sm:$0xff] %v1217
        %1226 = vst [vmem:[#allocation3 + $0x360] sm:$0xff] %v1218
        %1227 = vst [vmem:[#allocation3 + $0x368] sm:$0xff] %v1219
        %1228 = vst [vmem:[#allocation3 + $0x370] sm:$0xff] %v1220
        %1229 = vst.msk [vmem:[#allocation3 + $0x378] sm:$0xff] %vm426, %v1221
        %v1230 = vld [vmem:[#allocation2 + $0x8] sm:$0xff]
        %v1231 = vld [vmem:[#allocation2 + $0x10] sm:$0xff]
        %v1232 = vld [vmem:[#allocation2 + $0x18] sm:$0xff]
        %v1233 = vld [vmem:[#allocation2 + $0x20] sm:$0xff]
        %v1234 = vld [vmem:[#allocation2 + $0x28] sm:$0xff]
        %v1235 = vld [vmem:[#allocation2 + $0x30] sm:$0xff]
        %v1236 = vld [vmem:[#allocation2 + $0x38] sm:$0xff]
        %v1237 = vld [vmem:[#allocation2 + $0x40] sm:$0xff]
        %1246 = vrot.lane.b32.xlu0 %v1230, 127
        %v1247 = vpop.permute.xlu0 %1246
        %1248 = vrot.lane.b32.xlu0 %v1231, 127
        %v1249 = vpop.permute.xlu0 %1248
        %1250 = vrot.lane.b32.xlu0 %v1232, 127
        %v1251 = vpop.permute.xlu0 %1250
        %1252 = vrot.lane.b32.xlu0 %v1233, 127
        %v1253 = vpop.permute.xlu0 %1252
        %1254 = vrot.lane.b32.xlu0 %v1234, 127
        %v1255 = vpop.permute.xlu0 %1254
        %1256 = vrot.lane.b32.xlu0 %v1235, 127
        %v1257 = vpop.permute.xlu0 %1256
        %1258 = vrot.lane.b32.xlu0 %v1236, 127
        %v1259 = vpop.permute.xlu0 %1258
        %1260 = vrot.lane.b32.xlu0 %v1237, 127
        %v1261 = vpop.permute.xlu0 %1260
        %vm1262 = vcmask 1039360
        %v1263 = vsel %vm1262, %v1247, %v1249
        %v1264 = vsel %vm1262, %v1249, %v1251
        %v1265 = vsel %vm1262, %v1251, %v1253
        %v1266 = vsel %vm1262, %v1253, %v1255
        %v1267 = vsel %vm1262, %v1255, %v1257
        %v1268 = vsel %vm1262, %v1257, %v1259
        %v1269 = vsel %vm1262, %v1259, %v1261
        %1278 = vst [vmem:[#allocation3 + $0x380] sm:$0xff] %v1263
        %1279 = vst [vmem:[#allocation3 + $0x388] sm:$0xff] %v1264
        %1280 = vst [vmem:[#allocation3 + $0x390] sm:$0xff] %v1265
        %1281 = vst [vmem:[#allocation3 + $0x398] sm:$0xff] %v1266
        %1282 = vst [vmem:[#allocation3 + $0x3a0] sm:$0xff] %v1267
        %1283 = vst [vmem:[#allocation3 + $0x3a8] sm:$0xff] %v1268
        %1284 = vst [vmem:[#allocation3 + $0x3b0] sm:$0xff] %v1269
        %1285 = vst.msk [vmem:[#allocation3 + $0x3b8] sm:$0xff] %vm426, %v1261
        %v1286 = vld [vmem:[#allocation2 + $0x8] sm:$0xff]
        %v1287 = vld [vmem:[#allocation2 + $0x10] sm:$0xff]
        %v1288 = vld [vmem:[#allocation2 + $0x18] sm:$0xff]
        %v1289 = vld [vmem:[#allocation2 + $0x20] sm:$0xff]
        %v1290 = vld [vmem:[#allocation2 + $0x28] sm:$0xff]
        %v1291 = vld [vmem:[#allocation2 + $0x30] sm:$0xff]
        %v1292 = vld [vmem:[#allocation2 + $0x38] sm:$0xff]
        %v1293 = vld [vmem:[#allocation2 + $0x40] sm:$0xff]
        %1302 = vrot.lane.b32.xlu0 %v1286, 119
        %v1303 = vpop.permute.xlu0 %1302
        %1304 = vrot.lane.b32.xlu0 %v1287, 119
        %v1305 = vpop.permute.xlu0 %1304
        %1306 = vrot.lane.b32.xlu0 %v1288, 119
        %v1307 = vpop.permute.xlu0 %1306
        %1308 = vrot.lane.b32.xlu0 %v1289, 119
        %v1309 = vpop.permute.xlu0 %1308
        %1310 = vrot.lane.b32.xlu0 %v1290, 119
        %v1311 = vpop.permute.xlu0 %1310
        %1312 = vrot.lane.b32.xlu0 %v1291, 119
        %v1313 = vpop.permute.xlu0 %1312
        %1314 = vrot.lane.b32.xlu0 %v1292, 119
        %v1315 = vpop.permute.xlu0 %1314
        %1316 = vrot.lane.b32.xlu0 %v1293, 119
        %v1317 = vpop.permute.xlu0 %1316
        %vm1318 = vcmask 973824
        %v1319 = vsel %vm1318, %v1303, %v1305
        %v1320 = vsel %vm1318, %v1305, %v1307
        %v1321 = vsel %vm1318, %v1307, %v1309
        %v1322 = vsel %vm1318, %v1309, %v1311
        %v1323 = vsel %vm1318, %v1311, %v1313
        %v1324 = vsel %vm1318, %v1313, %v1315
        %v1325 = vsel %vm1318, %v1315, %v1317
        %1334 = vst [vmem:[#allocation3 + $0x3c0] sm:$0xff] %v1319
        %1335 = vst [vmem:[#allocation3 + $0x3c8] sm:$0xff] %v1320
        %1336 = vst [vmem:[#allocation3 + $0x3d0] sm:$0xff] %v1321
        %1337 = vst [vmem:[#allocation3 + $0x3d8] sm:$0xff] %v1322
        %1338 = vst [vmem:[#allocation3 + $0x3e0] sm:$0xff] %v1323
        %1339 = vst [vmem:[#allocation3 + $0x3e8] sm:$0xff] %v1324
        %1340 = vst [vmem:[#allocation3 + $0x3f0] sm:$0xff] %v1325
        %1341 = vst.msk [vmem:[#allocation3 + $0x3f8] sm:$0xff] %vm426, %v1317
        %v1342 = vld [vmem:[#allocation2 + $0x8] sm:$0xff]
        %v1343 = vld [vmem:[#allocation2 + $0x10] sm:$0xff]
        %v1344 = vld [vmem:[#allocation2 + $0x18] sm:$0xff]
        %v1345 = vld [vmem:[#allocation2 + $0x20] sm:$0xff]
        %v1346 = vld [vmem:[#allocation2 + $0x28] sm:$0xff]
        %v1347 = vld [vmem:[#allocation2 + $0x30] sm:$0xff]
        %v1348 = vld [vmem:[#allocation2 + $0x38] sm:$0xff]
        %v1349 = vld [vmem:[#allocation2 + $0x40] sm:$0xff]
        %1358 = vrot.lane.b32.xlu0 %v1342, 118
        %v1359 = vpop.permute.xlu0 %1358
        %1360 = vrot.lane.b32.xlu0 %v1343, 118
        %v1361 = vpop.permute.xlu0 %1360
        %1362 = vrot.lane.b32.xlu0 %v1344, 118
        %v1363 = vpop.permute.xlu0 %1362
        %1364 = vrot.lane.b32.xlu0 %v1345, 118
        %v1365 = vpop.permute.xlu0 %1364
        %1366 = vrot.lane.b32.xlu0 %v1346, 118
        %v1367 = vpop.permute.xlu0 %1366
        %1368 = vrot.lane.b32.xlu0 %v1347, 118
        %v1369 = vpop.permute.xlu0 %1368
        %1370 = vrot.lane.b32.xlu0 %v1348, 118
        %v1371 = vpop.permute.xlu0 %1370
        %1372 = vrot.lane.b32.xlu0 %v1349, 118
        %v1373 = vpop.permute.xlu0 %1372
        %vm1374 = vcmask 965632
        %v1375 = vsel %vm1374, %v1359, %v1361
        %v1376 = vsel %vm1374, %v1361, %v1363
        %v1377 = vsel %vm1374, %v1363, %v1365
        %v1378 = vsel %vm1374, %v1365, %v1367
        %v1379 = vsel %vm1374, %v1367, %v1369
        %v1380 = vsel %vm1374, %v1369, %v1371
        %v1381 = vsel %vm1374, %v1371, %v1373
        %1390 = vst [vmem:[#allocation3 + $0x400] sm:$0xff] %v1375
        %1391 = vst [vmem:[#allocation3 + $0x408] sm:$0xff] %v1376
        %1392 = vst [vmem:[#allocation3 + $0x410] sm:$0xff] %v1377
        %1393 = vst [vmem:[#allocation3 + $0x418] sm:$0xff] %v1378
        %1394 = vst [vmem:[#allocation3 + $0x420] sm:$0xff] %v1379
        %1395 = vst [vmem:[#allocation3 + $0x428] sm:$0xff] %v1380
        %1396 = vst [vmem:[#allocation3 + $0x430] sm:$0xff] %v1381
        %1397 = vst.msk [vmem:[#allocation3 + $0x438] sm:$0xff] %vm426, %v1373
        %v1398 = vld [vmem:[#allocation2 + $0x8] sm:$0xff]
        %v1399 = vld [vmem:[#allocation2 + $0x10] sm:$0xff]
        %v1400 = vld [vmem:[#allocation2 + $0x18] sm:$0xff]
        %v1401 = vld [vmem:[#allocation2 + $0x20] sm:$0xff]
        %v1402 = vld [vmem:[#allocation2 + $0x28] sm:$0xff]
        %v1403 = vld [vmem:[#allocation2 + $0x30] sm:$0xff]
        %v1404 = vld [vmem:[#allocation2 + $0x38] sm:$0xff]
        %v1405 = vld [vmem:[#allocation2 + $0x40] sm:$0xff]
        %1414 = vrot.lane.b32.xlu0 %v1398, 117
        %v1415 = vpop.permute.xlu0 %1414
        %1416 = vrot.lane.b32.xlu0 %v1399, 117
        %v1417 = vpop.permute.xlu0 %1416
        %1418 = vrot.lane.b32.xlu0 %v1400, 117
        %v1419 = vpop.permute.xlu0 %1418
        %1420 = vrot.lane.b32.xlu0 %v1401, 117
        %v1421 = vpop.permute.xlu0 %1420
        %1422 = vrot.lane.b32.xlu0 %v1402, 117
        %v1423 = vpop.permute.xlu0 %1422
        %1424 = vrot.lane.b32.xlu0 %v1403, 117
        %v1425 = vpop.permute.xlu0 %1424
        %1426 = vrot.lane.b32.xlu0 %v1404, 117
        %v1427 = vpop.permute.xlu0 %1426
        %1428 = vrot.lane.b32.xlu0 %v1405, 117
        %v1429 = vpop.permute.xlu0 %1428
        %vm1430 = vcmask 957440
        %v1431 = vsel %vm1430, %v1415, %v1417
        %v1432 = vsel %vm1430, %v1417, %v1419
        %v1433 = vsel %vm1430, %v1419, %v1421
        %v1434 = vsel %vm1430, %v1421, %v1423
        %v1435 = vsel %vm1430, %v1423, %v1425
        %v1436 = vsel %vm1430, %v1425, %v1427
        %v1437 = vsel %vm1430, %v1427, %v1429
        %1446 = vst [vmem:[#allocation3 + $0x440] sm:$0xff] %v1431
        %1447 = vst [vmem:[#allocation3 + $0x448] sm:$0xff] %v1432
        %1448 = vst [vmem:[#allocation3 + $0x450] sm:$0xff] %v1433
        %1449 = vst [vmem:[#allocation3 + $0x458] sm:$0xff] %v1434
        %1450 = vst [vmem:[#allocation3 + $0x460] sm:$0xff] %v1435
        %1451 = vst [vmem:[#allocation3 + $0x468] sm:$0xff] %v1436
        %1452 = vst [vmem:[#allocation3 + $0x470] sm:$0xff] %v1437
        %1453 = vst.msk [vmem:[#allocation3 + $0x478] sm:$0xff] %vm426, %v1429
        %v1454 = vld [vmem:[#allocation2 + $0x8] sm:$0xff]
        %v1455 = vld [vmem:[#allocation2 + $0x10] sm:$0xff]
        %v1456 = vld [vmem:[#allocation2 + $0x18] sm:$0xff]
        %v1457 = vld [vmem:[#allocation2 + $0x20] sm:$0xff]
        %v1458 = vld [vmem:[#allocation2 + $0x28] sm:$0xff]
        %v1459 = vld [vmem:[#allocation2 + $0x30] sm:$0xff]
        %v1460 = vld [vmem:[#allocation2 + $0x38] sm:$0xff]
        %v1461 = vld [vmem:[#allocation2 + $0x40] sm:$0xff]
        %v1462 = vld [vmem:[#allocation2 + $0x48] sm:$0xff]
        %1472 = vrot.lane.b32.xlu0 %v1454, 39
        %v1473 = vpop.permute.xlu0 %1472
        %1474 = vrot.lane.b32.xlu0 %v1455, 39
        %v1475 = vpop.permute.xlu0 %1474
        %1476 = vrot.lane.b32.xlu0 %v1456, 39
        %v1477 = vpop.permute.xlu0 %1476
        %1478 = vrot.lane.b32.xlu0 %v1457, 39
        %v1479 = vpop.permute.xlu0 %1478
        %1480 = vrot.lane.b32.xlu0 %v1458, 39
        %v1481 = vpop.permute.xlu0 %1480
        %1482 = vrot.lane.b32.xlu0 %v1459, 39
        %v1483 = vpop.permute.xlu0 %1482
        %1484 = vrot.lane.b32.xlu0 %v1460, 39
        %v1485 = vpop.permute.xlu0 %1484
        %1486 = vrot.lane.b32.xlu0 %v1461, 39
        %v1487 = vpop.permute.xlu0 %1486
        %1488 = vrot.lane.b32.xlu0 %v1462, 39
        %v1489 = vpop.permute.xlu0 %1488
        %vm1490 = vcmask 318464
        %v1491 = vsel %vm1490, %v1473, %v1475
        %v1492 = vsel %vm1490, %v1475, %v1477
        %v1493 = vsel %vm1490, %v1477, %v1479
        %v1494 = vsel %vm1490, %v1479, %v1481
        %v1495 = vsel %vm1490, %v1481, %v1483
        %v1496 = vsel %vm1490, %v1483, %v1485
        %v1497 = vsel %vm1490, %v1485, %v1487
        %v1498 = vsel %vm1490, %v1487, %v1489
        %1507 = vst [vmem:[#allocation3 + $0x480] sm:$0xff] %v1491
        %1508 = vst [vmem:[#allocation3 + $0x488] sm:$0xff] %v1492
        %1509 = vst [vmem:[#allocation3 + $0x490] sm:$0xff] %v1493
        %1510 = vst [vmem:[#allocation3 + $0x498] sm:$0xff] %v1494
        %1511 = vst [vmem:[#allocation3 + $0x4a0] sm:$0xff] %v1495
        %1512 = vst [vmem:[#allocation3 + $0x4a8] sm:$0xff] %v1496
        %1513 = vst [vmem:[#allocation3 + $0x4b0] sm:$0xff] %v1497
        %1514 = vst.msk [vmem:[#allocation3 + $0x4b8] sm:$0xff] %vm426, %v1498
        %v1515 = vld [vmem:[#allocation2 + $0x8] sm:$0xff]
        %v1516 = vld [vmem:[#allocation2 + $0x10] sm:$0xff]
        %v1517 = vld [vmem:[#allocation2 + $0x18] sm:$0xff]
        %v1518 = vld [vmem:[#allocation2 + $0x20] sm:$0xff]
        %v1519 = vld [vmem:[#allocation2 + $0x28] sm:$0xff]
        %v1520 = vld [vmem:[#allocation2 + $0x30] sm:$0xff]
        %v1521 = vld [vmem:[#allocation2 + $0x38] sm:$0xff]
        %v1522 = vld [vmem:[#allocation2 + $0x40] sm:$0xff]
        %v1523 = vld [vmem:[#allocation2 + $0x48] sm:$0xff]
        %1533 = vrot.lane.b32.xlu0 %v1515, 38
        %v1534 = vpop.permute.xlu0 %1533
        %1535 = vrot.lane.b32.xlu0 %v1516, 38
        %v1536 = vpop.permute.xlu0 %1535
        %1537 = vrot.lane.b32.xlu0 %v1517, 38
        %v1538 = vpop.permute.xlu0 %1537
        %1539 = vrot.lane.b32.xlu0 %v1518, 38
        %v1540 = vpop.permute.xlu0 %1539
        %1541 = vrot.lane.b32.xlu0 %v1519, 38
        %v1542 = vpop.permute.xlu0 %1541
        %1543 = vrot.lane.b32.xlu0 %v1520, 38
        %v1544 = vpop.permute.xlu0 %1543
        %1545 = vrot.lane.b32.xlu0 %v1521, 38
        %v1546 = vpop.permute.xlu0 %1545
        %1547 = vrot.lane.b32.xlu0 %v1522, 38
        %v1548 = vpop.permute.xlu0 %1547
        %1549 = vrot.lane.b32.xlu0 %v1523, 38
        %v1550 = vpop.permute.xlu0 %1549
        %vm1551 = vcmask 310272
        %v1552 = vsel %vm1551, %v1534, %v1536
        %v1553 = vsel %vm1551, %v1536, %v1538
        %v1554 = vsel %vm1551, %v1538, %v1540
        %v1555 = vsel %vm1551, %v1540, %v1542
        %v1556 = vsel %vm1551, %v1542, %v1544
        %v1557 = vsel %vm1551, %v1544, %v1546
        %v1558 = vsel %vm1551, %v1546, %v1548
        %v1559 = vsel %vm1551, %v1548, %v1550
        %1568 = vst [vmem:[#allocation3 + $0x4c0] sm:$0xff] %v1552
        %1569 = vst [vmem:[#allocation3 + $0x4c8] sm:$0xff] %v1553
        %1570 = vst [vmem:[#allocation3 + $0x4d0] sm:$0xff] %v1554
        %1571 = vst [vmem:[#allocation3 + $0x4d8] sm:$0xff] %v1555
        %1572 = vst [vmem:[#allocation3 + $0x4e0] sm:$0xff] %v1556
        %1573 = vst [vmem:[#allocation3 + $0x4e8] sm:$0xff] %v1557
        %1574 = vst [vmem:[#allocation3 + $0x4f0] sm:$0xff] %v1558
        %1575 = vst.msk [vmem:[#allocation3 + $0x4f8] sm:$0xff] %vm426, %v1559
        %v1576 = vld [vmem:[#allocation2 + $0x8] sm:$0xff]
        %v1577 = vld [vmem:[#allocation2 + $0x10] sm:$0xff]
        %v1578 = vld [vmem:[#allocation2 + $0x18] sm:$0xff]
        %v1579 = vld [vmem:[#allocation2 + $0x20] sm:$0xff]
        %v1580 = vld [vmem:[#allocation2 + $0x28] sm:$0xff]
        %v1581 = vld [vmem:[#allocation2 + $0x30] sm:$0xff]
        %v1582 = vld [vmem:[#allocation2 + $0x38] sm:$0xff]
        %v1583 = vld [vmem:[#allocation2 + $0x40] sm:$0xff]
        %v1584 = vld [vmem:[#allocation2 + $0x48] sm:$0xff]
        %1594 = vrot.lane.b32.xlu0 %v1576, 37
        %v1595 = vpop.permute.xlu0 %1594
        %1596 = vrot.lane.b32.xlu0 %v1577, 37
        %v1597 = vpop.permute.xlu0 %1596
        %1598 = vrot.lane.b32.xlu0 %v1578, 37
        %v1599 = vpop.permute.xlu0 %1598
        %1600 = vrot.lane.b32.xlu0 %v1579, 37
        %v1601 = vpop.permute.xlu0 %1600
        %1602 = vrot.lane.b32.xlu0 %v1580, 37
        %v1603 = vpop.permute.xlu0 %1602
        %1604 = vrot.lane.b32.xlu0 %v1581, 37
        %v1605 = vpop.permute.xlu0 %1604
        %1606 = vrot.lane.b32.xlu0 %v1582, 37
        %v1607 = vpop.permute.xlu0 %1606
        %1608 = vrot.lane.b32.xlu0 %v1583, 37
        %v1609 = vpop.permute.xlu0 %1608
        %1610 = vrot.lane.b32.xlu0 %v1584, 37
        %v1611 = vpop.permute.xlu0 %1610
        %vm1612 = vcmask 302080
        %v1613 = vsel %vm1612, %v1595, %v1597
        %v1614 = vsel %vm1612, %v1597, %v1599
        %v1615 = vsel %vm1612, %v1599, %v1601
        %v1616 = vsel %vm1612, %v1601, %v1603
        %v1617 = vsel %vm1612, %v1603, %v1605
        %v1618 = vsel %vm1612, %v1605, %v1607
        %v1619 = vsel %vm1612, %v1607, %v1609
        %v1620 = vsel %vm1612, %v1609, %v1611
        %1629 = vst [vmem:[#allocation3 + $0x500] sm:$0xff] %v1613
        %1630 = vst [vmem:[#allocation3 + $0x508] sm:$0xff] %v1614
        %1631 = vst [vmem:[#allocation3 + $0x510] sm:$0xff] %v1615
        %1632 = vst [vmem:[#allocation3 + $0x518] sm:$0xff] %v1616
        %1633 = vst [vmem:[#allocation3 + $0x520] sm:$0xff] %v1617
        %1634 = vst [vmem:[#allocation3 + $0x528] sm:$0xff] %v1618
        %1635 = vst [vmem:[#allocation3 + $0x530] sm:$0xff] %v1619
        %1636 = vst.msk [vmem:[#allocation3 + $0x538] sm:$0xff] %vm426, %v1620
        %v1637 = vld [vmem:[#allocation2 + $0x8] sm:$0xff]
        %v1638 = vld [vmem:[#allocation2 + $0x10] sm:$0xff]
        %v1639 = vld [vmem:[#allocation2 + $0x18] sm:$0xff]
        %v1640 = vld [vmem:[#allocation2 + $0x20] sm:$0xff]
        %v1641 = vld [vmem:[#allocation2 + $0x28] sm:$0xff]
        %v1642 = vld [vmem:[#allocation2 + $0x30] sm:$0xff]
        %v1643 = vld [vmem:[#allocation2 + $0x38] sm:$0xff]
        %v1644 = vld [vmem:[#allocation2 + $0x40] sm:$0xff]
        %v1645 = vld [vmem:[#allocation2 + $0x48] sm:$0xff]
        %1655 = vrot.lane.b32.xlu0 %v1637, 29
        %v1656 = vpop.permute.xlu0 %1655
        %1657 = vrot.lane.b32.xlu0 %v1638, 29
        %v1658 = vpop.permute.xlu0 %1657
        %1659 = vrot.lane.b32.xlu0 %v1639, 29
        %v1660 = vpop.permute.xlu0 %1659
        %1661 = vrot.lane.b32.xlu0 %v1640, 29
        %v1662 = vpop.permute.xlu0 %1661
        %1663 = vrot.lane.b32.xlu0 %v1641, 29
        %v1664 = vpop.permute.xlu0 %1663
        %1665 = vrot.lane.b32.xlu0 %v1642, 29
        %v1666 = vpop.permute.xlu0 %1665
        %1667 = vrot.lane.b32.xlu0 %v1643, 29
        %v1668 = vpop.permute.xlu0 %1667
        %1669 = vrot.lane.b32.xlu0 %v1644, 29
        %v1670 = vpop.permute.xlu0 %1669
        %1671 = vrot.lane.b32.xlu0 %v1645, 29
        %v1672 = vpop.permute.xlu0 %1671
        %vm1673 = vcmask 236544
        %v1674 = vsel %vm1673, %v1656, %v1658
        %v1675 = vsel %vm1673, %v1658, %v1660
        %v1676 = vsel %vm1673, %v1660, %v1662
        %v1677 = vsel %vm1673, %v1662, %v1664
        %v1678 = vsel %vm1673, %v1664, %v1666
        %v1679 = vsel %vm1673, %v1666, %v1668
        %v1680 = vsel %vm1673, %v1668, %v1670
        %v1681 = vsel %vm1673, %v1670, %v1672
        %1690 = vst [vmem:[#allocation3 + $0x540] sm:$0xff] %v1674
        %1691 = vst [vmem:[#allocation3 + $0x548] sm:$0xff] %v1675
        %1692 = vst [vmem:[#allocation3 + $0x550] sm:$0xff] %v1676
        %1693 = vst [vmem:[#allocation3 + $0x558] sm:$0xff] %v1677
        %1694 = vst [vmem:[#allocation3 + $0x560] sm:$0xff] %v1678
        %1695 = vst [vmem:[#allocation3 + $0x568] sm:$0xff] %v1679
        %1696 = vst [vmem:[#allocation3 + $0x570] sm:$0xff] %v1680
        %1697 = vst.msk [vmem:[#allocation3 + $0x578] sm:$0xff] %vm426, %v1681
        %v1698 = vld [vmem:[#allocation2 + $0x8] sm:$0xff]
        %v1699 = vld [vmem:[#allocation2 + $0x10] sm:$0xff]
        %v1700 = vld [vmem:[#allocation2 + $0x18] sm:$0xff]
        %v1701 = vld [vmem:[#allocation2 + $0x20] sm:$0xff]
        %v1702 = vld [vmem:[#allocation2 + $0x28] sm:$0xff]
        %v1703 = vld [vmem:[#allocation2 + $0x30] sm:$0xff]
        %v1704 = vld [vmem:[#allocation2 + $0x38] sm:$0xff]
        %v1705 = vld [vmem:[#allocation2 + $0x40] sm:$0xff]
        %v1706 = vld [vmem:[#allocation2 + $0x48] sm:$0xff]
        %1716 = vrot.lane.b32.xlu0 %v1698, 28
        %v1717 = vpop.permute.xlu0 %1716
        %1718 = vrot.lane.b32.xlu0 %v1699, 28
        %v1719 = vpop.permute.xlu0 %1718
        %1720 = vrot.lane.b32.xlu0 %v1700, 28
        %v1721 = vpop.permute.xlu0 %1720
        %1722 = vrot.lane.b32.xlu0 %v1701, 28
        %v1723 = vpop.permute.xlu0 %1722
        %1724 = vrot.lane.b32.xlu0 %v1702, 28
        %v1725 = vpop.permute.xlu0 %1724
        %1726 = vrot.lane.b32.xlu0 %v1703, 28
        %v1727 = vpop.permute.xlu0 %1726
        %1728 = vrot.lane.b32.xlu0 %v1704, 28
        %v1729 = vpop.permute.xlu0 %1728
        %1730 = vrot.lane.b32.xlu0 %v1705, 28
        %v1731 = vpop.permute.xlu0 %1730
        %1732 = vrot.lane.b32.xlu0 %v1706, 28
        %v1733 = vpop.permute.xlu0 %1732
        %vm1734 = vcmask 228352
        %v1735 = vsel %vm1734, %v1717, %v1719
        %v1736 = vsel %vm1734, %v1719, %v1721
        %v1737 = vsel %vm1734, %v1721, %v1723
        %v1738 = vsel %vm1734, %v1723, %v1725
        %v1739 = vsel %vm1734, %v1725, %v1727
        %v1740 = vsel %vm1734, %v1727, %v1729
        %v1741 = vsel %vm1734, %v1729, %v1731
        %v1742 = vsel %vm1734, %v1731, %v1733
        %1751 = vst [vmem:[#allocation3 + $0x580] sm:$0xff] %v1735
        %1752 = vst [vmem:[#allocation3 + $0x588] sm:$0xff] %v1736
        %1753 = vst [vmem:[#allocation3 + $0x590] sm:$0xff] %v1737
        %1754 = vst [vmem:[#allocation3 + $0x598] sm:$0xff] %v1738
        %1755 = vst [vmem:[#allocation3 + $0x5a0] sm:$0xff] %v1739
        %1756 = vst [vmem:[#allocation3 + $0x5a8] sm:$0xff] %v1740
        %1757 = vst [vmem:[#allocation3 + $0x5b0] sm:$0xff] %v1741
        %1758 = vst.msk [vmem:[#allocation3 + $0x5b8] sm:$0xff] %vm426, %v1742
        %v1759 = vld [vmem:[#allocation2 + $0x8] sm:$0xff]
        %v1760 = vld [vmem:[#allocation2 + $0x10] sm:$0xff]
        %v1761 = vld [vmem:[#allocation2 + $0x18] sm:$0xff]
        %v1762 = vld [vmem:[#allocation2 + $0x20] sm:$0xff]
        %v1763 = vld [vmem:[#allocation2 + $0x28] sm:$0xff]
        %v1764 = vld [vmem:[#allocation2 + $0x30] sm:$0xff]
        %v1765 = vld [vmem:[#allocation2 + $0x38] sm:$0xff]
        %v1766 = vld [vmem:[#allocation2 + $0x40] sm:$0xff]
        %v1767 = vld [vmem:[#allocation2 + $0x48] sm:$0xff]
        %1777 = vrot.lane.b32.xlu0 %v1759, 27
        %v1778 = vpop.permute.xlu0 %1777
        %1779 = vrot.lane.b32.xlu0 %v1760, 27
        %v1780 = vpop.permute.xlu0 %1779
        %1781 = vrot.lane.b32.xlu0 %v1761, 27
        %v1782 = vpop.permute.xlu0 %1781
        %1783 = vrot.lane.b32.xlu0 %v1762, 27
        %v1784 = vpop.permute.xlu0 %1783
        %1785 = vrot.lane.b32.xlu0 %v1763, 27
        %v1786 = vpop.permute.xlu0 %1785
        %1787 = vrot.lane.b32.xlu0 %v1764, 27
        %v1788 = vpop.permute.xlu0 %1787
        %1789 = vrot.lane.b32.xlu0 %v1765, 27
        %v1790 = vpop.permute.xlu0 %1789
        %1791 = vrot.lane.b32.xlu0 %v1766, 27
        %v1792 = vpop.permute.xlu0 %1791
        %1793 = vrot.lane.b32.xlu0 %v1767, 27
        %v1794 = vpop.permute.xlu0 %1793
        %vm1795 = vcmask 220160
        %v1796 = vsel %vm1795, %v1778, %v1780
        %v1797 = vsel %vm1795, %v1780, %v1782
        %v1798 = vsel %vm1795, %v1782, %v1784
        %v1799 = vsel %vm1795, %v1784, %v1786
        %v1800 = vsel %vm1795, %v1786, %v1788
        %v1801 = vsel %vm1795, %v1788, %v1790
        %v1802 = vsel %vm1795, %v1790, %v1792
        %v1803 = vsel %vm1795, %v1792, %v1794
        %1812 = vst [vmem:[#allocation3 + $0x5c0] sm:$0xff] %v1796
        %1813 = vst [vmem:[#allocation3 + $0x5c8] sm:$0xff] %v1797
        %1814 = vst [vmem:[#allocation3 + $0x5d0] sm:$0xff] %v1798
        %1815 = vst [vmem:[#allocation3 + $0x5d8] sm:$0xff] %v1799
        %1816 = vst [vmem:[#allocation3 + $0x5e0] sm:$0xff] %v1800
        %1817 = vst [vmem:[#allocation3 + $0x5e8] sm:$0xff] %v1801
        %1818 = vst [vmem:[#allocation3 + $0x5f0] sm:$0xff] %v1802
        %1819 = vst.msk [vmem:[#allocation3 + $0x5f8] sm:$0xff] %vm426, %v1803
        %v1820 = vld [vmem:[#allocation2 + $0x8] sm:$0xff]
        %v1821 = vld [vmem:[#allocation2 + $0x10] sm:$0xff]
        %v1822 = vld [vmem:[#allocation2 + $0x18] sm:$0xff]
        %v1823 = vld [vmem:[#allocation2 + $0x20] sm:$0xff]
        %v1824 = vld [vmem:[#allocation2 + $0x28] sm:$0xff]
        %v1825 = vld [vmem:[#allocation2 + $0x30] sm:$0xff]
        %v1826 = vld [vmem:[#allocation2 + $0x38] sm:$0xff]
        %v1827 = vld [vmem:[#allocation2 + $0x40] sm:$0xff]
        %v1828 = vld [vmem:[#allocation2 + $0x48] sm:$0xff]
        %1838 = vrot.lane.b32.xlu0 %v1820, 19
        %v1839 = vpop.permute.xlu0 %1838
        %1840 = vrot.lane.b32.xlu0 %v1821, 19
        %v1841 = vpop.permute.xlu0 %1840
        %1842 = vrot.lane.b32.xlu0 %v1822, 19
        %v1843 = vpop.permute.xlu0 %1842
        %1844 = vrot.lane.b32.xlu0 %v1823, 19
        %v1845 = vpop.permute.xlu0 %1844
        %1846 = vrot.lane.b32.xlu0 %v1824, 19
        %v1847 = vpop.permute.xlu0 %1846
        %1848 = vrot.lane.b32.xlu0 %v1825, 19
        %v1849 = vpop.permute.xlu0 %1848
        %1850 = vrot.lane.b32.xlu0 %v1826, 19
        %v1851 = vpop.permute.xlu0 %1850
        %1852 = vrot.lane.b32.xlu0 %v1827, 19
        %v1853 = vpop.permute.xlu0 %1852
        %1854 = vrot.lane.b32.xlu0 %v1828, 19
        %v1855 = vpop.permute.xlu0 %1854
        %vm1856 = vcmask 154624
        %v1857 = vsel %vm1856, %v1839, %v1841
        %v1858 = vsel %vm1856, %v1841, %v1843
        %v1859 = vsel %vm1856, %v1843, %v1845
        %v1860 = vsel %vm1856, %v1845, %v1847
        %v1861 = vsel %vm1856, %v1847, %v1849
        %v1862 = vsel %vm1856, %v1849, %v1851
        %v1863 = vsel %vm1856, %v1851, %v1853
        %v1864 = vsel %vm1856, %v1853, %v1855
        %1873 = vst [vmem:[#allocation3 + $0x600] sm:$0xff] %v1857
        %1874 = vst [vmem:[#allocation3 + $0x608] sm:$0xff] %v1858
        %1875 = vst [vmem:[#allocation3 + $0x610] sm:$0xff] %v1859
        %1876 = vst [vmem:[#allocation3 + $0x618] sm:$0xff] %v1860
        %1877 = vst [vmem:[#allocation3 + $0x620] sm:$0xff] %v1861
        %1878 = vst [vmem:[#allocation3 + $0x628] sm:$0xff] %v1862
        %1879 = vst [vmem:[#allocation3 + $0x630] sm:$0xff] %v1863
        %1880 = vst.msk [vmem:[#allocation3 + $0x638] sm:$0xff] %vm426, %v1864
        %v1881 = vld [vmem:[#allocation2 + $0x8] sm:$0xff]
        %v1882 = vld [vmem:[#allocation2 + $0x10] sm:$0xff]
        %v1883 = vld [vmem:[#allocation2 + $0x18] sm:$0xff]
        %v1884 = vld [vmem:[#allocation2 + $0x20] sm:$0xff]
        %v1885 = vld [vmem:[#allocation2 + $0x28] sm:$0xff]
        %v1886 = vld [vmem:[#allocation2 + $0x30] sm:$0xff]
        %v1887 = vld [vmem:[#allocation2 + $0x38] sm:$0xff]
        %v1888 = vld [vmem:[#allocation2 + $0x40] sm:$0xff]
        %v1889 = vld [vmem:[#allocation2 + $0x48] sm:$0xff]
        %1899 = vrot.lane.b32.xlu0 %v1881, 18
        %v1900 = vpop.permute.xlu0 %1899
        %1901 = vrot.lane.b32.xlu0 %v1882, 18
        %v1902 = vpop.permute.xlu0 %1901
        %1903 = vrot.lane.b32.xlu0 %v1883, 18
        %v1904 = vpop.permute.xlu0 %1903
        %1905 = vrot.lane.b32.xlu0 %v1884, 18
        %v1906 = vpop.permute.xlu0 %1905
        %1907 = vrot.lane.b32.xlu0 %v1885, 18
        %v1908 = vpop.permute.xlu0 %1907
        %1909 = vrot.lane.b32.xlu0 %v1886, 18
        %v1910 = vpop.permute.xlu0 %1909
        %1911 = vrot.lane.b32.xlu0 %v1887, 18
        %v1912 = vpop.permute.xlu0 %1911
        %1913 = vrot.lane.b32.xlu0 %v1888, 18
        %v1914 = vpop.permute.xlu0 %1913
        %1915 = vrot.lane.b32.xlu0 %v1889, 18
        %v1916 = vpop.permute.xlu0 %1915
        %vm1917 = vcmask 146432
        %v1918 = vsel %vm1917, %v1900, %v1902
        %v1919 = vsel %vm1917, %v1902, %v1904
        %v1920 = vsel %vm1917, %v1904, %v1906
        %v1921 = vsel %vm1917, %v1906, %v1908
        %v1922 = vsel %vm1917, %v1908, %v1910
        %v1923 = vsel %vm1917, %v1910, %v1912
        %v1924 = vsel %vm1917, %v1912, %v1914
        %v1925 = vsel %vm1917, %v1914, %v1916
        %1934 = vst [vmem:[#allocation3 + $0x640] sm:$0xff] %v1918
        %1935 = vst [vmem:[#allocation3 + $0x648] sm:$0xff] %v1919
        %1936 = vst [vmem:[#allocation3 + $0x650] sm:$0xff] %v1920
        %1937 = vst [vmem:[#allocation3 + $0x658] sm:$0xff] %v1921
        %1938 = vst [vmem:[#allocation3 + $0x660] sm:$0xff] %v1922
        %1939 = vst [vmem:[#allocation3 + $0x668] sm:$0xff] %v1923
        %1940 = vst [vmem:[#allocation3 + $0x670] sm:$0xff] %v1924
        %1941 = vst.msk [vmem:[#allocation3 + $0x678] sm:$0xff] %vm426, %v1925
        %v1942 = vld [vmem:[#allocation2 + $0x8] sm:$0xff]
        %v1943 = vld [vmem:[#allocation2 + $0x10] sm:$0xff]
        %v1944 = vld [vmem:[#allocation2 + $0x18] sm:$0xff]
        %v1945 = vld [vmem:[#allocation2 + $0x20] sm:$0xff]
        %v1946 = vld [vmem:[#allocation2 + $0x28] sm:$0xff]
        %v1947 = vld [vmem:[#allocation2 + $0x30] sm:$0xff]
        %v1948 = vld [vmem:[#allocation2 + $0x38] sm:$0xff]
        %v1949 = vld [vmem:[#allocation2 + $0x40] sm:$0xff]
        %v1950 = vld [vmem:[#allocation2 + $0x48] sm:$0xff]
        %1960 = vrot.lane.b32.xlu0 %v1942, 17
        %v1961 = vpop.permute.xlu0 %1960
        %1962 = vrot.lane.b32.xlu0 %v1943, 17
        %v1963 = vpop.permute.xlu0 %1962
        %1964 = vrot.lane.b32.xlu0 %v1944, 17
        %v1965 = vpop.permute.xlu0 %1964
        %1966 = vrot.lane.b32.xlu0 %v1945, 17
        %v1967 = vpop.permute.xlu0 %1966
        %1968 = vrot.lane.b32.xlu0 %v1946, 17
        %v1969 = vpop.permute.xlu0 %1968
        %1970 = vrot.lane.b32.xlu0 %v1947, 17
        %v1971 = vpop.permute.xlu0 %1970
        %1972 = vrot.lane.b32.xlu0 %v1948, 17
        %v1973 = vpop.permute.xlu0 %1972
        %1974 = vrot.lane.b32.xlu0 %v1949, 17
        %v1975 = vpop.permute.xlu0 %1974
        %1976 = vrot.lane.b32.xlu0 %v1950, 17
        %v1977 = vpop.permute.xlu0 %1976
        %vm1978 = vcmask 138240
        %v1979 = vsel %vm1978, %v1961, %v1963
        %v1980 = vsel %vm1978, %v1963, %v1965
        %v1981 = vsel %vm1978, %v1965, %v1967
        %v1982 = vsel %vm1978, %v1967, %v1969
        %v1983 = vsel %vm1978, %v1969, %v1971
        %v1984 = vsel %vm1978, %v1971, %v1973
        %v1985 = vsel %vm1978, %v1973, %v1975
        %v1986 = vsel %vm1978, %v1975, %v1977
        %1995 = vst [vmem:[#allocation3 + $0x680] sm:$0xff] %v1979
        %1996 = vst [vmem:[#allocation3 + $0x688] sm:$0xff] %v1980
        %1997 = vst [vmem:[#allocation3 + $0x690] sm:$0xff] %v1981
        %1998 = vst [vmem:[#allocation3 + $0x698] sm:$0xff] %v1982
        %1999 = vst [vmem:[#allocation3 + $0x6a0] sm:$0xff] %v1983
        %2000 = vst [vmem:[#allocation3 + $0x6a8] sm:$0xff] %v1984
        %2001 = vst [vmem:[#allocation3 + $0x6b0] sm:$0xff] %v1985
        %2002 = vst.msk [vmem:[#allocation3 + $0x6b8] sm:$0xff] %vm426, %v1986
        %v2003 = vld [vmem:[#allocation12] sm:$0xff]
        %v2004 = vld [vmem:[#allocation12 + $0x8] sm:$0xff]
        %v2005 = vld [vmem:[#allocation3] sm:$0xff]
        %v2006 = vld [vmem:[#allocation3 + $0x8] sm:$0xff]
        %v2007 = vld [vmem:[#allocation3 + $0x10] sm:$0xff]
        %v2008 = vld [vmem:[#allocation3 + $0x18] sm:$0xff]
        %v2009 = vld [vmem:[#allocation3 + $0x20] sm:$0xff]
        %v2010 = vld [vmem:[#allocation3 + $0x28] sm:$0xff]
        %v2011 = vld [vmem:[#allocation3 + $0x30] sm:$0xff]
        %v2012 = vld [vmem:[#allocation3 + $0x38] sm:$0xff]
        %v2013 = vld [vmem:[#allocation3 + $0x40] sm:$0xff]
        %v2014 = vld [vmem:[#allocation3 + $0x48] sm:$0xff]
        %v2015 = vld [vmem:[#allocation3 + $0x50] sm:$0xff]
        %v2016 = vld [vmem:[#allocation3 + $0x58] sm:$0xff]
        %v2017 = vld [vmem:[#allocation3 + $0x60] sm:$0xff]
        %v2018 = vld [vmem:[#allocation3 + $0x68] sm:$0xff]
        %v2019 = vld [vmem:[#allocation3 + $0x70] sm:$0xff]
        %v2020 = vld [vmem:[#allocation3 + $0x78] sm:$0xff]
        %v2021 = vld [vmem:[#allocation3 + $0x80] sm:$0xff]
        %v2022 = vld [vmem:[#allocation3 + $0x88] sm:$0xff]
        %v2023 = vld [vmem:[#allocation3 + $0x90] sm:$0xff]
        %v2024 = vld [vmem:[#allocation3 + $0x98] sm:$0xff]
        %v2025 = vld [vmem:[#allocation3 + $0xa0] sm:$0xff]
        %v2026 = vld [vmem:[#allocation3 + $0xa8] sm:$0xff]
        %v2027 = vld [vmem:[#allocation3 + $0xb0] sm:$0xff]
        %v2028 = vld [vmem:[#allocation3 + $0xb8] sm:$0xff]
        %v2029 = vld [vmem:[#allocation3 + $0xc0] sm:$0xff]
        %v2030 = vld [vmem:[#allocation3 + $0xc8] sm:$0xff]
        %v2031 = vld [vmem:[#allocation3 + $0xd0] sm:$0xff]
        %v2032 = vld [vmem:[#allocation3 + $0xd8] sm:$0xff]
        %v2033 = vld [vmem:[#allocation3 + $0xe0] sm:$0xff]
        %v2034 = vld [vmem:[#allocation3 + $0xe8] sm:$0xff]
        %v2035 = vld [vmem:[#allocation3 + $0xf0] sm:$0xff]
        %v2036 = vld [vmem:[#allocation3 + $0xf8] sm:$0xff]
        %v2037 = vld [vmem:[#allocation3 + $0x100] sm:$0xff]
        %v2038 = vld [vmem:[#allocation3 + $0x108] sm:$0xff]
        %v2039 = vld [vmem:[#allocation3 + $0x110] sm:$0xff]
        %v2040 = vld [vmem:[#allocation3 + $0x118] sm:$0xff]
        %v2041 = vld [vmem:[#allocation3 + $0x120] sm:$0xff]
        %v2042 = vld [vmem:[#allocation3 + $0x128] sm:$0xff]
        %v2043 = vld [vmem:[#allocation3 + $0x130] sm:$0xff]
        %v2044 = vld [vmem:[#allocation3 + $0x138] sm:$0xff]
        %v2045 = vld [vmem:[#allocation3 + $0x140] sm:$0xff]
        %v2046 = vld [vmem:[#allocation3 + $0x148] sm:$0xff]
        %v2047 = vld [vmem:[#allocation3 + $0x150] sm:$0xff]
        %v2048 = vld [vmem:[#allocation3 + $0x158] sm:$0xff]
        %v2049 = vld [vmem:[#allocation3 + $0x160] sm:$0xff]
        %v2050 = vld [vmem:[#allocation3 + $0x168] sm:$0xff]
        %v2051 = vld [vmem:[#allocation3 + $0x170] sm:$0xff]
        %v2052 = vld [vmem:[#allocation3 + $0x178] sm:$0xff]
        %v2053 = vld [vmem:[#allocation3 + $0x180] sm:$0xff]
        %v2054 = vld [vmem:[#allocation3 + $0x188] sm:$0xff]
        %v2055 = vld [vmem:[#allocation3 + $0x190] sm:$0xff]
        %v2056 = vld [vmem:[#allocation3 + $0x198] sm:$0xff]
        %v2057 = vld [vmem:[#allocation3 + $0x1a0] sm:$0xff]
        %v2058 = vld [vmem:[#allocation3 + $0x1a8] sm:$0xff]
        %v2059 = vld [vmem:[#allocation3 + $0x1b0] sm:$0xff]
        %v2060 = vld [vmem:[#allocation3 + $0x1b8] sm:$0xff]
        %v2061 = vld [vmem:[#allocation3 + $0x1c0] sm:$0xff]
        %v2062 = vld [vmem:[#allocation3 + $0x1c8] sm:$0xff]
        %v2063 = vld [vmem:[#allocation3 + $0x1d0] sm:$0xff]
        %v2064 = vld [vmem:[#allocation3 + $0x1d8] sm:$0xff]
        %v2065 = vld [vmem:[#allocation3 + $0x1e0] sm:$0xff]
        %v2066 = vld [vmem:[#allocation3 + $0x1e8] sm:$0xff]
        %v2067 = vld [vmem:[#allocation3 + $0x1f0] sm:$0xff]
        %v2068 = vld [vmem:[#allocation3 + $0x1f8] sm:$0xff]
        %v2069 = vld [vmem:[#allocation3 + $0x200] sm:$0xff]
        %v2070 = vld [vmem:[#allocation3 + $0x208] sm:$0xff]
        %v2071 = vld [vmem:[#allocation3 + $0x210] sm:$0xff]
        %v2072 = vld [vmem:[#allocation3 + $0x218] sm:$0xff]
        %v2073 = vld [vmem:[#allocation3 + $0x220] sm:$0xff]
        %v2074 = vld [vmem:[#allocation3 + $0x228] sm:$0xff]
        %v2075 = vld [vmem:[#allocation3 + $0x230] sm:$0xff]
        %v2076 = vld [vmem:[#allocation3 + $0x238] sm:$0xff]
        %v2077 = vld [vmem:[#allocation3 + $0x240] sm:$0xff]
        %v2078 = vld [vmem:[#allocation3 + $0x248] sm:$0xff]
        %v2079 = vld [vmem:[#allocation3 + $0x250] sm:$0xff]
        %v2080 = vld [vmem:[#allocation3 + $0x258] sm:$0xff]
        %v2081 = vld [vmem:[#allocation3 + $0x260] sm:$0xff]
        %v2082 = vld [vmem:[#allocation3 + $0x268] sm:$0xff]
        %v2083 = vld [vmem:[#allocation3 + $0x270] sm:$0xff]
        %v2084 = vld [vmem:[#allocation3 + $0x278] sm:$0xff]
        %v2085 = vld [vmem:[#allocation3 + $0x280] sm:$0xff]
        %v2086 = vld [vmem:[#allocation3 + $0x288] sm:$0xff]
        %v2087 = vld [vmem:[#allocation3 + $0x290] sm:$0xff]
        %v2088 = vld [vmem:[#allocation3 + $0x298] sm:$0xff]
        %v2089 = vld [vmem:[#allocation3 + $0x2a0] sm:$0xff]
        %v2090 = vld [vmem:[#allocation3 + $0x2a8] sm:$0xff]
        %v2091 = vld [vmem:[#allocation3 + $0x2b0] sm:$0xff]
        %v2092 = vld [vmem:[#allocation3 + $0x2b8] sm:$0xff]
        %v2093 = vld [vmem:[#allocation3 + $0x2c0] sm:$0xff]
        %v2094 = vld [vmem:[#allocation3 + $0x2c8] sm:$0xff]
        %v2095 = vld [vmem:[#allocation3 + $0x2d0] sm:$0xff]
        %v2096 = vld [vmem:[#allocation3 + $0x2d8] sm:$0xff]
        %v2097 = vld [vmem:[#allocation3 + $0x2e0] sm:$0xff]
        %v2098 = vld [vmem:[#allocation3 + $0x2e8] sm:$0xff]
        %v2099 = vld [vmem:[#allocation3 + $0x2f0] sm:$0xff]
        %v2100 = vld [vmem:[#allocation3 + $0x2f8] sm:$0xff]
        %v2101 = vld [vmem:[#allocation3 + $0x300] sm:$0xff]
        %v2102 = vld [vmem:[#allocation3 + $0x308] sm:$0xff]
        %v2103 = vld [vmem:[#allocation3 + $0x310] sm:$0xff]
        %v2104 = vld [vmem:[#allocation3 + $0x318] sm:$0xff]
        %v2105 = vld [vmem:[#allocation3 + $0x320] sm:$0xff]
        %v2106 = vld [vmem:[#allocation3 + $0x328] sm:$0xff]
        %v2107 = vld [vmem:[#allocation3 + $0x330] sm:$0xff]
        %v2108 = vld [vmem:[#allocation3 + $0x338] sm:$0xff]
        %v2109 = vld [vmem:[#allocation3 + $0x340] sm:$0xff]
        %v2110 = vld [vmem:[#allocation3 + $0x348] sm:$0xff]
        %v2111 = vld [vmem:[#allocation3 + $0x350] sm:$0xff]
        %v2112 = vld [vmem:[#allocation3 + $0x358] sm:$0xff]
        %v2113 = vld [vmem:[#allocation3 + $0x360] sm:$0xff]
        %v2114 = vld [vmem:[#allocation3 + $0x368] sm:$0xff]
        %v2115 = vld [vmem:[#allocation3 + $0x370] sm:$0xff]
        %v2116 = vld [vmem:[#allocation3 + $0x378] sm:$0xff]
        %v2117 = vld [vmem:[#allocation3 + $0x380] sm:$0xff]
        %v2118 = vld [vmem:[#allocation3 + $0x388] sm:$0xff]
        %v2119 = vld [vmem:[#allocation3 + $0x390] sm:$0xff]
        %v2120 = vld [vmem:[#allocation3 + $0x398] sm:$0xff]
        %v2121 = vld [vmem:[#allocation3 + $0x3a0] sm:$0xff]
        %v2122 = vld [vmem:[#allocation3 + $0x3a8] sm:$0xff]
        %v2123 = vld [vmem:[#allocation3 + $0x3b0] sm:$0xff]
        %v2124 = vld [vmem:[#allocation3 + $0x3b8] sm:$0xff]
        %v2125 = vld [vmem:[#allocation3 + $0x3c0] sm:$0xff]
        %v2126 = vld [vmem:[#allocation3 + $0x3c8] sm:$0xff]
        %v2127 = vld [vmem:[#allocation3 + $0x3d0] sm:$0xff]
        %v2128 = vld [vmem:[#allocation3 + $0x3d8] sm:$0xff]
        %v2129 = vld [vmem:[#allocation3 + $0x3e0] sm:$0xff]
        %v2130 = vld [vmem:[#allocation3 + $0x3e8] sm:$0xff]
        %v2131 = vld [vmem:[#allocation3 + $0x3f0] sm:$0xff]
        %v2132 = vld [vmem:[#allocation3 + $0x3f8] sm:$0xff]
        %v2133 = vld [vmem:[#allocation3 + $0x400] sm:$0xff]
        %v2134 = vld [vmem:[#allocation3 + $0x408] sm:$0xff]
        %v2135 = vld [vmem:[#allocation3 + $0x410] sm:$0xff]
        %v2136 = vld [vmem:[#allocation3 + $0x418] sm:$0xff]
        %v2137 = vld [vmem:[#allocation3 + $0x420] sm:$0xff]
        %v2138 = vld [vmem:[#allocation3 + $0x428] sm:$0xff]
        %v2139 = vld [vmem:[#allocation3 + $0x430] sm:$0xff]
        %v2140 = vld [vmem:[#allocation3 + $0x438] sm:$0xff]
        %v2141 = vld [vmem:[#allocation3 + $0x440] sm:$0xff]
        %v2142 = vld [vmem:[#allocation3 + $0x448] sm:$0xff]
        %v2143 = vld [vmem:[#allocation3 + $0x450] sm:$0xff]
        %v2144 = vld [vmem:[#allocation3 + $0x458] sm:$0xff]
        %v2145 = vld [vmem:[#allocation3 + $0x460] sm:$0xff]
        %v2146 = vld [vmem:[#allocation3 + $0x468] sm:$0xff]
        %v2147 = vld [vmem:[#allocation3 + $0x470] sm:$0xff]
        %v2148 = vld [vmem:[#allocation3 + $0x478] sm:$0xff]
        %v2149 = vld [vmem:[#allocation3 + $0x480] sm:$0xff]
        %v2150 = vld [vmem:[#allocation3 + $0x488] sm:$0xff]
        %v2151 = vld [vmem:[#allocation3 + $0x490] sm:$0xff]
        %v2152 = vld [vmem:[#allocation3 + $0x498] sm:$0xff]
        %v2153 = vld [vmem:[#allocation3 + $0x4a0] sm:$0xff]
        %v2154 = vld [vmem:[#allocation3 + $0x4a8] sm:$0xff]
        %v2155 = vld [vmem:[#allocation3 + $0x4b0] sm:$0xff]
        %v2156 = vld [vmem:[#allocation3 + $0x4b8] sm:$0xff]
        %v2157 = vld [vmem:[#allocation3 + $0x4c0] sm:$0xff]
        %v2158 = vld [vmem:[#allocation3 + $0x4c8] sm:$0xff]
        %v2159 = vld [vmem:[#allocation3 + $0x4d0] sm:$0xff]
        %v2160 = vld [vmem:[#allocation3 + $0x4d8] sm:$0xff]
        %v2161 = vld [vmem:[#allocation3 + $0x4e0] sm:$0xff]
        %v2162 = vld [vmem:[#allocation3 + $0x4e8] sm:$0xff]
        %v2163 = vld [vmem:[#allocation3 + $0x4f0] sm:$0xff]
        %v2164 = vld [vmem:[#allocation3 + $0x4f8] sm:$0xff]
        %v2165 = vld [vmem:[#allocation3 + $0x500] sm:$0xff]
        %v2166 = vld [vmem:[#allocation3 + $0x508] sm:$0xff]
        %v2167 = vld [vmem:[#allocation3 + $0x510] sm:$0xff]
        %v2168 = vld [vmem:[#allocation3 + $0x518] sm:$0xff]
        %v2169 = vld [vmem:[#allocation3 + $0x520] sm:$0xff]
        %v2170 = vld [vmem:[#allocation3 + $0x528] sm:$0xff]
        %v2171 = vld [vmem:[#allocation3 + $0x530] sm:$0xff]
        %v2172 = vld [vmem:[#allocation3 + $0x538] sm:$0xff]
        %v2173 = vld [vmem:[#allocation3 + $0x540] sm:$0xff]
        %v2174 = vld [vmem:[#allocation3 + $0x548] sm:$0xff]
        %v2175 = vld [vmem:[#allocation3 + $0x550] sm:$0xff]
        %v2176 = vld [vmem:[#allocation3 + $0x558] sm:$0xff]
        %v2177 = vld [vmem:[#allocation3 + $0x560] sm:$0xff]
        %v2178 = vld [vmem:[#allocation3 + $0x568] sm:$0xff]
        %v2179 = vld [vmem:[#allocation3 + $0x570] sm:$0xff]
        %v2180 = vld [vmem:[#allocation3 + $0x578] sm:$0xff]
        %v2181 = vld [vmem:[#allocation3 + $0x580] sm:$0xff]
        %v2182 = vld [vmem:[#allocation3 + $0x588] sm:$0xff]
        %v2183 = vld [vmem:[#allocation3 + $0x590] sm:$0xff]
        %v2184 = vld [vmem:[#allocation3 + $0x598] sm:$0xff]
        %v2185 = vld [vmem:[#allocation3 + $0x5a0] sm:$0xff]
        %v2186 = vld [vmem:[#allocation3 + $0x5a8] sm:$0xff]
        %v2187 = vld [vmem:[#allocation3 + $0x5b0] sm:$0xff]
        %v2188 = vld [vmem:[#allocation3 + $0x5b8] sm:$0xff]
        %v2189 = vld [vmem:[#allocation3 + $0x5c0] sm:$0xff]
        %v2190 = vld [vmem:[#allocation3 + $0x5c8] sm:$0xff]
        %v2191 = vld [vmem:[#allocation3 + $0x5d0] sm:$0xff]
        %v2192 = vld [vmem:[#allocation3 + $0x5d8] sm:$0xff]
        %v2193 = vld [vmem:[#allocation3 + $0x5e0] sm:$0xff]
        %v2194 = vld [vmem:[#allocation3 + $0x5e8] sm:$0xff]
        %v2195 = vld [vmem:[#allocation3 + $0x5f0] sm:$0xff]
        %v2196 = vld [vmem:[#allocation3 + $0x5f8] sm:$0xff]
        %v2197 = vld [vmem:[#allocation3 + $0x600] sm:$0xff]
        %v2198 = vld [vmem:[#allocation3 + $0x608] sm:$0xff]
        %v2199 = vld [vmem:[#allocation3 + $0x610] sm:$0xff]
        %v2200 = vld [vmem:[#allocation3 + $0x618] sm:$0xff]
        %v2201 = vld [vmem:[#allocation3 + $0x620] sm:$0xff]
        %v2202 = vld [vmem:[#allocation3 + $0x628] sm:$0xff]
        %v2203 = vld [vmem:[#allocation3 + $0x630] sm:$0xff]
        %v2204 = vld [vmem:[#allocation3 + $0x638] sm:$0xff]
        %v2205 = vld [vmem:[#allocation3 + $0x640] sm:$0xff]
        %v2206 = vld [vmem:[#allocation3 + $0x648] sm:$0xff]
        %v2207 = vld [vmem:[#allocation3 + $0x650] sm:$0xff]
        %v2208 = vld [vmem:[#allocation3 + $0x658] sm:$0xff]
        %v2209 = vld [vmem:[#allocation3 + $0x660] sm:$0xff]
        %v2210 = vld [vmem:[#allocation3 + $0x668] sm:$0xff]
        %v2211 = vld [vmem:[#allocation3 + $0x670] sm:$0xff]
        %v2212 = vld [vmem:[#allocation3 + $0x678] sm:$0xff]
        %v2213 = vld [vmem:[#allocation3 + $0x680] sm:$0xff]
        %v2214 = vld [vmem:[#allocation3 + $0x688] sm:$0xff]
        %v2215 = vld [vmem:[#allocation3 + $0x690] sm:$0xff]
        %v2216 = vld [vmem:[#allocation3 + $0x698] sm:$0xff]
        %v2217 = vld [vmem:[#allocation3 + $0x6a0] sm:$0xff]
        %v2218 = vld [vmem:[#allocation3 + $0x6a8] sm:$0xff]
        %v2219 = vld [vmem:[#allocation3 + $0x6b0] sm:$0xff]
        %v2220 = vld [vmem:[#allocation3 + $0x6b8] sm:$0xff]
        %vm2221 = vcmask 719872
        %v2223 = vsel %vm2221, %v2004, 0
        %2225 = vmatprep.subr.mxu0 %v2006
        %2226 = vmatpush1.msra.mxu0 %v2005
        %2227 = vmatprep.subr.mxu0 %v2014
        %2228 = vmatpush1.msra.mxu0 %v2013
        %2229 = vmatprep.subr.mxu0 %v2022
        %2230 = vmatpush1.msra.mxu0 %v2021
        %2231 = vmatprep.subr.mxu0 %v2030
        %2232 = vmatpush1.msra.mxu0 %v2029
        %2233 = vmatprep.subr.mxu0 %v2038
        %2234 = vmatpush1.msra.mxu0 %v2037
        %2235 = vmatprep.subr.mxu0 %v2046
        %2236 = vmatpush1.msra.mxu0 %v2045
        %2237 = vmatprep.subr.mxu0 %v2054
        %2238 = vmatpush1.msra.mxu0 %v2053
        %2239 = vmatprep.subr.mxu0 %v2062
        %2240 = vmatpush1.msra.mxu0 %v2061
        %2241 = vmatprep.subr.mxu0 %v2070
        %2242 = vmatpush1.msra.mxu0 %v2069
        %2243 = vmatprep.subr.mxu0 %v2078
        %2244 = vmatpush1.msra.mxu0 %v2077
        %2245 = vmatprep.subr.mxu0 %v2086
        %2246 = vmatpush1.msra.mxu0 %v2085
        %2247 = vmatprep.subr.mxu0 %v2094
        %2248 = vmatpush1.msra.mxu0 %v2093
        %2249 = vmatprep.subr.mxu0 %v2102
        %2250 = vmatpush1.msra.mxu0 %v2101
        %2251 = vmatprep.subr.mxu0 %v2110
        %2252 = vmatpush1.msra.mxu0 %v2109
        %2253 = vmatprep.subr.mxu0 %v2118
        %2254 = vmatpush1.msra.mxu0 %v2117
        %2255 = vmatprep.subr.mxu0 %v2126
        %2256 = vmatpush1.msra.mxu0 %v2125
        %2257 = vmatprep.subr.mxu0 %v2134
        %2258 = vmatpush1.msra.mxu0 %v2133
        %2259 = vmatprep.subr.mxu0 %v2142
        %2260 = vmatpush1.msra.mxu0 %v2141
        %2261 = vmatprep.subr.mxu0 %v2150
        %2262 = vmatpush1.msra.mxu0 %v2149
        %2263 = vmatprep.subr.mxu0 %v2158
        %2264 = vmatpush1.msra.mxu0 %v2157
        %2265 = vmatprep.subr.mxu0 %v2166
        %2266 = vmatpush1.msra.mxu0 %v2165
        %2267 = vmatprep.subr.mxu0 %v2174
        %2268 = vmatpush1.msra.mxu0 %v2173
        %2269 = vmatprep.subr.mxu0 %v2182
        %2270 = vmatpush1.msra.mxu0 %v2181
        %2271 = vmatprep.subr.mxu0 %v2190
        %2272 = vmatpush1.msra.mxu0 %v2189
        %2273 = vmatprep.subr.mxu0 %v2198
        %2274 = vmatpush1.msra.mxu0 %v2197
        %2275 = vmatprep.subr.mxu0 %v2206
        %2276 = vmatpush1.msra.mxu0 %v2205
        %2277 = vmatprep.subr.mxu0 %v2214
        %2278 = vmatpush1.msra.mxu0 %v2213
        %2279 = vmatprep.subr.mxu0 0.0
        %2280 = vmatpush1.msra.mxu0 0.0
        %2281 = vmatprep.subr.mxu0 0.0
        %2282 = vmatpush1.msra.mxu0 0.0
        %2283 = vmatprep.subr.mxu0 0.0
        %2284 = vmatpush1.msra.mxu0 0.0
        %2285 = vmatprep.subr.mxu0 0.0
        %2286 = vmatpush1.msra.mxu0 0.0
        %2287 = vmatprep.subr.mxu0 0.0
        %2288 = vmatpush1.msra.mxu0 0.0
        %2289 = vmatprep.mubr.f32.mxu0 %v2223
        %2290 = vmatmul.mubr.f32.gmra.mrb[0].mxu0 %v2003
        %v2291 = vpop.f32.mrb[0].mxu0
        %v2292 = vadd.f32 0.0, %v2291
        %v2293 = vpop.f32.mrb[0].mxu0
        %v2294 = vadd.f32 0.0, %v2293
        %2295 = vdwg.mxu0
        %2296 = vmatprep.subr.mxu0 %v2008
        %2297 = vmatpush1.msra.mxu0 %v2007
        %2298 = vmatprep.subr.mxu0 %v2016
        %2299 = vmatpush1.msra.mxu0 %v2015
        %2300 = vmatprep.subr.mxu0 %v2024
        %2301 = vmatpush1.msra.mxu0 %v2023
        %2302 = vmatprep.subr.mxu0 %v2032
        %2303 = vmatpush1.msra.mxu0 %v2031
        %2304 = vmatprep.subr.mxu0 %v2040
        %2305 = vmatpush1.msra.mxu0 %v2039
        %2306 = vmatprep.subr.mxu0 %v2048
        %2307 = vmatpush1.msra.mxu0 %v2047
        %2308 = vmatprep.subr.mxu0 %v2056
        %2309 = vmatpush1.msra.mxu0 %v2055
        %2310 = vmatprep.subr.mxu0 %v2064
        %2311 = vmatpush1.msra.mxu0 %v2063
        %2312 = vmatprep.subr.mxu0 %v2072
        %2313 = vmatpush1.msra.mxu0 %v2071
        %2314 = vmatprep.subr.mxu0 %v2080
        %2315 = vmatpush1.msra.mxu0 %v2079
        %2316 = vmatprep.subr.mxu0 %v2088
        %2317 = vmatpush1.msra.mxu0 %v2087
        %2318 = vmatprep.subr.mxu0 %v2096
        %2319 = vmatpush1.msra.mxu0 %v2095
        %2320 = vmatprep.subr.mxu0 %v2104
        %2321 = vmatpush1.msra.mxu0 %v2103
        %2322 = vmatprep.subr.mxu0 %v2112
        %2323 = vmatpush1.msra.mxu0 %v2111
        %2324 = vmatprep.subr.mxu0 %v2120
        %2325 = vmatpush1.msra.mxu0 %v2119
        %2326 = vmatprep.subr.mxu0 %v2128
        %2327 = vmatpush1.msra.mxu0 %v2127
        %2328 = vmatprep.subr.mxu0 %v2136
        %2329 = vmatpush1.msra.mxu0 %v2135
        %2330 = vmatprep.subr.mxu0 %v2144
        %2331 = vmatpush1.msra.mxu0 %v2143
        %2332 = vmatprep.subr.mxu0 %v2152
        %2333 = vmatpush1.msra.mxu0 %v2151
        %2334 = vmatprep.subr.mxu0 %v2160
        %2335 = vmatpush1.msra.mxu0 %v2159
        %2336 = vmatprep.subr.mxu0 %v2168
        %2337 = vmatpush1.msra.mxu0 %v2167
        %2338 = vmatprep.subr.mxu0 %v2176
        %2339 = vmatpush1.msra.mxu0 %v2175
        %2340 = vmatprep.subr.mxu0 %v2184
        %2341 = vmatpush1.msra.mxu0 %v2183
        %2342 = vmatprep.subr.mxu0 %v2192
        %2343 = vmatpush1.msra.mxu0 %v2191
        %2344 = vmatprep.subr.mxu0 %v2200
        %2345 = vmatpush1.msra.mxu0 %v2199
        %2346 = vmatprep.subr.mxu0 %v2208
        %2347 = vmatpush1.msra.mxu0 %v2207
        %2348 = vmatprep.subr.mxu0 %v2216
        %2349 = vmatpush1.msra.mxu0 %v2215
        %2350 = vmatprep.subr.mxu0 0.0
        %2351 = vmatpush1.msra.mxu0 0.0
        %2352 = vmatprep.subr.mxu0 0.0
        %2353 = vmatpush1.msra.mxu0 0.0
        %2354 = vmatprep.subr.mxu0 0.0
        %2355 = vmatpush1.msra.mxu0 0.0
        %2356 = vmatprep.subr.mxu0 0.0
        %2357 = vmatpush1.msra.mxu0 0.0
        %2358 = vmatprep.subr.mxu0 0.0
        %2359 = vmatpush1.msra.mxu0 0.0
        %2360 = vmatprep.mubr.f32.mxu0 %v2223
        %2361 = vmatmul.mubr.f32.gmra.mrb[0].mxu0 %v2003
        %v2362 = vpop.f32.mrb[0].mxu0
        %v2363 = vadd.f32 0.0, %v2362
        %v2364 = vpop.f32.mrb[0].mxu0
        %v2365 = vadd.f32 0.0, %v2364
        %2366 = vdwg.mxu0
        %2367 = vmatprep.subr.mxu0 %v2010
        %2368 = vmatpush1.msra.mxu0 %v2009
        %2369 = vmatprep.subr.mxu0 %v2018
        %2370 = vmatpush1.msra.mxu0 %v2017
        %2371 = vmatprep.subr.mxu0 %v2026
        %2372 = vmatpush1.msra.mxu0 %v2025
        %2373 = vmatprep.subr.mxu0 %v2034
        %2374 = vmatpush1.msra.mxu0 %v2033
        %2375 = vmatprep.subr.mxu0 %v2042
        %2376 = vmatpush1.msra.mxu0 %v2041
        %2377 = vmatprep.subr.mxu0 %v2050
        %2378 = vmatpush1.msra.mxu0 %v2049
        %2379 = vmatprep.subr.mxu0 %v2058
        %2380 = vmatpush1.msra.mxu0 %v2057
        %2381 = vmatprep.subr.mxu0 %v2066
        %2382 = vmatpush1.msra.mxu0 %v2065
        %2383 = vmatprep.subr.mxu0 %v2074
        %2384 = vmatpush1.msra.mxu0 %v2073
        %2385 = vmatprep.subr.mxu0 %v2082
        %2386 = vmatpush1.msra.mxu0 %v2081
        %2387 = vmatprep.subr.mxu0 %v2090
        %2388 = vmatpush1.msra.mxu0 %v2089
        %2389 = vmatprep.subr.mxu0 %v2098
        %2390 = vmatpush1.msra.mxu0 %v2097
        %2391 = vmatprep.subr.mxu0 %v2106
        %2392 = vmatpush1.msra.mxu0 %v2105
        %2393 = vmatprep.subr.mxu0 %v2114
        %2394 = vmatpush1.msra.mxu0 %v2113
        %2395 = vmatprep.subr.mxu0 %v2122
        %2396 = vmatpush1.msra.mxu0 %v2121
        %2397 = vmatprep.subr.mxu0 %v2130
        %2398 = vmatpush1.msra.mxu0 %v2129
        %2399 = vmatprep.subr.mxu0 %v2138
        %2400 = vmatpush1.msra.mxu0 %v2137
        %2401 = vmatprep.subr.mxu0 %v2146
        %2402 = vmatpush1.msra.mxu0 %v2145
        %2403 = vmatprep.subr.mxu0 %v2154
        %2404 = vmatpush1.msra.mxu0 %v2153
        %2405 = vmatprep.subr.mxu0 %v2162
        %2406 = vmatpush1.msra.mxu0 %v2161
        %2407 = vmatprep.subr.mxu0 %v2170
        %2408 = vmatpush1.msra.mxu0 %v2169
        %2409 = vmatprep.subr.mxu0 %v2178
        %2410 = vmatpush1.msra.mxu0 %v2177
        %2411 = vmatprep.subr.mxu0 %v2186
        %2412 = vmatpush1.msra.mxu0 %v2185
        %2413 = vmatprep.subr.mxu0 %v2194
        %2414 = vmatpush1.msra.mxu0 %v2193
        %2415 = vmatprep.subr.mxu0 %v2202
        %2416 = vmatpush1.msra.mxu0 %v2201
        %2417 = vmatprep.subr.mxu0 %v2210
        %2418 = vmatpush1.msra.mxu0 %v2209
        %2419 = vmatprep.subr.mxu0 %v2218
        %2420 = vmatpush1.msra.mxu0 %v2217
        %2421 = vmatprep.subr.mxu0 0.0
        %2422 = vmatpush1.msra.mxu0 0.0
        %2423 = vmatprep.subr.mxu0 0.0
        %2424 = vmatpush1.msra.mxu0 0.0
        %2425 = vmatprep.subr.mxu0 0.0
        %2426 = vmatpush1.msra.mxu0 0.0
        %2427 = vmatprep.subr.mxu0 0.0
        %2428 = vmatpush1.msra.mxu0 0.0
        %2429 = vmatprep.subr.mxu0 0.0
        %2430 = vmatpush1.msra.mxu0 0.0
        %2431 = vmatprep.mubr.f32.mxu0 %v2223
        %2432 = vmatmul.mubr.f32.gmra.mrb[0].mxu0 %v2003
        %v2433 = vpop.f32.mrb[0].mxu0
        %v2434 = vadd.f32 0.0, %v2433
        %v2435 = vpop.f32.mrb[0].mxu0
        %v2436 = vadd.f32 0.0, %v2435
        %2437 = vdwg.mxu0
        %2438 = vmatprep.subr.mxu0 %v2012
        %2439 = vmatpush1.msra.mxu0 %v2011
        %2440 = vmatprep.subr.mxu0 %v2020
        %2441 = vmatpush1.msra.mxu0 %v2019
        %2442 = vmatprep.subr.mxu0 %v2028
        %2443 = vmatpush1.msra.mxu0 %v2027
        %2444 = vmatprep.subr.mxu0 %v2036
        %2445 = vmatpush1.msra.mxu0 %v2035
        %2446 = vmatprep.subr.mxu0 %v2044
        %2447 = vmatpush1.msra.mxu0 %v2043
        %2448 = vmatprep.subr.mxu0 %v2052
        %2449 = vmatpush1.msra.mxu0 %v2051
        %2450 = vmatprep.subr.mxu0 %v2060
        %2451 = vmatpush1.msra.mxu0 %v2059
        %2452 = vmatprep.subr.mxu0 %v2068
        %2453 = vmatpush1.msra.mxu0 %v2067
        %2454 = vmatprep.subr.mxu0 %v2076
        %2455 = vmatpush1.msra.mxu0 %v2075
        %2456 = vmatprep.subr.mxu0 %v2084
        %2457 = vmatpush1.msra.mxu0 %v2083
        %2458 = vmatprep.subr.mxu0 %v2092
        %2459 = vmatpush1.msra.mxu0 %v2091
        %2460 = vmatprep.subr.mxu0 %v2100
        %2461 = vmatpush1.msra.mxu0 %v2099
        %2462 = vmatprep.subr.mxu0 %v2108
        %2463 = vmatpush1.msra.mxu0 %v2107
        %2464 = vmatprep.subr.mxu0 %v2116
        %2465 = vmatpush1.msra.mxu0 %v2115
        %2466 = vmatprep.subr.mxu0 %v2124
        %2467 = vmatpush1.msra.mxu0 %v2123
        %2468 = vmatprep.subr.mxu0 %v2132
        %2469 = vmatpush1.msra.mxu0 %v2131
        %2470 = vmatprep.subr.mxu0 %v2140
        %2471 = vmatpush1.msra.mxu0 %v2139
        %2472 = vmatprep.subr.mxu0 %v2148
        %2473 = vmatpush1.msra.mxu0 %v2147
        %2474 = vmatprep.subr.mxu0 %v2156
        %2475 = vmatpush1.msra.mxu0 %v2155
        %2476 = vmatprep.subr.mxu0 %v2164
        %2477 = vmatpush1.msra.mxu0 %v2163
        %2478 = vmatprep.subr.mxu0 %v2172
        %2479 = vmatpush1.msra.mxu0 %v2171
        %2480 = vmatprep.subr.mxu0 %v2180
        %2481 = vmatpush1.msra.mxu0 %v2179
        %2482 = vmatprep.subr.mxu0 %v2188
        %2483 = vmatpush1.msra.mxu0 %v2187
        %2484 = vmatprep.subr.mxu0 %v2196
        %2485 = vmatpush1.msra.mxu0 %v2195
        %2486 = vmatprep.subr.mxu0 %v2204
        %2487 = vmatpush1.msra.mxu0 %v2203
        %2488 = vmatprep.subr.mxu0 %v2212
        %2489 = vmatpush1.msra.mxu0 %v2211
        %2490 = vmatprep.subr.mxu0 %v2220
        %2491 = vmatpush1.msra.mxu0 %v2219
        %2492 = vmatprep.subr.mxu0 0.0
        %2493 = vmatpush1.msra.mxu0 0.0
        %2494 = vmatprep.subr.mxu0 0.0
        %2495 = vmatpush1.msra.mxu0 0.0
        %2496 = vmatprep.subr.mxu0 0.0
        %2497 = vmatpush1.msra.mxu0 0.0
        %2498 = vmatprep.subr.mxu0 0.0
        %2499 = vmatpush1.msra.mxu0 0.0
        %2500 = vmatprep.subr.mxu0 0.0
        %2501 = vmatpush1.msra.mxu0 0.0
        %2502 = vmatprep.mubr.f32.mxu0 %v2223
        %2503 = vmatmul.mubr.f32.gmra.mrb[0].mxu0 %v2003
        %v2504 = vpop.f32.mrb[0].mxu0
        %v2505 = vadd.f32 0.0, %v2504
        %v2506 = vpop.f32.mrb[0].mxu0
        %v2507 = vadd.f32 0.0, %v2506
        %2508 = vdwg.mxu0
        %2509 = vst [vmem:[%s321] sm:$0xff] %v2292
        %2510 = vst [vmem:[%s321 + $0x8] sm:$0xff] %v2294
        %2511 = vst [vmem:[%s321 + $0x10] sm:$0xff] %v2363
        %2512 = vst [vmem:[%s321 + $0x18] sm:$0xff] %v2365
        %2513 = vst [vmem:[%s321 + $0x20] sm:$0xff] %v2434
        %2514 = vst [vmem:[%s321 + $0x28] sm:$0xff] %v2436
        %2515 = vst [vmem:[%s321 + $0x30] sm:$0xff] %v2505
        %2516 = vst.msk [vmem:[%s321 + $0x38] sm:$0xff] %vm426, %v2507
        %v2517 = vmul.f32 %v2292, %v378
        %v2518 = vmul.f32 %v2294, %v382
        %v2519 = vmul.f32 %v2363, %v386
        %v2520 = vmul.f32 %v2365, %v390
        %v2521 = vmul.f32 %v2434, %v394
        %v2522 = vmul.f32 %v2436, %v398
        %v2523 = vmul.f32 %v2505, %v402
        %v2524 = vmul.f32 %v2507, %v406
        %v2525 = vadd.f32 %v2517, %v2518
        %v2526 = vadd.f32 %v2525, %v2519
        %v2527 = vadd.f32 %v2526, %v2520
        %v2528 = vadd.f32 %v2527, %v2521
        %v2529 = vadd.f32 %v2528, %v2522
        %v2530 = vadd.f32 %v2529, %v2523
        %v2531 = vsel %vm426, %v2524, 0.0
        %v2532 = vadd.f32 %v2530, %v2531
        %2533 = vadd.xlane.f32.xlu0 %v2532
        %v2534 = vpop.xlane.xlu0 %2533
        %v2536 = vlaneseq
        %v2537 = vand.u32 %v2536, 127
        %v2538 = vlaneseq
        %v2539 = vshrl.u32 %v2538, 7
        %v2540 = vsub.s32 %v2537, %v2539
        %v2541 = vrot.slane %v2534, %v2540
        %vm2543 = vcmask 57344
        %2544 = vst.msk [vmem:[%s328] sm:$0x1] %vm2543, %v2541
        %v2545 = vmul.f32 %v2517, %v2292
        %v2546 = vmul.f32 %v2518, %v2294
        %v2547 = vmul.f32 %v2519, %v2363
        %v2548 = vmul.f32 %v2520, %v2365
        %v2549 = vmul.f32 %v2521, %v2434
        %v2550 = vmul.f32 %v2522, %v2436
        %v2551 = vmul.f32 %v2523, %v2505
        %v2552 = vmul.f32 %v2524, %v2507
        %v2553 = vadd.f32 %v2545, %v2546
        %v2554 = vadd.f32 %v2553, %v2547
        %v2555 = vadd.f32 %v2554, %v2548
        %v2556 = vadd.f32 %v2555, %v2549
        %v2557 = vadd.f32 %v2556, %v2550
        %v2558 = vadd.f32 %v2557, %v2551
        %v2559 = vsel %vm426, %v2552, 0.0
        %v2560 = vadd.f32 %v2558, %v2559
        %2561 = vadd.xlane.f32.xlu0 %v2560
        %v2562 = vpop.xlane.xlu0 %2561
        %v2564 = vlaneseq
        %v2565 = vshrl.u32 %v2564, 7
        %v2566 = vsub.s32 %v2537, %v2565
        %v2567 = vrot.slane %v2562, %v2566
        %2569 = vst.msk [vmem:[%s328 + $0x1] sm:$0x1] %vm2543, %v2567
        %s2570 = sand.u32 %s147, 1
        %s2571 = scalar_lea.sflag [#allocation6], %s2570
        %s2572 = sand.u32 %s147, 1
        %s2573 = smul.addr %s2572, 64
        %s2574 = scalar_lea.vmem [#allocation13], %s2573
        %s2575 = sand.u32 %s173, 1
        %s2576 = scalar_lea.sflag [#allocation15], %s2575
        %s2577 = sand.u32 %s173, 1
        %s2578 = smul.addr %s2577, 2
        %s2579 = scalar_lea.vmem [#allocation14], %s2578
        // Predicated region
        $region61: #{double_conv.4} parent=39 // pred_check
          %p2580 = pneg %p157
        $region62: #{double_conv.4} parent=39 // pred_check_branch
          %2582 = sbr.rel (%p2580) target = $region64
        $region63: #{double_conv.4} parent=39 // pred_region
          %s2584 = ssub.s32 1024, 1024
          %2585 = vsyncadd %s2571, %s2584
          %s2586 = smul.addr %s29, 8
          %s2587 = smul.addr %s2586, 128
          %s2588 = scalar_lea.hbm %s5, %s2587
          %s2590 = sshll.u32 %s2574, 4
          %s2591 = int_to_ptr.vmem [resolvable:$true] %s2590
          %2593 = dma.vmem_to_hbm [thread:$0]  %s2591, 1024, %s2588, %s2571
        $region64: #{double_conv.4} parent=39 // pred_fallthru
          _
        // Predicated region
        $region65: #{double_conv.4} parent=39 // pred_check
          %p2594 = pneg %p183
        $region66: #{double_conv.4} parent=39 // pred_check_branch
          %2596 = sbr.rel (%p2594) target = $region68
        $region67: #{double_conv.4} parent=39 // pred_region
          %s2598 = ssub.s32 32, 32
          %2599 = vsyncadd %s2576, %s2598
          %s2600 = smul.addr %s29, 32
          %s2601 = scalar_lea.hbm %s6, %s2600
          %s2603 = sshll.u32 %s2579, 4
          %s2604 = int_to_ptr.vmem [resolvable:$true] %s2603
          %2606 = dma.vmem_to_hbm [thread:$0]  %s2604, 32, %s2601, %s2576
        $region68: #{double_conv.4} parent=39 // pred_fallthru
          _
      $region40: #{double_conv.4} parent=5 // pred_fallthru
        _
      %p2607 = scmp.le.s32.totalorder 2, %s24
      // Predicated region
      $region69: #{double_conv.4} parent=5 // pred_check
        %p2608 = pneg %p2607
      $region70: #{double_conv.4} parent=5 // pred_check_branch
        %2610 = sbr.rel (%p2608) target = $region72
      $region71: #{double_conv.4} parent=5 // pred_region
        %s2611 = ssub.s32 %s24, 2
        // Predicated region
        $region73: #{double_conv.4} parent=71 // pred_check
          %p2612 = pneg %p163
        $region74: #{double_conv.4} parent=71 // pred_check_branch
          %2614 = sbr.rel (%p2612) target = $region76
        $region75: #{double_conv.4} parent=71 // pred_region
          %s2615 = sand.u32 %s148, 1
          %s2616 = scalar_lea.sflag [#allocation6], %s2615
          %s2617 = sand.u32 %s148, 1
          %s2618 = smul.addr %s2617, 64
          %s2619 = scalar_lea.vmem [#allocation13], %s2618
          %2620 = dma.done %s2616, 1024
        $region76: #{double_conv.4} parent=71 // pred_fallthru
          _
        // Predicated region
        $region77: #{double_conv.4} parent=71 // pred_check
          %p2621 = pneg %p189
        $region78: #{double_conv.4} parent=71 // pred_check_branch
          %2623 = sbr.rel (%p2621) target = $region80
        $region79: #{double_conv.4} parent=71 // pred_region
          %s2624 = sand.u32 %s174, 1
          %s2625 = scalar_lea.sflag [#allocation15], %s2624
          %s2626 = sand.u32 %s174, 1
          %s2627 = smul.addr %s2626, 2
          %s2628 = scalar_lea.vmem [#allocation14], %s2627
          %2629 = dma.done %s2625, 32
        $region80: #{double_conv.4} parent=71 // pred_fallthru
          _
      $region72: #{double_conv.4} parent=5 // pred_fallthru
        _
    $region6: #{double_conv.4} parent=1 // loop_footer
      %s28 = sadd.s32 1, %s24
    $region7: #{double_conv.4} parent=1 // loop_footer_branch
      %23 = sbr.rel target = $region3
    $region8: #{double_conv.4} parent=1 // loop_exit
      _
    %2630 = vsyncpa [#allocation5], 1
    %s2631 = scalar_lea.sflag [#allocation5], 1
    %2632 = vsyncpa %s2631, 1
    %2633 = vsyncpa [#allocation8], 1
    %2634 = vsyncpa [#allocation11], 1
    %2635 = vsyncpa [#allocation6], 1
    %s2636 = scalar_lea.sflag [#allocation6], 1
    %2637 = vsyncpa %s2636, 1
    %2638 = vsyncpa [#allocation15], 1
    %s2639 = scalar_lea.sflag [#allocation15], 1
    %2640 = vsyncpa %s2639, 1

</llo_original>
